<compile_context>
chip_gen: v6e
topology: v6e:2x2x1
jax: 0.10.0
libtpu: 0.0.40
codegen_flags: <defaults>
</compile_context>

<pallas_src>
import functools

import jax
import jax.numpy as jnp
from jax.experimental import pallas as pl
from jax.experimental.pallas import tpu as pltpu


def _mhta_kernel(xq_ref, tdq_ref, xkv_ref, tdkv_ref,
                 wt_ref, bt_ref,
                 wq_ref, bq_ref, wk_ref, bk_ref, wv_ref, bv_ref,
                 wo_ref, bo_ref, gamma_ref, beta_ref,
                 o_ref,
                 q_sc, x3q_sc, m_sc, l_sc, acc_sc,
                 *, num_heads, compute_dtype):
    f32 = jnp.float32
    ki = pl.program_id(2)
    nk = pl.num_programs(2)
    H = num_heads
    tq, E = x3q_sc.shape
    tk = xkv_ref.shape[1]
    Dh = E // H
    scale = 1.0 / (Dh ** 0.5)

    wt = wt_ref[...].astype(f32)                    # (1, E)  temporal Linear(1,E).T
    bt = bt_ref[...].astype(f32)                    # (1, E)

    # ---- once per (batch, q-tile): temporal encoding of the q rows,
    #      head-major Q projection, flash-state init -------------------------
    @pl.when(ki == 0)
    def _init():
        xq = xq_ref[0].astype(f32)                  # (tq, E)
        tdq = tdq_ref[0].astype(f32)                # (tq, 1)
        x3q = xq + tdq * wt + bt                    # (tq, E) f32 (kept for residual)
        x3q_sc[...] = x3q
        xb = jnp.broadcast_to(x3q.astype(compute_dtype)[None], (H, tq, E))
        q = jnp.einsum('hqe,hed->hqd', xb, wq_ref[...],
                       preferred_element_type=f32)              # (H, tq, Dh)
        q = (q + bq_ref[...].astype(f32)) * scale
        q_sc[...] = q.astype(compute_dtype)
        m_sc[...] = jnp.full(m_sc.shape, -jnp.inf, f32)
        l_sc[...] = jnp.zeros(l_sc.shape, f32)
        acc_sc[...] = jnp.zeros(acc_sc.shape, f32)

    # ---- every kv-tile: temporal encoding + head-major K/V projection,
    #      online-softmax (flash) update, all heads batched ------------------
    xkv = xkv_ref[0].astype(f32)                    # (tk, E)
    tdkv = tdkv_ref[0].astype(f32)                  # (tk, 1)
    x3kv = xkv + tdkv * wt + bt                     # (tk, E) f32 elementwise
    xkb = jnp.broadcast_to(x3kv.astype(compute_dtype)[None], (H, tk, E))
    k = (jnp.einsum('hke,hed->hkd', xkb, wk_ref[...], preferred_element_type=f32)
         + bk_ref[...].astype(f32)).astype(compute_dtype)       # (H, tk, Dh)
    v = (jnp.einsum('hke,hed->hkd', xkb, wv_ref[...], preferred_element_type=f32)
         + bv_ref[...].astype(f32)).astype(compute_dtype)       # (H, tk, Dh)

    q = q_sc[...]                                               # (H, tq, Dh)
    s = jnp.einsum('hqd,hkd->hqk', q, k,
                   preferred_element_type=f32)                  # (H, tq, tk) f32
    m_prev = m_sc[...]                                          # (H, tq, 1)
    m_new = jnp.maximum(m_prev, jnp.max(s, axis=-1, keepdims=True))
    alpha = jnp.exp(m_prev - m_new)                             # (H, tq, 1)
    p = jnp.exp(s - m_new)                                      # (H, tq, tk)
    l_sc[...] = alpha * l_sc[...] + jnp.sum(p, axis=-1, keepdims=True)
    acc_sc[...] = alpha * acc_sc[...] + jnp.einsum(
        'hqk,hkd->hqd', p.astype(compute_dtype), v,
        preferred_element_type=f32)                             # (H, tq, Dh)
    m_sc[...] = m_new

    # ---- once per (batch, q-tile), after the last kv-tile:
    #      normalize, out-projection, residual + LayerNorm, store ------------
    @pl.when(ki == nk - 1)
    def _finalize():
        inv_l = pl.reciprocal(l_sc[...], approx=True)           # EUP reciprocal
        ctx = acc_sc[...] * inv_l                               # (H, tq, Dh) f32
        # head-major out projection: per-head matmul + reduce over heads ==
        # concat(heads) @ W_out, with no transpose / concat relayout.
        attn = jnp.einsum('hqd,hde->hqe', ctx.astype(compute_dtype), wo_ref[...],
                          preferred_element_type=f32)           # (H, tq, E)
        attn = jnp.sum(attn, axis=0) + bo_ref[...].astype(f32)  # (tq, E)
        r = x3q_sc[...] + attn                                  # residual on encoded x
        mu = jnp.mean(r, axis=-1, keepdims=True)
        var = jnp.mean(jnp.square(r - mu), axis=-1, keepdims=True)
        y = (r - mu) * jax.lax.rsqrt(var + 1e-5)                # EUP rsqrt
        y = y * gamma_ref[...].astype(f32) + beta_ref[...].astype(f32)
        o_ref[0] = y.astype(o_ref.dtype)


def multi_head_temporal_attention(x, time_deltas, params, num_heads,
                                  *, compute_dtype=None,
                                  q_tile=128, kv_tile=128):
    """Pallas forward for the temporal MHA block (inference)."""
    B, S, E = x.shape
    H = num_heads
    assert E % H == 0, "embed_dim must be divisible by num_heads"
    Dh = E // H
    cdt = x.dtype if compute_dtype is None else jnp.dtype(compute_dtype)

    td = time_deltas[..., None].astype(jnp.float32)             # (B, S, 1)

    # Head-major weight layouts (host side, free): each head becomes a leading
    # batch dim so the kernel never slices the lane axis nor transposes.
    def head_major(w_t):                                        # (E,E) -> (H,E,Dh)
        return jnp.transpose(w_t.reshape(E, H, Dh), (1, 0, 2)).astype(cdt)

    wq_h = head_major(params['wq_t'])
    wk_h = head_major(params['wk_t'])
    wv_h = head_major(params['wv_t'])
    wo_h = params['wo_t'].reshape(H, Dh, E).astype(cdt)          # (H, Dh, E)
    bq_h = params['bq'].reshape(H, 1, Dh).astype(jnp.float32)
    bk_h = params['bk'].reshape(H, 1, Dh).astype(jnp.float32)
    bv_h = params['bv'].reshape(H, 1, Dh).astype(jnp.float32)

    # Tile sizes: 128 keeps the per-step footprint small on every generation
    # (well under v7x's 64 MiB VMEM even with H-batched scores); fall back to
    # the full (short) sequence when S is not a multiple of the tile.
    tq = q_tile if S % q_tile == 0 else S
    tk = kv_tile if S % kv_tile == 0 else S
    grid = (B, S // tq, S // tk)

    q_map = lambda b, qi, ki: (b, qi, 0)
    kv_map = lambda b, qi, ki: (b, ki, 0)
    w2_map = lambda b, qi, ki: (0, 0)
    w3_map = lambda b, qi, ki: (0, 0, 0)

    in_specs = [
        pl.BlockSpec((1, tq, E), q_map),      # x   (query rows)
        pl.BlockSpec((1, tq, 1), q_map),      # td  (query rows)
        pl.BlockSpec((1, tk, E), kv_map),     # x   (kv rows)
        pl.BlockSpec((1, tk, 1), kv_map),     # td  (kv rows)
        pl.BlockSpec((1, E), w2_map),         # wt
        pl.BlockSpec((1, E), w2_map),         # bt
        pl.BlockSpec((H, E, Dh), w3_map),     # wq (head-major)
        pl.BlockSpec((H, 1, Dh), w3_map),     # bq
        pl.BlockSpec((H, E, Dh), w3_map),     # wk
        pl.BlockSpec((H, 1, Dh), w3_map),     # bk
        pl.BlockSpec((H, E, Dh), w3_map),     # wv
        pl.BlockSpec((H, 1, Dh), w3_map),     # bv
        pl.BlockSpec((H, Dh, E), w3_map),     # wo (head-major)
        pl.BlockSpec((1, E), w2_map),         # bo
        pl.BlockSpec((1, E), w2_map),         # gamma
        pl.BlockSpec((1, E), w2_map),         # beta
    ]
    out_specs = pl.BlockSpec((1, tq, E), q_map)

    scratch = [
        pltpu.VMEM((H, tq, Dh), cdt),           # pre-scaled Q, head-major
        pltpu.VMEM((tq, E), jnp.float32),       # temporally-encoded q rows (residual)
        pltpu.VMEM((H, tq, 1), jnp.float32),    # running max  m
        pltpu.VMEM((H, tq, 1), jnp.float32),    # running sum  l
        pltpu.VMEM((H, tq, Dh), jnp.float32),   # running PV accumulator
    ]

    flops = 8 * B * S * E * E + 4 * B * S * S * E
    bytes_accessed = int(4 * (3 * B * S * E + 2 * B * S + 8 * E)
                         + 4 * E * E * jnp.dtype(cdt).itemsize)
    cost = pl.CostEstimate(flops=flops,
                           transcendentals=B * H * S * S,
                           bytes_accessed=bytes_accessed)

    kernel = functools.partial(_mhta_kernel, num_heads=H, compute_dtype=cdt)

    return pl.pallas_call(
        kernel,
        out_shape=jax.ShapeDtypeStruct((B, S, E), x.dtype),
        grid_spec=pltpu.PrefetchScalarGridSpec(
            num_scalar_prefetch=0,
            grid=grid,
            in_specs=in_specs,
            out_specs=out_specs,
            scratch_shapes=scratch),
        compiler_params=pltpu.CompilerParams(
            dimension_semantics=("parallel", "parallel", "arbitrary"),
            vmem_limit_bytes=32 * 1024 * 1024),
        cost_estimate=cost,
    )(x, td, x, td,
      params['wt'], params['bt'],
      wq_h, bq_h, wk_h, bk_h, wv_h, bv_h,
      wo_h, params['bo'], params['gamma'], params['beta'])


def _reference(x, time_deltas, params, num_heads):
    """Pure-JAX reference mirroring the PyTorch forward (eval mode)."""
    B, S, E = x.shape
    H = num_heads
    Dh = E // H
    td = time_deltas[..., None]
    x3 = x + td * params['wt'] + params['bt']
    x2 = x3.reshape(B * S, E)

    def split(z):                                   # (B*S, E) -> (B, H, S, Dh)
        return z.reshape(B, S, H, Dh).transpose(0, 2, 1, 3)

    q = split(x2 @ params['wq_t'] + params['bq'])
    k = split(x2 @ params['wk_t'] + params['bk'])
    v = split(x2 @ params['wv_t'] + params['bv'])

    s = jnp.einsum('bhqd,bhkd->bhqk', q, k) / (Dh ** 0.5)
    p = jax.nn.softmax(s, axis=-1)
    ctx = jnp.einsum('bhqk,bhkd->bhqd', p, v).transpose(0, 2, 1, 3).reshape(B * S, E)

    attn = ctx @ params['wo_t'] + params['bo']
    r = x2 + attn
    mu = r.mean(-1, keepdims=True)
    var = ((r - mu) ** 2).mean(-1, keepdims=True)
    y = (r - mu) / jnp.sqrt(var + 1e-5) * params['gamma'] + params['beta']
    return y.reshape(B, S, E)


def make_params(key, embed_dim):
    E = embed_dim
    ks = jax.random.split(key, 8)
    scale = 1.0 / jnp.sqrt(E)
    return dict(
        # temporal_encoding: nn.Linear(1, E) -> stored transposed (1, E)
        wt=jax.random.normal(ks[0], (1, E), jnp.float32) * 0.5,
        bt=jax.random.normal(ks[1], (1, E), jnp.float32) * 0.1,
        # attention in-projections (stored transposed, (E_in, E_out))
        wq_t=jax.random.normal(ks[2], (E, E), jnp.float32) * scale,
        wk_t=jax.random.normal(ks[3], (E, E), jnp.float32) * scale,
        wv_t=jax.random.normal(ks[4], (E, E), jnp.float32) * scale,
        bq=jax.random.normal(ks[5], (1, E), jnp.float32) * 0.02,
        bk=jnp.zeros((1, E), jnp.float32),
        bv=jax.random.normal(ks[6], (1, E), jnp.float32) * 0.02,
        # out projection
        wo_t=jax.random.normal(ks[7], (E, E), jnp.float32) * scale,
        bo=jnp.zeros((1, E), jnp.float32),
        # LayerNorm(E)
        gamma=jnp.ones((1, E), jnp.float32),
        beta=jnp.zeros((1, E), jnp.float32),
    )


if __name__ == "__main__":
    key = jax.random.PRNGKey(0)

    # ---- small shape (single kv block) ------------------------------------
    B, S, E, H = 2, 8, 32, 4
    kx, kt, kp = jax.random.split(key, 3)
    x = jax.random.normal(kx, (B, S, E), jnp.float32)
    td = jax.random.uniform(kt, (B, S), jnp.float32)
    params = make_params(kp, E)

    out = jax.block_until_ready(multi_head_temporal_attention(x, td, params, H))
    with jax.default_matmul_precision("float32"):
        ref = jax.block_until_ready(_reference(x, td, params, H))
    assert out.shape == (B, S, E)
    err = float(jnp.max(jnp.abs(out - ref)))
    assert err < 5e-3, f"f32 small-shape max err {err}"

    # ---- larger shape: exercises the flash tiling (grid = 2 x 2 x 2) -------
    B2, S2, E2, H2 = 2, 256, 128, 8
    kx2, kt2, kp2 = jax.random.split(jax.random.fold_in(key, 1), 3)
    x2 = jax.random.normal(kx2, (B2, S2, E2), jnp.float32)
    td2 = jax.random.uniform(kt2, (B2, S2), jnp.float32)
    params2 = make_params(kp2, E2)

    out2 = jax.block_until_ready(multi_head_temporal_attention(x2, td2, params2, H2))
    with jax.default_matmul_precision("float32"):
        ref2 = jax.block_until_ready(_reference(x2, td2, params2, H2))
    err2 = float(jnp.max(jnp.abs(out2 - ref2)))
    assert err2 < 5e-3, f"f32 flash-tiled max err {err2}"

    # ---- bf16 MXU-operand path (v6e/v7x fast path), f32 statistics retained -
    out_bf = jax.block_until_ready(
        multi_head_temporal_attention(x2, td2, params2, H2,
                                      compute_dtype=jnp.bfloat16))
    err_bf = float(jnp.max(jnp.abs(out_bf.astype(jnp.float32) - ref2)))
    assert jnp.isfinite(err_bf) and err_bf < 0.25, f"bf16 max err {err_bf}"

    print("KERNEL_OK")
</pallas_src>

<mosaic_0001>
module attributes {stable_mosaic.version = 11 : i64} {
  func.func @_mhta_kernel(%arg0: i32, %arg1: i32, %arg2: i32, %arg3: memref<1x8x32xf32, #tpu.memory_space<vmem>>, %arg4: memref<1x8x1xf32, #tpu.memory_space<vmem>>, %arg5: memref<1x8x32xf32, #tpu.memory_space<vmem>>, %arg6: memref<1x8x1xf32, #tpu.memory_space<vmem>>, %arg7: memref<1x32xf32, #tpu.memory_space<vmem>>, %arg8: memref<1x32xf32, #tpu.memory_space<vmem>>, %arg9: memref<4x32x8xf32, #tpu.memory_space<vmem>>, %arg10: memref<4x1x8xf32, #tpu.memory_space<vmem>>, %arg11: memref<4x32x8xf32, #tpu.memory_space<vmem>>, %arg12: memref<4x1x8xf32, #tpu.memory_space<vmem>>, %arg13: memref<4x32x8xf32, #tpu.memory_space<vmem>>, %arg14: memref<4x1x8xf32, #tpu.memory_space<vmem>>, %arg15: memref<4x8x32xf32, #tpu.memory_space<vmem>>, %arg16: memref<1x32xf32, #tpu.memory_space<vmem>>, %arg17: memref<1x32xf32, #tpu.memory_space<vmem>>, %arg18: memref<1x32xf32, #tpu.memory_space<vmem>>, %arg19: memref<1x8x32xf32, #tpu.memory_space<vmem>>, %arg20: memref<4x8x8xf32, #tpu.memory_space<vmem>>, %arg21: memref<8x32xf32, #tpu.memory_space<vmem>>, %arg22: memref<4x8x1xf32, #tpu.memory_space<vmem>>, %arg23: memref<4x8x1xf32, #tpu.memory_space<vmem>>, %arg24: memref<4x8x8xf32, #tpu.memory_space<vmem>>) attributes {dimension_semantics = [#tpu.dimension_semantics<parallel>, #tpu.dimension_semantics<parallel>, #tpu.dimension_semantics<arbitrary>], iteration_bounds = array<i64: 2, 1, 1>, scalar_prefetch = 0 : i64, scratch_operands = 5 : i64, tpu.core_type = #tpu.core_type<tc>, window_params = [{transform_indices = @transform_0, window_bounds = array<i64: 1, 8, 32>}, {transform_indices = @transform_1, window_bounds = array<i64: 1, 8, 1>}, {transform_indices = @transform_2, window_bounds = array<i64: 1, 8, 32>}, {transform_indices = @transform_3, window_bounds = array<i64: 1, 8, 1>}, {pipeline_mode = #tpu.pipeline_mode<synchronous>, transform_indices = @transform_4, window_bounds = array<i64: 1, 32>}, {pipeline_mode = #tpu.pipeline_mode<synchronous>, transform_indices = @transform_5, window_bounds = array<i64: 1, 32>}, {pipeline_mode = #tpu.pipeline_mode<synchronous>, transform_indices = @transform_6, window_bounds = array<i64: 4, 32, 8>}, {pipeline_mode = #tpu.pipeline_mode<synchronous>, transform_indices = @transform_7, window_bounds = array<i64: 4, 1, 8>}, {pipeline_mode = #tpu.pipeline_mode<synchronous>, transform_indices = @transform_8, window_bounds = array<i64: 4, 32, 8>}, {pipeline_mode = #tpu.pipeline_mode<synchronous>, transform_indices = @transform_9, window_bounds = array<i64: 4, 1, 8>}, {pipeline_mode = #tpu.pipeline_mode<synchronous>, transform_indices = @transform_10, window_bounds = array<i64: 4, 32, 8>}, {pipeline_mode = #tpu.pipeline_mode<synchronous>, transform_indices = @transform_11, window_bounds = array<i64: 4, 1, 8>}, {pipeline_mode = #tpu.pipeline_mode<synchronous>, transform_indices = @transform_12, window_bounds = array<i64: 4, 8, 32>}, {pipeline_mode = #tpu.pipeline_mode<synchronous>, transform_indices = @transform_13, window_bounds = array<i64: 1, 32>}, {pipeline_mode = #tpu.pipeline_mode<synchronous>, transform_indices = @transform_14, window_bounds = array<i64: 1, 32>}, {pipeline_mode = #tpu.pipeline_mode<synchronous>, transform_indices = @transform_15, window_bounds = array<i64: 1, 32>}, {transform_indices = @transform_16, window_bounds = array<i64: 1, 8, 32>}]} {
    %c0 = arith.constant 0 : index
    %c0_0 = arith.constant 0 : index
    %0 = vector.load %arg7[%c0, %c0_0] : memref<1x32xf32, #tpu.memory_space<vmem>>, vector<1x32xf32>
    %c0_1 = arith.constant 0 : index
    %c0_2 = arith.constant 0 : index
    %1 = vector.load %arg8[%c0_1, %c0_2] : memref<1x32xf32, #tpu.memory_space<vmem>>, vector<1x32xf32>
    %c0_i32 = arith.constant 0 : i32
    %2 = arith.cmpi eq, %arg2, %c0_i32 : i32
    %3 = arith.extui %2 : i1 to i32
    %c0_i32_3 = arith.constant 0 : i32
    %4 = arith.cmpi ne, %3, %c0_i32_3 : i32
    scf.if %4 {
      %c0_50 = arith.constant 0 : index
      %c0_51 = arith.constant 0 : index
      %c0_52 = arith.constant 0 : index
      %55 = vector.load %arg3[%c0_50, %c0_51, %c0_52] : memref<1x8x32xf32, #tpu.memory_space<vmem>>, vector<1x8x32xf32>
      %56 = vector.shape_cast %55 : vector<1x8x32xf32> to vector<8x32xf32>
      %c0_53 = arith.constant 0 : index
      %c0_54 = arith.constant 0 : index
      %c0_55 = arith.constant 0 : index
      %57 = vector.load %arg4[%c0_53, %c0_54, %c0_55] : memref<1x8x1xf32, #tpu.memory_space<vmem>>, vector<1x8x1xf32>
      %58 = vector.shape_cast %57 : vector<1x8x1xf32> to vector<8x1xf32>
      %59 = vector.broadcast %58 : vector<8x1xf32> to vector<8x32xf32>
      %60 = vector.broadcast %0 : vector<1x32xf32> to vector<8x32xf32>
      %61 = arith.mulf %59, %60 : vector<8x32xf32>
      %62 = arith.addf %56, %61 : vector<8x32xf32>
      %63 = vector.broadcast %1 : vector<1x32xf32> to vector<8x32xf32>
      %64 = arith.addf %62, %63 : vector<8x32xf32>
      %c0_56 = arith.constant 0 : index
      %c0_57 = arith.constant 0 : index
      %65 = vector.load %arg21[%c0_56, %c0_57] : memref<8x32xf32, #tpu.memory_space<vmem>>, vector<8x32xf32>
      tpu.vector_store %arg21[%c0_56, %c0_57], %64 {strides = array<i32>} : memref<8x32xf32, #tpu.memory_space<vmem>>, vector<8x32xf32>,
      %66 = vector.shape_cast %64 : vector<8x32xf32> to vector<1x8x32xf32>
      %67 = vector.shape_cast %66 : vector<1x8x32xf32> to vector<1x8x32xf32>
      %68 = vector.broadcast %67 : vector<1x8x32xf32> to vector<4x8x32xf32>
      %c0_58 = arith.constant 0 : index
      %c0_59 = arith.constant 0 : index
      %c0_60 = arith.constant 0 : index
      %69 = vector.load %arg9[%c0_58, %c0_59, %c0_60] : memref<4x32x8xf32, #tpu.memory_space<vmem>>, vector<4x32x8xf32>
      "tpu.trace_start"() <{level = 10 : i32, message = "hqe,hed->hqd"}> : () -> ()
      %cst_61 = arith.constant dense<0.000000e+00> : vector<4x8x8xf32>
      %70 = tpu.matmul %68, %69, %cst_61 {dimension_numbers = #tpu.dot_dimension_numbers<[2], [1], [1], [2], [0, 0, 0, 1, 1, 2], [0], [0]>} : vector<4x8x32xf32>, vector<4x32x8xf32>, vector<4x8x8xf32> -> vector<4x8x8xf32>
      "tpu.trace_stop"() : () -> ()
      %c0_62 = arith.constant 0 : index
      %c0_63 = arith.constant 0 : index
      %c0_64 = arith.constant 0 : index
      %71 = vector.load %arg10[%c0_62, %c0_63, %c0_64] : memref<4x1x8xf32, #tpu.memory_space<vmem>>, vector<4x1x8xf32>
      %72 = vector.broadcast %71 : vector<4x1x8xf32> to vector<4x8x8xf32>
      %73 = arith.addf %70, %72 : vector<4x8x8xf32>
      %cst_65 = arith.constant 0.353553385 : f32
      %74 = vector.broadcast %cst_65 : f32 to vector<4x8x8xf32>
      %75 = arith.mulf %73, %74 : vector<4x8x8xf32>
      %c0_66 = arith.constant 0 : index
      %c0_67 = arith.constant 0 : index
      %c0_68 = arith.constant 0 : index
      %76 = vector.load %arg20[%c0_66, %c0_67, %c0_68] : memref<4x8x8xf32, #tpu.memory_space<vmem>>, vector<4x8x8xf32>
      tpu.vector_store %arg20[%c0_66, %c0_67, %c0_68], %75 {strides = array<i32>} : memref<4x8x8xf32, #tpu.memory_space<vmem>>, vector<4x8x8xf32>,
      %cst_69 = arith.constant 0xFF800000 : f32
      %77 = vector.broadcast %cst_69 : f32 to vector<4x8x1xf32>
      %c0_70 = arith.constant 0 : index
      %c0_71 = arith.constant 0 : index
      %c0_72 = arith.constant 0 : index
      %78 = vector.load %arg22[%c0_70, %c0_71, %c0_72] : memref<4x8x1xf32, #tpu.memory_space<vmem>>, vector<4x8x1xf32>
      tpu.vector_store %arg22[%c0_70, %c0_71, %c0_72], %77 {strides = array<i32>} : memref<4x8x1xf32, #tpu.memory_space<vmem>>, vector<4x8x1xf32>,
      %cst_73 = arith.constant 0.000000e+00 : f32
      %79 = vector.broadcast %cst_73 : f32 to vector<4x8x1xf32>
      %c0_74 = arith.constant 0 : index
      %c0_75 = arith.constant 0 : index
      %c0_76 = arith.constant 0 : index
      %80 = vector.load %arg23[%c0_74, %c0_75, %c0_76] : memref<4x8x1xf32, #tpu.memory_space<vmem>>, vector<4x8x1xf32>
      tpu.vector_store %arg23[%c0_74, %c0_75, %c0_76], %79 {strides = array<i32>} : memref<4x8x1xf32, #tpu.memory_space<vmem>>, vector<4x8x1xf32>,
      %cst_77 = arith.constant 0.000000e+00 : f32
      %81 = vector.broadcast %cst_77 : f32 to vector<4x8x8xf32>
      %c0_78 = arith.constant 0 : index
      %c0_79 = arith.constant 0 : index
      %c0_80 = arith.constant 0 : index
      %82 = vector.load %arg24[%c0_78, %c0_79, %c0_80] : memref<4x8x8xf32, #tpu.memory_space<vmem>>, vector<4x8x8xf32>
      tpu.vector_store %arg24[%c0_78, %c0_79, %c0_80], %81 {strides = array<i32>} : memref<4x8x8xf32, #tpu.memory_space<vmem>>, vector<4x8x8xf32>,
    } else {
    }
    %c0_4 = arith.constant 0 : index
    %c0_5 = arith.constant 0 : index
    %c0_6 = arith.constant 0 : index
    %5 = vector.load %arg5[%c0_4, %c0_5, %c0_6] : memref<1x8x32xf32, #tpu.memory_space<vmem>>, vector<1x8x32xf32>
    %6 = vector.shape_cast %5 : vector<1x8x32xf32> to vector<8x32xf32>
    %c0_7 = arith.constant 0 : index
    %c0_8 = arith.constant 0 : index
    %c0_9 = arith.constant 0 : index
    %7 = vector.load %arg6[%c0_7, %c0_8, %c0_9] : memref<1x8x1xf32, #tpu.memory_space<vmem>>, vector<1x8x1xf32>
    %8 = vector.shape_cast %7 : vector<1x8x1xf32> to vector<8x1xf32>
    %9 = vector.broadcast %8 : vector<8x1xf32> to vector<8x32xf32>
    %10 = vector.broadcast %0 : vector<1x32xf32> to vector<8x32xf32>
    %11 = arith.mulf %9, %10 : vector<8x32xf32>
    %12 = arith.addf %6, %11 : vector<8x32xf32>
    %13 = vector.broadcast %1 : vector<1x32xf32> to vector<8x32xf32>
    %14 = arith.addf %12, %13 : vector<8x32xf32>
    %15 = vector.shape_cast %14 : vector<8x32xf32> to vector<1x8x32xf32>
    %16 = vector.shape_cast %15 : vector<1x8x32xf32> to vector<1x8x32xf32>
    %17 = vector.broadcast %16 : vector<1x8x32xf32> to vector<4x8x32xf32>
    %c0_10 = arith.constant 0 : index
    %c0_11 = arith.constant 0 : index
    %c0_12 = arith.constant 0 : index
    %18 = vector.load %arg11[%c0_10, %c0_11, %c0_12] : memref<4x32x8xf32, #tpu.memory_space<vmem>>, vector<4x32x8xf32>
    "tpu.trace_start"() <{level = 10 : i32, message = "hke,hed->hkd"}> : () -> ()
    %cst = arith.constant dense<0.000000e+00> : vector<4x8x8xf32>
    %19 = tpu.matmul %17, %18, %cst {dimension_numbers = #tpu.dot_dimension_numbers<[2], [1], [1], [2], [0, 0, 0, 1, 1, 2], [0], [0]>} : vector<4x8x32xf32>, vector<4x32x8xf32>, vector<4x8x8xf32> -> vector<4x8x8xf32>
    "tpu.trace_stop"() : () -> ()
    %c0_13 = arith.constant 0 : index
    %c0_14 = arith.constant 0 : index
    %c0_15 = arith.constant 0 : index
    %20 = vector.load %arg12[%c0_13, %c0_14, %c0_15] : memref<4x1x8xf32, #tpu.memory_space<vmem>>, vector<4x1x8xf32>
    %21 = vector.broadcast %20 : vector<4x1x8xf32> to vector<4x8x8xf32>
    %22 = arith.addf %19, %21 : vector<4x8x8xf32>
    %c0_16 = arith.constant 0 : index
    %c0_17 = arith.constant 0 : index
    %c0_18 = arith.constant 0 : index
    %23 = vector.load %arg13[%c0_16, %c0_17, %c0_18] : memref<4x32x8xf32, #tpu.memory_space<vmem>>, vector<4x32x8xf32>
    "tpu.trace_start"() <{level = 10 : i32, message = "hke,hed->hkd"}> : () -> ()
    %cst_19 = arith.constant dense<0.000000e+00> : vector<4x8x8xf32>
    %24 = tpu.matmul %17, %23, %cst_19 {dimension_numbers = #tpu.dot_dimension_numbers<[2], [1], [1], [2], [0, 0, 0, 1, 1, 2], [0], [0]>} : vector<4x8x32xf32>, vector<4x32x8xf32>, vector<4x8x8xf32> -> vector<4x8x8xf32>
    "tpu.trace_stop"() : () -> ()
    %c0_20 = arith.constant 0 : index
    %c0_21 = arith.constant 0 : index
    %c0_22 = arith.constant 0 : index
    %25 = vector.load %arg14[%c0_20, %c0_21, %c0_22] : memref<4x1x8xf32, #tpu.memory_space<vmem>>, vector<4x1x8xf32>
    %26 = vector.broadcast %25 : vector<4x1x8xf32> to vector<4x8x8xf32>
    %27 = arith.addf %24, %26 : vector<4x8x8xf32>
    %c0_23 = arith.constant 0 : index
    %c0_24 = arith.constant 0 : index
    %c0_25 = arith.constant 0 : index
    %28 = vector.load %arg20[%c0_23, %c0_24, %c0_25] : memref<4x8x8xf32, #tpu.memory_space<vmem>>, vector<4x8x8xf32>
    "tpu.trace_start"() <{level = 10 : i32, message = "hqd,hkd->hqk"}> : () -> ()
    %cst_26 = arith.constant dense<0.000000e+00> : vector<4x8x8xf32>
    %29 = tpu.matmul %28, %22, %cst_26 {dimension_numbers = #tpu.dot_dimension_numbers<[2], [2], [1], [1], [0, 0, 0, 1, 1, 1], [0], [0]>} : vector<4x8x8xf32>, vector<4x8x8xf32>, vector<4x8x8xf32> -> vector<4x8x8xf32>
    "tpu.trace_stop"() : () -> ()
    %c0_27 = arith.constant 0 : index
    %c0_28 = arith.constant 0 : index
    %c0_29 = arith.constant 0 : index
    %30 = vector.load %arg22[%c0_27, %c0_28, %c0_29] : memref<4x8x1xf32, #tpu.memory_space<vmem>>, vector<4x8x1xf32>
    %cst_30 = arith.constant dense<0xFF800000> : vector<4x8xf32>
    %31 = vector.multi_reduction <maximumf>, %29, %cst_30 [2] : vector<4x8x8xf32> to vector<4x8xf32>
    %32 = vector.shape_cast %31 : vector<4x8xf32> to vector<4x8x1xf32>
    %33 = arith.maximumf %30, %32 : vector<4x8x1xf32>
    %34 = arith.subf %30, %33 : vector<4x8x1xf32>
    %35 = math.exp %34 : vector<4x8x1xf32>
    %36 = vector.broadcast %33 : vector<4x8x1xf32> to vector<4x8x8xf32>
    %37 = arith.subf %29, %36 : vector<4x8x8xf32>
    %38 = math.exp %37 : vector<4x8x8xf32>
    %c0_31 = arith.constant 0 : index
    %c0_32 = arith.constant 0 : index
    %c0_33 = arith.constant 0 : index
    %39 = vector.load %arg23[%c0_31, %c0_32, %c0_33] : memref<4x8x1xf32, #tpu.memory_space<vmem>>, vector<4x8x1xf32>
    %40 = arith.mulf %35, %39 : vector<4x8x1xf32>
    %cst_34 = arith.constant dense<0.000000e+00> : vector<4x8xf32>
    %41 = vector.multi_reduction <add>, %38, %cst_34 [2] : vector<4x8x8xf32> to vector<4x8xf32>
    %42 = vector.shape_cast %41 : vector<4x8xf32> to vector<4x8x1xf32>
    %43 = arith.addf %40, %42 : vector<4x8x1xf32>
    %c0_35 = arith.constant 0 : index
    %c0_36 = arith.constant 0 : index
    %c0_37 = arith.constant 0 : index
    %44 = vector.load %arg23[%c0_35, %c0_36, %c0_37] : memref<4x8x1xf32, #tpu.memory_space<vmem>>, vector<4x8x1xf32>
    tpu.vector_store %arg23[%c0_35, %c0_36, %c0_37], %43 {strides = array<i32>} : memref<4x8x1xf32, #tpu.memory_space<vmem>>, vector<4x8x1xf32>,
    %c0_38 = arith.constant 0 : index
    %c0_39 = arith.constant 0 : index
    %c0_40 = arith.constant 0 : index
    %45 = vector.load %arg24[%c0_38, %c0_39, %c0_40] : memref<4x8x8xf32, #tpu.memory_space<vmem>>, vector<4x8x8xf32>
    %46 = vector.broadcast %35 : vector<4x8x1xf32> to vector<4x8x8xf32>
    %47 = arith.mulf %46, %45 : vector<4x8x8xf32>
    "tpu.trace_start"() <{level = 10 : i32, message = "hqk,hkd->hqd"}> : () -> ()
    %cst_41 = arith.constant dense<0.000000e+00> : vector<4x8x8xf32>
    %48 = tpu.matmul %38, %27, %cst_41 {dimension_numbers = #tpu.dot_dimension_numbers<[2], [1], [1], [2], [0, 0, 0, 1, 1, 2], [0], [0]>} : vector<4x8x8xf32>, vector<4x8x8xf32>, vector<4x8x8xf32> -> vector<4x8x8xf32>
    "tpu.trace_stop"() : () -> ()
    %49 = arith.addf %47, %48 : vector<4x8x8xf32>
    %c0_42 = arith.constant 0 : index
    %c0_43 = arith.constant 0 : index
    %c0_44 = arith.constant 0 : index
    %50 = vector.load %arg24[%c0_42, %c0_43, %c0_44] : memref<4x8x8xf32, #tpu.memory_space<vmem>>, vector<4x8x8xf32>
    tpu.vector_store %arg24[%c0_42, %c0_43, %c0_44], %49 {strides = array<i32>} : memref<4x8x8xf32, #tpu.memory_space<vmem>>, vector<4x8x8xf32>,
    %c0_45 = arith.constant 0 : index
    %c0_46 = arith.constant 0 : index
    %c0_47 = arith.constant 0 : index
    %51 = vector.load %arg22[%c0_45, %c0_46, %c0_47] : memref<4x8x1xf32, #tpu.memory_space<vmem>>, vector<4x8x1xf32>
    tpu.vector_store %arg22[%c0_45, %c0_46, %c0_47], %33 {strides = array<i32>} : memref<4x8x1xf32, #tpu.memory_space<vmem>>, vector<4x8x1xf32>,
    %c0_i32_48 = arith.constant 0 : i32
    %52 = arith.cmpi eq, %arg2, %c0_i32_48 : i32
    %53 = arith.extui %52 : i1 to i32
    %c0_i32_49 = arith.constant 0 : i32
    %54 = arith.cmpi ne, %53, %c0_i32_49 : i32
    scf.if %54 {
      %c0_50 = arith.constant 0 : index
      %c0_51 = arith.constant 0 : index
      %c0_52 = arith.constant 0 : index
      %55 = vector.load %arg23[%c0_50, %c0_51, %c0_52] : memref<4x8x1xf32, #tpu.memory_space<vmem>>, vector<4x8x1xf32>
      %56 = tpu.reciprocal %55 {approx = true} : vector<4x8x1xf32> -> vector<4x8x1xf32>
      %c0_53 = arith.constant 0 : index
      %c0_54 = arith.constant 0 : index
      %c0_55 = arith.constant 0 : index
      %57 = vector.load %arg24[%c0_53, %c0_54, %c0_55] : memref<4x8x8xf32, #tpu.memory_space<vmem>>, vector<4x8x8xf32>
      %58 = vector.broadcast %56 : vector<4x8x1xf32> to vector<4x8x8xf32>
      %59 = arith.mulf %57, %58 : vector<4x8x8xf32>
      %c0_56 = arith.constant 0 : index
      %c0_57 = arith.constant 0 : index
      %c0_58 = arith.constant 0 : index
      %60 = vector.load %arg15[%c0_56, %c0_57, %c0_58] : memref<4x8x32xf32, #tpu.memory_space<vmem>>, vector<4x8x32xf32>
      "tpu.trace_start"() <{level = 10 : i32, message = "hqd,hde->hqe"}> : () -> ()
      %cst_59 = arith.constant dense<0.000000e+00> : vector<4x8x32xf32>
      %61 = tpu.matmul %59, %60, %cst_59 {dimension_numbers = #tpu.dot_dimension_numbers<[2], [1], [1], [2], [0, 0, 0, 1, 1, 2], [0], [0]>} : vector<4x8x8xf32>, vector<4x8x32xf32>, vector<4x8x32xf32> -> vector<4x8x32xf32>
      "tpu.trace_stop"() : () -> ()
      %cst_60 = arith.constant dense<0.000000e+00> : vector<8x32xf32>
      %62 = vector.multi_reduction <add>, %61, %cst_60 [0] : vector<4x8x32xf32> to vector<8x32xf32>
      %c0_61 = arith.constant 0 : index
      %c0_62 = arith.constant 0 : index
      %63 = vector.load %arg16[%c0_61, %c0_62] : memref<1x32xf32, #tpu.memory_space<vmem>>, vector<1x32xf32>
      %64 = vector.broadcast %63 : vector<1x32xf32> to vector<8x32xf32>
      %65 = arith.addf %62, %64 : vector<8x32xf32>
      %c0_63 = arith.constant 0 : index
      %c0_64 = arith.constant 0 : index
      %66 = vector.load %arg21[%c0_63, %c0_64] : memref<8x32xf32, #tpu.memory_space<vmem>>, vector<8x32xf32>
      %67 = arith.addf %66, %65 : vector<8x32xf32>
      %cst_65 = arith.constant dense<0.000000e+00> : vector<8xf32>
      %68 = vector.multi_reduction <add>, %67, %cst_65 [1] : vector<8x32xf32> to vector<8xf32>
      %69 = vector.shape_cast %68 : vector<8xf32> to vector<8x1xf32>
      %cst_66 = arith.constant 3.200000e+01 : f32
      %70 = vector.broadcast %cst_66 : f32 to vector<8x1xf32>
      %71 = arith.divf %69, %70 : vector<8x1xf32>
      %72 = vector.broadcast %71 : vector<8x1xf32> to vector<8x32xf32>
      %73 = arith.subf %67, %72 : vector<8x32xf32>
      %74 = arith.mulf %73, %73 : vector<8x32xf32>
      %cst_67 = arith.constant dense<0.000000e+00> : vector<8xf32>
      %75 = vector.multi_reduction <add>, %74, %cst_67 [1] : vector<8x32xf32> to vector<8xf32>
      %76 = vector.shape_cast %75 : vector<8xf32> to vector<8x1xf32>
      %cst_68 = arith.constant 3.200000e+01 : f32
      %77 = vector.broadcast %cst_68 : f32 to vector<8x1xf32>
      %78 = arith.divf %76, %77 : vector<8x1xf32>
      %79 = vector.broadcast %71 : vector<8x1xf32> to vector<8x32xf32>
      %80 = arith.subf %67, %79 : vector<8x32xf32>
      %cst_69 = arith.constant 9.99999974E-6 : f32
      %81 = vector.broadcast %cst_69 : f32 to vector<8x1xf32>
      %82 = arith.addf %78, %81 : vector<8x1xf32>
      %83 = math.rsqrt %82 : vector<8x1xf32>
      %84 = vector.broadcast %83 : vector<8x1xf32> to vector<8x32xf32>
      %85 = arith.mulf %80, %84 : vector<8x32xf32>
      %c0_70 = arith.constant 0 : index
      %c0_71 = arith.constant 0 : index
      %86 = vector.load %arg17[%c0_70, %c0_71] : memref<1x32xf32, #tpu.memory_space<vmem>>, vector<1x32xf32>
      %87 = vector.broadcast %86 : vector<1x32xf32> to vector<8x32xf32>
      %88 = arith.mulf %85, %87 : vector<8x32xf32>
      %c0_72 = arith.constant 0 : index
      %c0_73 = arith.constant 0 : index
      %89 = vector.load %arg18[%c0_72, %c0_73] : memref<1x32xf32, #tpu.memory_space<vmem>>, vector<1x32xf32>
      %90 = vector.broadcast %89 : vector<1x32xf32> to vector<8x32xf32>
      %91 = arith.addf %88, %90 : vector<8x32xf32>
      %c0_74 = arith.constant 0 : index
      %c0_75 = arith.constant 0 : index
      %c0_76 = arith.constant 0 : index
      %92 = vector.load %arg19[%c0_74, %c0_75, %c0_76] : memref<1x8x32xf32, #tpu.memory_space<vmem>>, vector<1x8x32xf32>
      %93 = vector.shape_cast %92 : vector<1x8x32xf32> to vector<8x32xf32>
      %94 = vector.shape_cast %91 : vector<8x32xf32> to vector<1x8x32xf32>
      tpu.vector_store %arg19[%c0_74, %c0_75, %c0_76], %94 {strides = array<i32>} : memref<1x8x32xf32, #tpu.memory_space<vmem>>, vector<1x8x32xf32>,
    } else {
    }
    return
  }
  func.func @transform_0(%arg0: i32, %arg1: i32, %arg2: i32) -> (i32, i32, i32) {
    %c0_i32 = arith.constant 0 : i32
    %c0_i32_0 = arith.constant 0 : i32
    return %arg0, %arg1, %c0_i32 : i32, i32, i32
  }
  func.func @transform_1(%arg0: i32, %arg1: i32, %arg2: i32) -> (i32, i32, i32) {
    %c0_i32 = arith.constant 0 : i32
    %c0_i32_0 = arith.constant 0 : i32
    return %arg0, %arg1, %c0_i32 : i32, i32, i32
  }
  func.func @transform_2(%arg0: i32, %arg1: i32, %arg2: i32) -> (i32, i32, i32) {
    %c0_i32 = arith.constant 0 : i32
    %c0_i32_0 = arith.constant 0 : i32
    return %arg0, %arg2, %c0_i32 : i32, i32, i32
  }
  func.func @transform_3(%arg0: i32, %arg1: i32, %arg2: i32) -> (i32, i32, i32) {
    %c0_i32 = arith.constant 0 : i32
    %c0_i32_0 = arith.constant 0 : i32
    return %arg0, %arg2, %c0_i32 : i32, i32, i32
  }
  func.func @transform_4(%arg0: i32, %arg1: i32, %arg2: i32) -> (i32, i32) {
    %c0_i32 = arith.constant 0 : i32
    %c0_i32_0 = arith.constant 0 : i32
    %c0_i32_1 = arith.constant 0 : i32
    return %c0_i32, %c0_i32_0 : i32, i32
  }
  func.func @transform_5(%arg0: i32, %arg1: i32, %arg2: i32) -> (i32, i32) {
    %c0_i32 = arith.constant 0 : i32
    %c0_i32_0 = arith.constant 0 : i32
    %c0_i32_1 = arith.constant 0 : i32
    return %c0_i32, %c0_i32_0 : i32, i32
  }
  func.func @transform_6(%arg0: i32, %arg1: i32, %arg2: i32) -> (i32, i32, i32) {
    %c0_i32 = arith.constant 0 : i32
    %c0_i32_0 = arith.constant 0 : i32
    %c0_i32_1 = arith.constant 0 : i32
    %c0_i32_2 = arith.constant 0 : i32
    return %c0_i32, %c0_i32_0, %c0_i32_1 : i32, i32, i32
  }
  func.func @transform_7(%arg0: i32, %arg1: i32, %arg2: i32) -> (i32, i32, i32) {
    %c0_i32 = arith.constant 0 : i32
    %c0_i32_0 = arith.constant 0 : i32
    %c0_i32_1 = arith.constant 0 : i32
    %c0_i32_2 = arith.constant 0 : i32
    return %c0_i32, %c0_i32_0, %c0_i32_1 : i32, i32, i32
  }
  func.func @transform_8(%arg0: i32, %arg1: i32, %arg2: i32) -> (i32, i32, i32) {
    %c0_i32 = arith.constant 0 : i32
    %c0_i32_0 = arith.constant 0 : i32
    %c0_i32_1 = arith.constant 0 : i32
    %c0_i32_2 = arith.constant 0 : i32
    return %c0_i32, %c0_i32_0, %c0_i32_1 : i32, i32, i32
  }
  func.func @transform_9(%arg0: i32, %arg1: i32, %arg2: i32) -> (i32, i32, i32) {
    %c0_i32 = arith.constant 0 : i32
    %c0_i32_0 = arith.constant 0 : i32
    %c0_i32_1 = arith.constant 0 : i32
    %c0_i32_2 = arith.constant 0 : i32
    return %c0_i32, %c0_i32_0, %c0_i32_1 : i32, i32, i32
  }
  func.func @transform_10(%arg0: i32, %arg1: i32, %arg2: i32) -> (i32, i32, i32) {
    %c0_i32 = arith.constant 0 : i32
    %c0_i32_0 = arith.constant 0 : i32
    %c0_i32_1 = arith.constant 0 : i32
    %c0_i32_2 = arith.constant 0 : i32
    return %c0_i32, %c0_i32_0, %c0_i32_1 : i32, i32, i32
  }
  func.func @transform_11(%arg0: i32, %arg1: i32, %arg2: i32) -> (i32, i32, i32) {
    %c0_i32 = arith.constant 0 : i32
    %c0_i32_0 = arith.constant 0 : i32
    %c0_i32_1 = arith.constant 0 : i32
    %c0_i32_2 = arith.constant 0 : i32
    return %c0_i32, %c0_i32_0, %c0_i32_1 : i32, i32, i32
  }
  func.func @transform_12(%arg0: i32, %arg1: i32, %arg2: i32) -> (i32, i32, i32) {
    %c0_i32 = arith.constant 0 : i32
    %c0_i32_0 = arith.constant 0 : i32
    %c0_i32_1 = arith.constant 0 : i32
    %c0_i32_2 = arith.constant 0 : i32
    return %c0_i32, %c0_i32_0, %c0_i32_1 : i32, i32, i32
  }
  func.func @transform_13(%arg0: i32, %arg1: i32, %arg2: i32) -> (i32, i32) {
    %c0_i32 = arith.constant 0 : i32
    %c0_i32_0 = arith.constant 0 : i32
    %c0_i32_1 = arith.constant 0 : i32
    return %c0_i32, %c0_i32_0 : i32, i32
  }
  func.func @transform_14(%arg0: i32, %arg1: i32, %arg2: i32) -> (i32, i32) {
    %c0_i32 = arith.constant 0 : i32
    %c0_i32_0 = arith.constant 0 : i32
    %c0_i32_1 = arith.constant 0 : i32
    return %c0_i32, %c0_i32_0 : i32, i32
  }
  func.func @transform_15(%arg0: i32, %arg1: i32, %arg2: i32) -> (i32, i32) {
    %c0_i32 = arith.constant 0 : i32
    %c0_i32_0 = arith.constant 0 : i32
    %c0_i32_1 = arith.constant 0 : i32
    return %c0_i32, %c0_i32_0 : i32, i32
  }
  func.func @transform_16(%arg0: i32, %arg1: i32, %arg2: i32) -> (i32, i32, i32) {
    %c0_i32 = arith.constant 0 : i32
    %c0_i32_0 = arith.constant 0 : i32
    return %arg0, %arg1, %c0_i32 : i32, i32, i32
  }
}

</mosaic_0001>

<llo_original>
// kernel: tpu_custom_call.1
$region0: #{tpu_custom_call.1}
  #allocation0 [shape = 'u32[]', space=smem, size = 0x4, offset = 0x4, fixed_abs, tag = 'smem constant byte address 0x4 - core index']
  #allocation1 [shape = 'u32[144,128]{1,0:T(1,128)}', space=vmem, size = 0x12000, scoped, tag = 'internal scratch']
  #allocation2 [shape = 'f32[4,8,8]{2,1,0:T(8,128)}', space=vmem, size = 0x4000, scoped, tag = 'scratch operand']
  #allocation3 [shape = 'f32[8,32]{1,0:T(8,128)}', space=vmem, size = 0x1000, scoped, tag = 'scratch operand']
  #allocation4 [shape = 'f32[4,8,1]{2,1,0:T(8,128)}', space=vmem, size = 0x4000, scoped, tag = 'scratch operand']
  #allocation5 [shape = 'f32[4,8,1]{2,1,0:T(8,128)}', space=vmem, size = 0x4000, scoped, tag = 'scratch operand']
  #allocation6 [shape = 'f32[4,8,8]{2,1,0:T(8,128)}', space=vmem, size = 0x4000, scoped, tag = 'scratch operand']
  %s0 = inlined_call_operand.vmem [shape: f32[2,8,32], index: 0, kind: input, shape index: {}]
  %s1 = inlined_call_operand.vmem [shape: f32[2,8,1], index: 1, kind: input, shape index: {}]
  %s2 = inlined_call_operand.vmem [shape: f32[2,8,32], index: 2, kind: input, shape index: {}]
  %s3 = inlined_call_operand.vmem [shape: f32[2,8,1], index: 3, kind: input, shape index: {}]
  %s4 = inlined_call_operand.vmem [shape: f32[1,32], index: 4, kind: input, shape index: {}]
  %s5 = inlined_call_operand.vmem [shape: f32[1,32], index: 5, kind: input, shape index: {}]
  %s6 = inlined_call_operand.vmem [shape: f32[4,32,8], index: 6, kind: input, shape index: {}]
  %s7 = inlined_call_operand.vmem [shape: f32[4,1,8], index: 7, kind: input, shape index: {}]
  %s8 = inlined_call_operand.vmem [shape: f32[4,32,8], index: 8, kind: input, shape index: {}]
  %s9 = inlined_call_operand.vmem [shape: f32[4,1,8], index: 9, kind: input, shape index: {}]
  %s10 = inlined_call_operand.vmem [shape: f32[4,32,8], index: 10, kind: input, shape index: {}]
  %s11 = inlined_call_operand.vmem [shape: f32[4,1,8], index: 11, kind: input, shape index: {}]
  %s12 = inlined_call_operand.vmem [shape: f32[4,8,32], index: 12, kind: input, shape index: {}]
  %s13 = inlined_call_operand.vmem [shape: f32[1,32], index: 13, kind: input, shape index: {}]
  %s14 = inlined_call_operand.vmem [shape: f32[1,32], index: 14, kind: input, shape index: {}]
  %s15 = inlined_call_operand.vmem [shape: f32[1,32], index: 15, kind: input, shape index: {}]
  %s16 = inlined_call_operand.hbm [shape: f32[2,8,32], index: 16, kind: output, shape index: {}]
  %s17 = sld [smem:[#allocation0]]
  $region105: #{tpu_custom_call.1} parent=0
    _
  %s19 = ssub.s32 1, %s17
  %s20 = scalar_select 0, %s19, %s17
  $region1: #{tpu_custom_call.1} parent=0
    #allocation7 [shape = 'u8[8192]{0}', space=vmem, size = 0x2000, scoped, tag = 'output window, operand 0']
    #allocation8 [shape = 's32[2]{0}', space=sflag, size = 0x8, scoped, tag = 'scoped memory for tpu_custom_call.1']
    %21 = vsyncpa [#allocation8], 0
    %s22 = scalar_lea.sflag [#allocation8], 1
    %23 = vsyncpa %s22, 0
    loop: start=0, step=1, limit=4
    $region2: #{tpu_custom_call.1} parent=1 // loop_pre_header
      _
    $region3: #{tpu_custom_call.1} parent=1 // loop_header
      %s25 = sphi 0, %s29
      %p26 = scmp.ge.s32.totalorder %s25, 4
      %s32 = sphi 0, %s51
      %s33 = sphi 0, %s47
      %s34 = sphi 0, %s43
      %s35 = sphi 0, %s32
      %s36 = sphi 0, %s33
      %s37 = sphi 0, %s34
      %s38 = sphi 0, %s35
      %s39 = sphi 0, %s36
      %s40 = sphi 0, %s37
      %s56 = sphi 0, %s58
      %s59 = sphi 0, %s56
      %s60 = sphi 0, %s59
      %s76 = sphi 0, %s60
      %s84 = sphi 0, %s86
      %s87 = sphi 0, %s84
      %s88 = sphi 0, %s87
      %s104 = sphi 0, %s88
      %s112 = sphi 0, %s114
      %s115 = sphi 0, %s112
      %s116 = sphi 0, %s115
      %s132 = sphi 0, %s116
      %s140 = sphi 0, %s142
      %s143 = sphi 0, %s140
      %s144 = sphi 0, %s143
      %s160 = sphi 0, %s144
      %s164 = sphi 0, %s164
      %s166 = sphi 0, %s164
      %s167 = sphi 0, %s166
      %s181 = sphi 0, %s167
      %s185 = sphi 0, %s185
      %s187 = sphi 0, %s185
      %s188 = sphi 0, %s187
      %s202 = sphi 0, %s188
      %s206 = sphi 0, %s206
      %s208 = sphi 0, %s206
      %s209 = sphi 0, %s208
      %s223 = sphi 0, %s209
      %s227 = sphi 0, %s227
      %s229 = sphi 0, %s227
      %s230 = sphi 0, %s229
      %s244 = sphi 0, %s230
      %s248 = sphi 0, %s248
      %s250 = sphi 0, %s248
      %s251 = sphi 0, %s250
      %s265 = sphi 0, %s251
      %s269 = sphi 0, %s269
      %s271 = sphi 0, %s269
      %s272 = sphi 0, %s271
      %s286 = sphi 0, %s272
      %s290 = sphi 0, %s290
      %s292 = sphi 0, %s290
      %s293 = sphi 0, %s292
      %s307 = sphi 0, %s293
      %s311 = sphi 0, %s311
      %s313 = sphi 0, %s311
      %s314 = sphi 0, %s313
      %s328 = sphi 0, %s314
      %s332 = sphi 0, %s332
      %s334 = sphi 0, %s332
      %s335 = sphi 0, %s334
      %s349 = sphi 0, %s335
      %s353 = sphi 0, %s353
      %s355 = sphi 0, %s353
      %s356 = sphi 0, %s355
      %s370 = sphi 0, %s356
      %s374 = sphi 0, %s374
      %s376 = sphi 0, %s374
      %s377 = sphi 0, %s376
      %s391 = sphi 0, %s377
      %s395 = sphi 0, %s395
      %s397 = sphi 0, %s395
      %s398 = sphi 0, %s397
      %s412 = sphi 0, %s398
      %s420 = sphi 0, %s422
      %s423 = sphi 0, %s420
      %s424 = sphi 0, %s423
      %s440 = sphi 0, %s424
    $region4: #{tpu_custom_call.1} parent=1 // loop_header_branch
      %28 = sbr.rel (%p26) target = $region8
    $region5: #{tpu_custom_call.1} parent=1 // loop_body
      %s30 = ssub.s32 %s25, 1
      %s31 = ssub.s32 %s25, 2
      %s41 = sadd.s32 1, %s34
      %p42 = scmp.ge.s32.totalorder %s41, 1
      %s43 = scalar_select %p42, 0, %s41
      %s44 = sadd.s32 1, %s33
      %s45 = scalar_select %p42, %s44, %s33
      %p46 = scmp.ge.s32.totalorder %s45, 1
      %s47 = scalar_select %p46, 0, %s45
      %s48 = sadd.s32 1, %s32
      %s49 = scalar_select %p46, %s48, %s32
      %p50 = scmp.ge.s32.totalorder %s49, 2
      %s51 = scalar_select %p50, 0, %s49
      %s52 = ssub.s32 %s32, %s51
      %s53 = ssub.s32 %s33, %s47
      %s54 = sor.u32 %s52, %s53
      %p55 = scmp.eq.s32.totalorder %s54, 0
      %s57 = sadd.s32 %s56, 1
      %s58 = scalar_select %p55, %s56, %s57
      %p61 = pneg %p55
      %p62 = scmp.eq.s32.totalorder %s25, 1
      %p63 = por %p61, %p62
      %p64 = scmp.ne.s32.totalorder %s56, %s59
      %p65 = scmp.eq.s32.totalorder %s25, 0
      %p66 = por %p64, %p65
      %p67 = scmp.ne.s32.totalorder %s56, %s59
      %p68 = scmp.eq.s32.totalorder %s30, 1
      %p69 = por %p67, %p68
      %p70 = scmp.ne.s32.totalorder %s59, %s60
      %p71 = scmp.eq.s32.totalorder %s30, 0
      %p72 = por %p70, %p71
      %p73 = scmp.ne.s32.totalorder %s59, %s60
      %p74 = scmp.eq.s32.totalorder %s31, 1
      %p75 = por %p73, %p74
      %p77 = scmp.ne.s32.totalorder %s60, %s76
      %p78 = scmp.eq.s32.totalorder %s31, 0
      %p79 = por %p77, %p78
      %s80 = ssub.s32 %s32, %s51
      %s81 = ssub.s32 %s33, %s47
      %s82 = sor.u32 %s80, %s81
      %p83 = scmp.eq.s32.totalorder %s82, 0
      %s85 = sadd.s32 %s84, 1
      %s86 = scalar_select %p83, %s84, %s85
      %p89 = pneg %p83
      %p90 = scmp.eq.s32.totalorder %s25, 1
      %p91 = por %p89, %p90
      %p92 = scmp.ne.s32.totalorder %s84, %s87
      %p93 = scmp.eq.s32.totalorder %s25, 0
      %p94 = por %p92, %p93
      %p95 = scmp.ne.s32.totalorder %s84, %s87
      %p96 = scmp.eq.s32.totalorder %s30, 1
      %p97 = por %p95, %p96
      %p98 = scmp.ne.s32.totalorder %s87, %s88
      %p99 = scmp.eq.s32.totalorder %s30, 0
      %p100 = por %p98, %p99
      %p101 = scmp.ne.s32.totalorder %s87, %s88
      %p102 = scmp.eq.s32.totalorder %s31, 1
      %p103 = por %p101, %p102
      %p105 = scmp.ne.s32.totalorder %s88, %s104
      %p106 = scmp.eq.s32.totalorder %s31, 0
      %p107 = por %p105, %p106
      %s108 = ssub.s32 %s32, %s51
      %s109 = ssub.s32 %s34, %s43
      %s110 = sor.u32 %s108, %s109
      %p111 = scmp.eq.s32.totalorder %s110, 0
      %s113 = sadd.s32 %s112, 1
      %s114 = scalar_select %p111, %s112, %s113
      %p117 = pneg %p111
      %p118 = scmp.eq.s32.totalorder %s25, 1
      %p119 = por %p117, %p118
      %p120 = scmp.ne.s32.totalorder %s112, %s115
      %p121 = scmp.eq.s32.totalorder %s25, 0
      %p122 = por %p120, %p121
      %p123 = scmp.ne.s32.totalorder %s112, %s115
      %p124 = scmp.eq.s32.totalorder %s30, 1
      %p125 = por %p123, %p124
      %p126 = scmp.ne.s32.totalorder %s115, %s116
      %p127 = scmp.eq.s32.totalorder %s30, 0
      %p128 = por %p126, %p127
      %p129 = scmp.ne.s32.totalorder %s115, %s116
      %p130 = scmp.eq.s32.totalorder %s31, 1
      %p131 = por %p129, %p130
      %p133 = scmp.ne.s32.totalorder %s116, %s132
      %p134 = scmp.eq.s32.totalorder %s31, 0
      %p135 = por %p133, %p134
      %s136 = ssub.s32 %s32, %s51
      %s137 = ssub.s32 %s34, %s43
      %s138 = sor.u32 %s136, %s137
      %p139 = scmp.eq.s32.totalorder %s138, 0
      %s141 = sadd.s32 %s140, 1
      %s142 = scalar_select %p139, %s140, %s141
      %p145 = pneg %p139
      %p146 = scmp.eq.s32.totalorder %s25, 1
      %p147 = por %p145, %p146
      %p148 = scmp.ne.s32.totalorder %s140, %s143
      %p149 = scmp.eq.s32.totalorder %s25, 0
      %p150 = por %p148, %p149
      %p151 = scmp.ne.s32.totalorder %s140, %s143
      %p152 = scmp.eq.s32.totalorder %s30, 1
      %p153 = por %p151, %p152
      %p154 = scmp.ne.s32.totalorder %s143, %s144
      %p155 = scmp.eq.s32.totalorder %s30, 0
      %p156 = por %p154, %p155
      %p157 = scmp.ne.s32.totalorder %s143, %s144
      %p158 = scmp.eq.s32.totalorder %s31, 1
      %p159 = por %p157, %p158
      %p161 = scmp.ne.s32.totalorder %s144, %s160
      %p162 = scmp.eq.s32.totalorder %s31, 0
      %p163 = por %p161, %p162
      %s165 = sadd.s32 %s164, 1
      %p168 = scmp.eq.s32.totalorder %s25, 1
      %p169 = scmp.ne.s32.totalorder %s164, %s166
      %p170 = scmp.eq.s32.totalorder %s25, 0
      %p171 = por %p169, %p170
      %p172 = scmp.ne.s32.totalorder %s164, %s166
      %p173 = scmp.eq.s32.totalorder %s30, 1
      %p174 = por %p172, %p173
      %p175 = scmp.ne.s32.totalorder %s166, %s167
      %p176 = scmp.eq.s32.totalorder %s30, 0
      %p177 = por %p175, %p176
      %p178 = scmp.ne.s32.totalorder %s166, %s167
      %p179 = scmp.eq.s32.totalorder %s31, 1
      %p180 = por %p178, %p179
      %p182 = scmp.ne.s32.totalorder %s167, %s181
      %p183 = scmp.eq.s32.totalorder %s31, 0
      %p184 = por %p182, %p183
      %s186 = sadd.s32 %s185, 1
      %p189 = scmp.eq.s32.totalorder %s25, 1
      %p190 = scmp.ne.s32.totalorder %s185, %s187
      %p191 = scmp.eq.s32.totalorder %s25, 0
      %p192 = por %p190, %p191
      %p193 = scmp.ne.s32.totalorder %s185, %s187
      %p194 = scmp.eq.s32.totalorder %s30, 1
      %p195 = por %p193, %p194
      %p196 = scmp.ne.s32.totalorder %s187, %s188
      %p197 = scmp.eq.s32.totalorder %s30, 0
      %p198 = por %p196, %p197
      %p199 = scmp.ne.s32.totalorder %s187, %s188
      %p200 = scmp.eq.s32.totalorder %s31, 1
      %p201 = por %p199, %p200
      %p203 = scmp.ne.s32.totalorder %s188, %s202
      %p204 = scmp.eq.s32.totalorder %s31, 0
      %p205 = por %p203, %p204
      %s207 = sadd.s32 %s206, 1
      %p210 = scmp.eq.s32.totalorder %s25, 1
      %p211 = scmp.ne.s32.totalorder %s206, %s208
      %p212 = scmp.eq.s32.totalorder %s25, 0
      %p213 = por %p211, %p212
      %p214 = scmp.ne.s32.totalorder %s206, %s208
      %p215 = scmp.eq.s32.totalorder %s30, 1
      %p216 = por %p214, %p215
      %p217 = scmp.ne.s32.totalorder %s208, %s209
      %p218 = scmp.eq.s32.totalorder %s30, 0
      %p219 = por %p217, %p218
      %p220 = scmp.ne.s32.totalorder %s208, %s209
      %p221 = scmp.eq.s32.totalorder %s31, 1
      %p222 = por %p220, %p221
      %p224 = scmp.ne.s32.totalorder %s209, %s223
      %p225 = scmp.eq.s32.totalorder %s31, 0
      %p226 = por %p224, %p225
      %s228 = sadd.s32 %s227, 1
      %p231 = scmp.eq.s32.totalorder %s25, 1
      %p232 = scmp.ne.s32.totalorder %s227, %s229
      %p233 = scmp.eq.s32.totalorder %s25, 0
      %p234 = por %p232, %p233
      %p235 = scmp.ne.s32.totalorder %s227, %s229
      %p236 = scmp.eq.s32.totalorder %s30, 1
      %p237 = por %p235, %p236
      %p238 = scmp.ne.s32.totalorder %s229, %s230
      %p239 = scmp.eq.s32.totalorder %s30, 0
      %p240 = por %p238, %p239
      %p241 = scmp.ne.s32.totalorder %s229, %s230
      %p242 = scmp.eq.s32.totalorder %s31, 1
      %p243 = por %p241, %p242
      %p245 = scmp.ne.s32.totalorder %s230, %s244
      %p246 = scmp.eq.s32.totalorder %s31, 0
      %p247 = por %p245, %p246
      %s249 = sadd.s32 %s248, 1
      %p252 = scmp.eq.s32.totalorder %s25, 1
      %p253 = scmp.ne.s32.totalorder %s248, %s250
      %p254 = scmp.eq.s32.totalorder %s25, 0
      %p255 = por %p253, %p254
      %p256 = scmp.ne.s32.totalorder %s248, %s250
      %p257 = scmp.eq.s32.totalorder %s30, 1
      %p258 = por %p256, %p257
      %p259 = scmp.ne.s32.totalorder %s250, %s251
      %p260 = scmp.eq.s32.totalorder %s30, 0
      %p261 = por %p259, %p260
      %p262 = scmp.ne.s32.totalorder %s250, %s251
      %p263 = scmp.eq.s32.totalorder %s31, 1
      %p264 = por %p262, %p263
      %p266 = scmp.ne.s32.totalorder %s251, %s265
      %p267 = scmp.eq.s32.totalorder %s31, 0
      %p268 = por %p266, %p267
      %s270 = sadd.s32 %s269, 1
      %p273 = scmp.eq.s32.totalorder %s25, 1
      %p274 = scmp.ne.s32.totalorder %s269, %s271
      %p275 = scmp.eq.s32.totalorder %s25, 0
      %p276 = por %p274, %p275
      %p277 = scmp.ne.s32.totalorder %s269, %s271
      %p278 = scmp.eq.s32.totalorder %s30, 1
      %p279 = por %p277, %p278
      %p280 = scmp.ne.s32.totalorder %s271, %s272
      %p281 = scmp.eq.s32.totalorder %s30, 0
      %p282 = por %p280, %p281
      %p283 = scmp.ne.s32.totalorder %s271, %s272
      %p284 = scmp.eq.s32.totalorder %s31, 1
      %p285 = por %p283, %p284
      %p287 = scmp.ne.s32.totalorder %s272, %s286
      %p288 = scmp.eq.s32.totalorder %s31, 0
      %p289 = por %p287, %p288
      %s291 = sadd.s32 %s290, 1
      %p294 = scmp.eq.s32.totalorder %s25, 1
      %p295 = scmp.ne.s32.totalorder %s290, %s292
      %p296 = scmp.eq.s32.totalorder %s25, 0
      %p297 = por %p295, %p296
      %p298 = scmp.ne.s32.totalorder %s290, %s292
      %p299 = scmp.eq.s32.totalorder %s30, 1
      %p300 = por %p298, %p299
      %p301 = scmp.ne.s32.totalorder %s292, %s293
      %p302 = scmp.eq.s32.totalorder %s30, 0
      %p303 = por %p301, %p302
      %p304 = scmp.ne.s32.totalorder %s292, %s293
      %p305 = scmp.eq.s32.totalorder %s31, 1
      %p306 = por %p304, %p305
      %p308 = scmp.ne.s32.totalorder %s293, %s307
      %p309 = scmp.eq.s32.totalorder %s31, 0
      %p310 = por %p308, %p309
      %s312 = sadd.s32 %s311, 1
      %p315 = scmp.eq.s32.totalorder %s25, 1
      %p316 = scmp.ne.s32.totalorder %s311, %s313
      %p317 = scmp.eq.s32.totalorder %s25, 0
      %p318 = por %p316, %p317
      %p319 = scmp.ne.s32.totalorder %s311, %s313
      %p320 = scmp.eq.s32.totalorder %s30, 1
      %p321 = por %p319, %p320
      %p322 = scmp.ne.s32.totalorder %s313, %s314
      %p323 = scmp.eq.s32.totalorder %s30, 0
      %p324 = por %p322, %p323
      %p325 = scmp.ne.s32.totalorder %s313, %s314
      %p326 = scmp.eq.s32.totalorder %s31, 1
      %p327 = por %p325, %p326
      %p329 = scmp.ne.s32.totalorder %s314, %s328
      %p330 = scmp.eq.s32.totalorder %s31, 0
      %p331 = por %p329, %p330
      %s333 = sadd.s32 %s332, 1
      %p336 = scmp.eq.s32.totalorder %s25, 1
      %p337 = scmp.ne.s32.totalorder %s332, %s334
      %p338 = scmp.eq.s32.totalorder %s25, 0
      %p339 = por %p337, %p338
      %p340 = scmp.ne.s32.totalorder %s332, %s334
      %p341 = scmp.eq.s32.totalorder %s30, 1
      %p342 = por %p340, %p341
      %p343 = scmp.ne.s32.totalorder %s334, %s335
      %p344 = scmp.eq.s32.totalorder %s30, 0
      %p345 = por %p343, %p344
      %p346 = scmp.ne.s32.totalorder %s334, %s335
      %p347 = scmp.eq.s32.totalorder %s31, 1
      %p348 = por %p346, %p347
      %p350 = scmp.ne.s32.totalorder %s335, %s349
      %p351 = scmp.eq.s32.totalorder %s31, 0
      %p352 = por %p350, %p351
      %s354 = sadd.s32 %s353, 1
      %p357 = scmp.eq.s32.totalorder %s25, 1
      %p358 = scmp.ne.s32.totalorder %s353, %s355
      %p359 = scmp.eq.s32.totalorder %s25, 0
      %p360 = por %p358, %p359
      %p361 = scmp.ne.s32.totalorder %s353, %s355
      %p362 = scmp.eq.s32.totalorder %s30, 1
      %p363 = por %p361, %p362
      %p364 = scmp.ne.s32.totalorder %s355, %s356
      %p365 = scmp.eq.s32.totalorder %s30, 0
      %p366 = por %p364, %p365
      %p367 = scmp.ne.s32.totalorder %s355, %s356
      %p368 = scmp.eq.s32.totalorder %s31, 1
      %p369 = por %p367, %p368
      %p371 = scmp.ne.s32.totalorder %s356, %s370
      %p372 = scmp.eq.s32.totalorder %s31, 0
      %p373 = por %p371, %p372
      %s375 = sadd.s32 %s374, 1
      %p378 = scmp.eq.s32.totalorder %s25, 1
      %p379 = scmp.ne.s32.totalorder %s374, %s376
      %p380 = scmp.eq.s32.totalorder %s25, 0
      %p381 = por %p379, %p380
      %p382 = scmp.ne.s32.totalorder %s374, %s376
      %p383 = scmp.eq.s32.totalorder %s30, 1
      %p384 = por %p382, %p383
      %p385 = scmp.ne.s32.totalorder %s376, %s377
      %p386 = scmp.eq.s32.totalorder %s30, 0
      %p387 = por %p385, %p386
      %p388 = scmp.ne.s32.totalorder %s376, %s377
      %p389 = scmp.eq.s32.totalorder %s31, 1
      %p390 = por %p388, %p389
      %p392 = scmp.ne.s32.totalorder %s377, %s391
      %p393 = scmp.eq.s32.totalorder %s31, 0
      %p394 = por %p392, %p393
      %s396 = sadd.s32 %s395, 1
      %p399 = scmp.eq.s32.totalorder %s25, 1
      %p400 = scmp.ne.s32.totalorder %s395, %s397
      %p401 = scmp.eq.s32.totalorder %s25, 0
      %p402 = por %p400, %p401
      %p403 = scmp.ne.s32.totalorder %s395, %s397
      %p404 = scmp.eq.s32.totalorder %s30, 1
      %p405 = por %p403, %p404
      %p406 = scmp.ne.s32.totalorder %s397, %s398
      %p407 = scmp.eq.s32.totalorder %s30, 0
      %p408 = por %p406, %p407
      %p409 = scmp.ne.s32.totalorder %s397, %s398
      %p410 = scmp.eq.s32.totalorder %s31, 1
      %p411 = por %p409, %p410
      %p413 = scmp.ne.s32.totalorder %s398, %s412
      %p414 = scmp.eq.s32.totalorder %s31, 0
      %p415 = por %p413, %p414
      %s416 = ssub.s32 %s32, %s51
      %s417 = ssub.s32 %s33, %s47
      %s418 = sor.u32 %s416, %s417
      %p419 = scmp.eq.s32.totalorder %s418, 0
      %s421 = sadd.s32 %s420, 1
      %s422 = scalar_select %p419, %s420, %s421
      %p425 = pneg %p419
      %p426 = scmp.eq.s32.totalorder %s25, 1
      %p427 = por %p425, %p426
      %p428 = scmp.ne.s32.totalorder %s420, %s423
      %p429 = scmp.eq.s32.totalorder %s25, 0
      %p430 = por %p428, %p429
      %p431 = scmp.ne.s32.totalorder %s420, %s423
      %p432 = scmp.eq.s32.totalorder %s30, 1
      %p433 = por %p431, %p432
      %p434 = scmp.ne.s32.totalorder %s423, %s424
      %p435 = scmp.eq.s32.totalorder %s30, 0
      %p436 = por %p434, %p435
      %p437 = scmp.ne.s32.totalorder %s423, %s424
      %p438 = scmp.eq.s32.totalorder %s31, 1
      %p439 = por %p437, %p438
      %p441 = scmp.ne.s32.totalorder %s424, %s440
      %p442 = scmp.eq.s32.totalorder %s31, 0
      %p443 = por %p441, %p442
      %p444 = scmp.le.s32.totalorder 1, %s25
      %p445 = scmp.lt.s32.totalorder %s25, 3
      %p446 = pnand %p444, %p445
      %p447 = pneg %p446
      // Predicated region
      $region9: #{tpu_custom_call.1} parent=5 // pred_check
        _
      $region10: #{tpu_custom_call.1} parent=5 // pred_check_branch
        %449 = sbr.rel (%p446) target = $region12
      $region11: #{tpu_custom_call.1} parent=5 // pred_region
        %s450 = ssub.s32 %s25, 1
        // Predicated region
        $region13: #{tpu_custom_call.1} parent=11 // pred_check
          %p451 = pneg %p177
        $region14: #{tpu_custom_call.1} parent=11 // pred_check_branch
          %453 = sbr.rel (%p451) target = $region16
        $region15: #{tpu_custom_call.1} parent=11 // pred_region
          _
        $region16: #{tpu_custom_call.1} parent=11 // pred_fallthru
          _
        // Predicated region
        $region17: #{tpu_custom_call.1} parent=11 // pred_check
          %p454 = pneg %p198
        $region18: #{tpu_custom_call.1} parent=11 // pred_check_branch
          %456 = sbr.rel (%p454) target = $region20
        $region19: #{tpu_custom_call.1} parent=11 // pred_region
          _
        $region20: #{tpu_custom_call.1} parent=11 // pred_fallthru
          _
        // Predicated region
        $region21: #{tpu_custom_call.1} parent=11 // pred_check
          %p457 = pneg %p219
        $region22: #{tpu_custom_call.1} parent=11 // pred_check_branch
          %459 = sbr.rel (%p457) target = $region24
        $region23: #{tpu_custom_call.1} parent=11 // pred_region
          _
        $region24: #{tpu_custom_call.1} parent=11 // pred_fallthru
          _
        // Predicated region
        $region25: #{tpu_custom_call.1} parent=11 // pred_check
          %p460 = pneg %p240
        $region26: #{tpu_custom_call.1} parent=11 // pred_check_branch
          %462 = sbr.rel (%p460) target = $region28
        $region27: #{tpu_custom_call.1} parent=11 // pred_region
          _
        $region28: #{tpu_custom_call.1} parent=11 // pred_fallthru
          _
        // Predicated region
        $region29: #{tpu_custom_call.1} parent=11 // pred_check
          %p463 = pneg %p261
        $region30: #{tpu_custom_call.1} parent=11 // pred_check_branch
          %465 = sbr.rel (%p463) target = $region32
        $region31: #{tpu_custom_call.1} parent=11 // pred_region
          _
        $region32: #{tpu_custom_call.1} parent=11 // pred_fallthru
          _
        // Predicated region
        $region33: #{tpu_custom_call.1} parent=11 // pred_check
          %p466 = pneg %p282
        $region34: #{tpu_custom_call.1} parent=11 // pred_check_branch
          %468 = sbr.rel (%p466) target = $region36
        $region35: #{tpu_custom_call.1} parent=11 // pred_region
          _
        $region36: #{tpu_custom_call.1} parent=11 // pred_fallthru
          _
        // Predicated region
        $region37: #{tpu_custom_call.1} parent=11 // pred_check
          %p469 = pneg %p303
        $region38: #{tpu_custom_call.1} parent=11 // pred_check_branch
          %471 = sbr.rel (%p469) target = $region40
        $region39: #{tpu_custom_call.1} parent=11 // pred_region
          _
        $region40: #{tpu_custom_call.1} parent=11 // pred_fallthru
          _
        // Predicated region
        $region41: #{tpu_custom_call.1} parent=11 // pred_check
          %p472 = pneg %p324
        $region42: #{tpu_custom_call.1} parent=11 // pred_check_branch
          %474 = sbr.rel (%p472) target = $region44
        $region43: #{tpu_custom_call.1} parent=11 // pred_region
          _
        $region44: #{tpu_custom_call.1} parent=11 // pred_fallthru
          _
        // Predicated region
        $region45: #{tpu_custom_call.1} parent=11 // pred_check
          %p475 = pneg %p345
        $region46: #{tpu_custom_call.1} parent=11 // pred_check_branch
          %477 = sbr.rel (%p475) target = $region48
        $region47: #{tpu_custom_call.1} parent=11 // pred_region
          _
        $region48: #{tpu_custom_call.1} parent=11 // pred_fallthru
          _
        // Predicated region
        $region49: #{tpu_custom_call.1} parent=11 // pred_check
          %p478 = pneg %p366
        $region50: #{tpu_custom_call.1} parent=11 // pred_check_branch
          %480 = sbr.rel (%p478) target = $region52
        $region51: #{tpu_custom_call.1} parent=11 // pred_region
          _
        $region52: #{tpu_custom_call.1} parent=11 // pred_fallthru
          _
        // Predicated region
        $region53: #{tpu_custom_call.1} parent=11 // pred_check
          %p481 = pneg %p387
        $region54: #{tpu_custom_call.1} parent=11 // pred_check_branch
          %483 = sbr.rel (%p481) target = $region56
        $region55: #{tpu_custom_call.1} parent=11 // pred_region
          _
        $region56: #{tpu_custom_call.1} parent=11 // pred_fallthru
          _
        // Predicated region
        $region57: #{tpu_custom_call.1} parent=11 // pred_check
          %p484 = pneg %p408
        $region58: #{tpu_custom_call.1} parent=11 // pred_check_branch
          %486 = sbr.rel (%p484) target = $region60
        $region59: #{tpu_custom_call.1} parent=11 // pred_region
          _
        $region60: #{tpu_custom_call.1} parent=11 // pred_fallthru
          _
      $region12: #{tpu_custom_call.1} parent=5 // pred_fallthru
        _
      %p487 = scmp.lt.s32.totalorder %s25, 2
      // Predicated region
      $region61: #{tpu_custom_call.1} parent=5 // pred_check
        %p488 = pneg %p487
      $region62: #{tpu_custom_call.1} parent=5 // pred_check_branch
        %490 = sbr.rel (%p488) target = $region64
      $region63: #{tpu_custom_call.1} parent=5 // pred_region
        // Predicated region
        $region65: #{tpu_custom_call.1} parent=63 // pred_check
          %p491 = pneg %p66
        $region66: #{tpu_custom_call.1} parent=63 // pred_check_branch
          %493 = sbr.rel (%p491) target = $region68
        $region67: #{tpu_custom_call.1} parent=63 // pred_region
          %p494 = scmp.lt.s32.totalorder %s32, 1
          %s495 = scalar_select %p494, %s32, 1
          %p496 = scmp.lt.s32.totalorder %s33, 0
          %s497 = scalar_select %p496, %s33, 0
          %s498 = sadd.s32 %s497, %s495
          %s499 = smul.addr %s498, 8
          %s500 = scalar_lea.vmem %s0, %s499
        $region68: #{tpu_custom_call.1} parent=63 // pred_fallthru
          _
        // Predicated region
        $region69: #{tpu_custom_call.1} parent=63 // pred_check
          %p501 = pneg %p94
        $region70: #{tpu_custom_call.1} parent=63 // pred_check_branch
          %503 = sbr.rel (%p501) target = $region72
        $region71: #{tpu_custom_call.1} parent=63 // pred_region
          %p504 = scmp.lt.s32.totalorder %s32, 1
          %s505 = scalar_select %p504, %s32, 1
          %p506 = scmp.lt.s32.totalorder %s33, 0
          %s507 = scalar_select %p506, %s33, 0
          %s508 = sadd.s32 %s507, %s505
          %s509 = smul.addr %s508, 8
          %s510 = scalar_lea.vmem %s1, %s509
        $region72: #{tpu_custom_call.1} parent=63 // pred_fallthru
          _
        // Predicated region
        $region73: #{tpu_custom_call.1} parent=63 // pred_check
          %p511 = pneg %p122
        $region74: #{tpu_custom_call.1} parent=63 // pred_check_branch
          %513 = sbr.rel (%p511) target = $region76
        $region75: #{tpu_custom_call.1} parent=63 // pred_region
          %p514 = scmp.lt.s32.totalorder %s32, 1
          %s515 = scalar_select %p514, %s32, 1
          %p516 = scmp.lt.s32.totalorder %s34, 0
          %s517 = scalar_select %p516, %s34, 0
          %s518 = sadd.s32 %s517, %s515
          %s519 = smul.addr %s518, 8
          %s520 = scalar_lea.vmem %s2, %s519
        $region76: #{tpu_custom_call.1} parent=63 // pred_fallthru
          _
        // Predicated region
        $region77: #{tpu_custom_call.1} parent=63 // pred_check
          %p521 = pneg %p150
        $region78: #{tpu_custom_call.1} parent=63 // pred_check_branch
          %523 = sbr.rel (%p521) target = $region80
        $region79: #{tpu_custom_call.1} parent=63 // pred_region
          %p524 = scmp.lt.s32.totalorder %s32, 1
          %s525 = scalar_select %p524, %s32, 1
          %p526 = scmp.lt.s32.totalorder %s34, 0
          %s527 = scalar_select %p526, %s34, 0
          %s528 = sadd.s32 %s527, %s525
          %s529 = smul.addr %s528, 8
          %s530 = scalar_lea.vmem %s3, %s529
        $region80: #{tpu_custom_call.1} parent=63 // pred_fallthru
          _
      $region64: #{tpu_custom_call.1} parent=5 // pred_fallthru
        _
      %p531 = scmp.le.s32.totalorder 1, %s25
      %p532 = scmp.lt.s32.totalorder %s25, 3
      %p533 = pnand %p531, %p532
      %p534 = pneg %p533
      // Predicated region
      $region81: #{tpu_custom_call.1} parent=5 // pred_check
        _
      $region82: #{tpu_custom_call.1} parent=5 // pred_check_branch
        %536 = sbr.rel (%p533) target = $region84
      $region83: #{tpu_custom_call.1} parent=5 // pred_region
        %s537 = ssub.s32 %s25, 1
        %p538 = scmp.lt.s32.totalorder %s35, 1
        %s539 = scalar_select %p538, %s35, 1
        %p540 = scmp.lt.s32.totalorder %s36, 0
        %s541 = scalar_select %p540, %s36, 0
        %s542 = sadd.s32 %s541, %s539
        %s543 = smul.addr %s542, 8
        %s544 = scalar_lea.vmem %s0, %s543
        %p545 = pneg %p72
        %p546 = pneg %p69
        %p547 = scmp.lt.s32.totalorder %s35, 1
        %s548 = scalar_select %p547, %s35, 1
        %p549 = scmp.lt.s32.totalorder %s36, 0
        %s550 = scalar_select %p549, %s36, 0
        %s551 = sadd.s32 %s550, %s548
        %s552 = smul.addr %s551, 8
        %s553 = scalar_lea.vmem %s1, %s552
        %p554 = pneg %p100
        %p555 = pneg %p97
        %p556 = scmp.lt.s32.totalorder %s35, 1
        %s557 = scalar_select %p556, %s35, 1
        %p558 = scmp.lt.s32.totalorder %s37, 0
        %s559 = scalar_select %p558, %s37, 0
        %s560 = sadd.s32 %s559, %s557
        %s561 = smul.addr %s560, 8
        %s562 = scalar_lea.vmem %s2, %s561
        %p563 = pneg %p128
        %p564 = pneg %p125
        %p565 = scmp.lt.s32.totalorder %s35, 1
        %s566 = scalar_select %p565, %s35, 1
        %p567 = scmp.lt.s32.totalorder %s37, 0
        %s568 = scalar_select %p567, %s37, 0
        %s569 = sadd.s32 %s568, %s566
        %s570 = smul.addr %s569, 8
        %s571 = scalar_lea.vmem %s3, %s570
        %p572 = pneg %p156
        %p573 = pneg %p153
        %p574 = pneg %p177
        %p575 = pneg %p174
        %p576 = pneg %p198
        %p577 = pneg %p195
        %p578 = pneg %p219
        %p579 = pneg %p216
        %p580 = pneg %p240
        %p581 = pneg %p237
        %p582 = pneg %p261
        %p583 = pneg %p258
        %p584 = pneg %p282
        %p585 = pneg %p279
        %p586 = pneg %p303
        %p587 = pneg %p300
        %p588 = pneg %p324
        %p589 = pneg %p321
        %p590 = pneg %p345
        %p591 = pneg %p342
        %p592 = pneg %p366
        %p593 = pneg %p363
        %p594 = pneg %p387
        %p595 = pneg %p384
        %p596 = pneg %p408
        %p597 = pneg %p405
        %p598 = pneg %p436
        %p599 = pneg %p433
        %s600 = sand.u32 %s423, 1
        %s601 = scalar_lea.sflag [#allocation8], %s600
        %s602 = sand.u32 %s423, 1
        %s603 = smul.addr %s602, 8
        %s604 = scalar_lea.vmem [#allocation7], %s603
        %p605 = scmp.lt.s32.totalorder %s35, 1
        %s606 = scalar_select %p605, %s35, 1
        %p607 = scmp.lt.s32.totalorder %s36, 0
        %s608 = scalar_select %p607, %s36, 0
        %s609 = sadd.s32 %s608, %s606
        %s610 = smul.addr %s609, 8
        %s611 = scalar_lea.vmem %s0, %s610
        %p612 = scmp.lt.s32.totalorder %s35, 1
        %s613 = scalar_select %p612, %s35, 1
        %p614 = scmp.lt.s32.totalorder %s36, 0
        %s615 = scalar_select %p614, %s36, 0
        %s616 = sadd.s32 %s615, %s613
        %s617 = smul.addr %s616, 8
        %s618 = scalar_lea.vmem %s1, %s617
        %p619 = scmp.lt.s32.totalorder %s35, 1
        %s620 = scalar_select %p619, %s35, 1
        %p621 = scmp.lt.s32.totalorder %s37, 0
        %s622 = scalar_select %p621, %s37, 0
        %s623 = sadd.s32 %s622, %s620
        %s624 = smul.addr %s623, 8
        %s625 = scalar_lea.vmem %s2, %s624
        %p626 = scmp.lt.s32.totalorder %s35, 1
        %s627 = scalar_select %p626, %s35, 1
        %p628 = scmp.lt.s32.totalorder %s37, 0
        %s629 = scalar_select %p628, %s37, 0
        %s630 = sadd.s32 %s629, %s627
        %s631 = smul.addr %s630, 8
        %s632 = scalar_lea.vmem %s3, %s631
        %v633 = vld [vmem:[%s4] sm:$0x1]
        %v634 = vld [vmem:[%s5] sm:$0x1]
        %p635 = scmp.eq.s32.totalorder %s37, 0
        // Predicated region
        $region85: #{tpu_custom_call.1} parent=83 // pred_check
          %p636 = pneg %p635
        $region86: #{tpu_custom_call.1} parent=83 // pred_check_branch
          %638 = sbr.rel (%p636) target = $region88
        $region87: #{tpu_custom_call.1} parent=83 // pred_region
          %v639 = vld [vmem:[%s611] sm:$0xff]
          %v640 = vld [vmem:[%s618] sm:$0xff]
          %642 = vset.pattern.permute.xlu0 0
          %643 = vperm.xlu0 %642, %v640
          %v644 = vpop.permute.xlu0 %643
          %v647 = vlaneseq
          %v648 = vshrl.u32 %v647, 7
          %v649 = vsub.s32 0, %v648
          %v650 = vrot.slane %v633, %v649
          %v652 = vmul.f32 %v644, %v650
          %v653 = vadd.f32 %v639, %v652
          %v655 = vlaneseq
          %v656 = vshrl.u32 %v655, 7
          %v657 = vsub.s32 0, %v656
          %v658 = vrot.slane %v634, %v657
          %v660 = vadd.f32 %v653, %v658
          %vm661 = vcmask 261120
          %662 = vst.msk [vmem:[#allocation3] sm:$0xff] %vm661, %v660
          %v663 = vld [vmem:[%s6] sm:$0xff]
          %v664 = vld [vmem:[%s6 + $0x8] sm:$0xff]
          %v665 = vld [vmem:[%s6 + $0x10] sm:$0xff]
          %v666 = vld [vmem:[%s6 + $0x18] sm:$0xff]
          %v667 = vld [vmem:[%s6 + $0x20] sm:$0xff]
          %v668 = vld [vmem:[%s6 + $0x28] sm:$0xff]
          %v669 = vld [vmem:[%s6 + $0x30] sm:$0xff]
          %v670 = vld [vmem:[%s6 + $0x38] sm:$0xff]
          %v671 = vld [vmem:[%s6 + $0x40] sm:$0xff]
          %v672 = vld [vmem:[%s6 + $0x48] sm:$0xff]
          %v673 = vld [vmem:[%s6 + $0x50] sm:$0xff]
          %v674 = vld [vmem:[%s6 + $0x58] sm:$0xff]
          %v675 = vld [vmem:[%s6 + $0x60] sm:$0xff]
          %v676 = vld [vmem:[%s6 + $0x68] sm:$0xff]
          %v677 = vld [vmem:[%s6 + $0x70] sm:$0xff]
          %v678 = vld [vmem:[%s6 + $0x78] sm:$0xff]
          %v679 = vld [vmem:[%s7] sm:$0x1]
          %v680 = vld [vmem:[%s7 + $0x1] sm:$0x1]
          %v681 = vld [vmem:[%s7 + $0x2] sm:$0x1]
          %v682 = vld [vmem:[%s7 + $0x3] sm:$0x1]
          %v687 = vlaneseq
          %v688 = vshrl.u32 %v687, 7
          %v689 = vsub.s32 0, %v688
          %v690 = vrot.slane %v679, %v689
          %v691 = vlaneseq
          %v692 = vshrl.u32 %v691, 7
          %v693 = vsub.s32 0, %v692
          %v694 = vrot.slane %v680, %v693
          %v695 = vlaneseq
          %v696 = vshrl.u32 %v695, 7
          %v697 = vsub.s32 0, %v696
          %v698 = vrot.slane %v681, %v697
          %v699 = vlaneseq
          %v700 = vshrl.u32 %v699, 7
          %v701 = vsub.s32 0, %v700
          %v702 = vrot.slane %v682, %v701
          %v708 = vsel %vm661, %v660, 0
          %710 = vmatprep.subr.mxu0 0.0
          %711 = vmatpush1.msra.mxu0 0.0
          %712 = vmatprep.subr.mxu0 0.0
          %713 = vmatpush1.msra.mxu0 0.0
          %714 = vmatprep.subr.mxu0 0.0
          %715 = vmatpush1.msra.mxu0 0.0
          %716 = vmatprep.subr.mxu0 0.0
          %717 = vmatpush1.msra.mxu0 0.0
          %718 = vmatprep.subr.mxu0 0.0
          %719 = vmatpush1.msra.mxu0 0.0
          %720 = vmatprep.subr.mxu0 0.0
          %721 = vmatpush1.msra.mxu0 0.0
          %722 = vmatprep.subr.mxu0 0.0
          %723 = vmatpush1.msra.mxu0 0.0
          %724 = vmatprep.subr.mxu0 0.0
          %725 = vmatpush1.msra.mxu0 0.0
          %726 = vmatprep.subr.mxu0 0.0
          %727 = vmatpush1.msra.mxu0 0.0
          %728 = vmatprep.subr.mxu0 0.0
          %729 = vmatpush1.msra.mxu0 0.0
          %730 = vmatprep.subr.mxu0 0.0
          %731 = vmatpush1.msra.mxu0 0.0
          %732 = vmatprep.subr.mxu0 0.0
          %733 = vmatpush1.msra.mxu0 0.0
          %734 = vmatprep.subr.mxu0 0.0
          %735 = vmatpush1.msra.mxu0 %v666
          %736 = vmatprep.subr.mxu0 0.0
          %737 = vmatpush1.msra.mxu0 %v665
          %738 = vmatprep.subr.mxu0 0.0
          %739 = vmatpush1.msra.mxu0 %v664
          %740 = vmatprep.subr.mxu0 0.0
          %741 = vmatpush1.msra.mxu0 %v663
          %742 = vmatprep.subr.mxu0 0.0
          %743 = vmatpush2.msra.mxu0 0.0
          %744 = vmatprep.subr.mxu0 0.0
          %745 = vmatpush2.msra.mxu0 0.0
          %746 = vmatprep.subr.mxu0 0.0
          %747 = vmatpush2.msra.mxu0 0.0
          %748 = vmatprep.subr.mxu0 0.0
          %749 = vmatpush2.msra.mxu0 0.0
          %750 = vmatprep.subr.mxu0 0.0
          %751 = vmatpush2.msra.mxu0 0.0
          %752 = vmatprep.subr.mxu0 0.0
          %753 = vmatpush2.msra.mxu0 0.0
          %754 = vmatprep.subr.mxu0 0.0
          %755 = vmatpush2.msra.mxu0 0.0
          %756 = vmatprep.subr.mxu0 0.0
          %757 = vmatpush2.msra.mxu0 0.0
          %758 = vmatprep.subr.mxu0 0.0
          %759 = vmatpush2.msra.mxu0 0.0
          %760 = vmatprep.subr.mxu0 0.0
          %761 = vmatpush2.msra.mxu0 0.0
          %762 = vmatprep.subr.mxu0 0.0
          %763 = vmatpush2.msra.mxu0 0.0
          %764 = vmatprep.subr.mxu0 0.0
          %765 = vmatpush2.msra.mxu0 0.0
          %766 = vmatprep.subr.mxu0 0.0
          %767 = vmatpush2.msra.mxu0 0.0
          %768 = vmatprep.subr.mxu0 0.0
          %769 = vmatpush2.msra.mxu0 0.0
          %770 = vmatprep.subr.mxu0 0.0
          %771 = vmatpush2.msra.mxu0 0.0
          %772 = vmatprep.subr.mxu0 0.0
          %773 = vmatpush2.msra.mxu0 0.0
          %774 = vmatprep.mubr.f32.mxu0 0.0
          %775 = vmatmul.mubr.f32.gmra.mxu0 %v708
          %v776 = vpop.f32.mrf.mxu0
          %v777 = vadd.f32 %v690, %v776
          %v778 = vpop.f32.mrf.mxu0
          %779 = vdwg.mxu0
          %780 = vmatprep.subr.mxu0 0.0
          %781 = vmatpush1.msra.mxu0 0.0
          %782 = vmatprep.subr.mxu0 0.0
          %783 = vmatpush1.msra.mxu0 0.0
          %784 = vmatprep.subr.mxu0 0.0
          %785 = vmatpush1.msra.mxu0 0.0
          %786 = vmatprep.subr.mxu0 0.0
          %787 = vmatpush1.msra.mxu0 0.0
          %788 = vmatprep.subr.mxu0 0.0
          %789 = vmatpush1.msra.mxu0 0.0
          %790 = vmatprep.subr.mxu0 0.0
          %791 = vmatpush1.msra.mxu0 0.0
          %792 = vmatprep.subr.mxu0 0.0
          %793 = vmatpush1.msra.mxu0 0.0
          %794 = vmatprep.subr.mxu0 0.0
          %795 = vmatpush1.msra.mxu0 0.0
          %796 = vmatprep.subr.mxu0 0.0
          %797 = vmatpush1.msra.mxu0 0.0
          %798 = vmatprep.subr.mxu0 0.0
          %799 = vmatpush1.msra.mxu0 0.0
          %800 = vmatprep.subr.mxu0 0.0
          %801 = vmatpush1.msra.mxu0 0.0
          %802 = vmatprep.subr.mxu0 0.0
          %803 = vmatpush1.msra.mxu0 0.0
          %804 = vmatprep.subr.mxu0 0.0
          %805 = vmatpush1.msra.mxu0 %v670
          %806 = vmatprep.subr.mxu0 0.0
          %807 = vmatpush1.msra.mxu0 %v669
          %808 = vmatprep.subr.mxu0 0.0
          %809 = vmatpush1.msra.mxu0 %v668
          %810 = vmatprep.subr.mxu0 0.0
          %811 = vmatpush1.msra.mxu0 %v667
          %812 = vmatprep.subr.mxu0 0.0
          %813 = vmatpush2.msra.mxu0 0.0
          %814 = vmatprep.subr.mxu0 0.0
          %815 = vmatpush2.msra.mxu0 0.0
          %816 = vmatprep.subr.mxu0 0.0
          %817 = vmatpush2.msra.mxu0 0.0
          %818 = vmatprep.subr.mxu0 0.0
          %819 = vmatpush2.msra.mxu0 0.0
          %820 = vmatprep.subr.mxu0 0.0
          %821 = vmatpush2.msra.mxu0 0.0
          %822 = vmatprep.subr.mxu0 0.0
          %823 = vmatpush2.msra.mxu0 0.0
          %824 = vmatprep.subr.mxu0 0.0
          %825 = vmatpush2.msra.mxu0 0.0
          %826 = vmatprep.subr.mxu0 0.0
          %827 = vmatpush2.msra.mxu0 0.0
          %828 = vmatprep.subr.mxu0 0.0
          %829 = vmatpush2.msra.mxu0 0.0
          %830 = vmatprep.subr.mxu0 0.0
          %831 = vmatpush2.msra.mxu0 0.0
          %832 = vmatprep.subr.mxu0 0.0
          %833 = vmatpush2.msra.mxu0 0.0
          %834 = vmatprep.subr.mxu0 0.0
          %835 = vmatpush2.msra.mxu0 0.0
          %836 = vmatprep.subr.mxu0 0.0
          %837 = vmatpush2.msra.mxu0 0.0
          %838 = vmatprep.subr.mxu0 0.0
          %839 = vmatpush2.msra.mxu0 0.0
          %840 = vmatprep.subr.mxu0 0.0
          %841 = vmatpush2.msra.mxu0 0.0
          %842 = vmatprep.subr.mxu0 0.0
          %843 = vmatpush2.msra.mxu0 0.0
          %844 = vmatprep.mubr.f32.mxu0 0.0
          %845 = vmatmul.mubr.f32.gmra.mxu0 %v708
          %v846 = vpop.f32.mrf.mxu0
          %v847 = vadd.f32 %v694, %v846
          %v848 = vpop.f32.mrf.mxu0
          %849 = vdwg.mxu0
          %850 = vmatprep.subr.mxu0 0.0
          %851 = vmatpush1.msra.mxu0 0.0
          %852 = vmatprep.subr.mxu0 0.0
          %853 = vmatpush1.msra.mxu0 0.0
          %854 = vmatprep.subr.mxu0 0.0
          %855 = vmatpush1.msra.mxu0 0.0
          %856 = vmatprep.subr.mxu0 0.0
          %857 = vmatpush1.msra.mxu0 0.0
          %858 = vmatprep.subr.mxu0 0.0
          %859 = vmatpush1.msra.mxu0 0.0
          %860 = vmatprep.subr.mxu0 0.0
          %861 = vmatpush1.msra.mxu0 0.0
          %862 = vmatprep.subr.mxu0 0.0
          %863 = vmatpush1.msra.mxu0 0.0
          %864 = vmatprep.subr.mxu0 0.0
          %865 = vmatpush1.msra.mxu0 0.0
          %866 = vmatprep.subr.mxu0 0.0
          %867 = vmatpush1.msra.mxu0 0.0
          %868 = vmatprep.subr.mxu0 0.0
          %869 = vmatpush1.msra.mxu0 0.0
          %870 = vmatprep.subr.mxu0 0.0
          %871 = vmatpush1.msra.mxu0 0.0
          %872 = vmatprep.subr.mxu0 0.0
          %873 = vmatpush1.msra.mxu0 0.0
          %874 = vmatprep.subr.mxu0 0.0
          %875 = vmatpush1.msra.mxu0 %v674
          %876 = vmatprep.subr.mxu0 0.0
          %877 = vmatpush1.msra.mxu0 %v673
          %878 = vmatprep.subr.mxu0 0.0
          %879 = vmatpush1.msra.mxu0 %v672
          %880 = vmatprep.subr.mxu0 0.0
          %881 = vmatpush1.msra.mxu0 %v671
          %882 = vmatprep.subr.mxu0 0.0
          %883 = vmatpush2.msra.mxu0 0.0
          %884 = vmatprep.subr.mxu0 0.0
          %885 = vmatpush2.msra.mxu0 0.0
          %886 = vmatprep.subr.mxu0 0.0
          %887 = vmatpush2.msra.mxu0 0.0
          %888 = vmatprep.subr.mxu0 0.0
          %889 = vmatpush2.msra.mxu0 0.0
          %890 = vmatprep.subr.mxu0 0.0
          %891 = vmatpush2.msra.mxu0 0.0
          %892 = vmatprep.subr.mxu0 0.0
          %893 = vmatpush2.msra.mxu0 0.0
          %894 = vmatprep.subr.mxu0 0.0
          %895 = vmatpush2.msra.mxu0 0.0
          %896 = vmatprep.subr.mxu0 0.0
          %897 = vmatpush2.msra.mxu0 0.0
          %898 = vmatprep.subr.mxu0 0.0
          %899 = vmatpush2.msra.mxu0 0.0
          %900 = vmatprep.subr.mxu0 0.0
          %901 = vmatpush2.msra.mxu0 0.0
          %902 = vmatprep.subr.mxu0 0.0
          %903 = vmatpush2.msra.mxu0 0.0
          %904 = vmatprep.subr.mxu0 0.0
          %905 = vmatpush2.msra.mxu0 0.0
          %906 = vmatprep.subr.mxu0 0.0
          %907 = vmatpush2.msra.mxu0 0.0
          %908 = vmatprep.subr.mxu0 0.0
          %909 = vmatpush2.msra.mxu0 0.0
          %910 = vmatprep.subr.mxu0 0.0
          %911 = vmatpush2.msra.mxu0 0.0
          %912 = vmatprep.subr.mxu0 0.0
          %913 = vmatpush2.msra.mxu0 0.0
          %914 = vmatprep.mubr.f32.mxu0 0.0
          %915 = vmatmul.mubr.f32.gmra.mxu0 %v708
          %v916 = vpop.f32.mrf.mxu0
          %v917 = vadd.f32 %v698, %v916
          %v918 = vpop.f32.mrf.mxu0
          %919 = vdwg.mxu0
          %920 = vmatprep.subr.mxu0 0.0
          %921 = vmatpush1.msra.mxu0 0.0
          %922 = vmatprep.subr.mxu0 0.0
          %923 = vmatpush1.msra.mxu0 0.0
          %924 = vmatprep.subr.mxu0 0.0
          %925 = vmatpush1.msra.mxu0 0.0
          %926 = vmatprep.subr.mxu0 0.0
          %927 = vmatpush1.msra.mxu0 0.0
          %928 = vmatprep.subr.mxu0 0.0
          %929 = vmatpush1.msra.mxu0 0.0
          %930 = vmatprep.subr.mxu0 0.0
          %931 = vmatpush1.msra.mxu0 0.0
          %932 = vmatprep.subr.mxu0 0.0
          %933 = vmatpush1.msra.mxu0 0.0
          %934 = vmatprep.subr.mxu0 0.0
          %935 = vmatpush1.msra.mxu0 0.0
          %936 = vmatprep.subr.mxu0 0.0
          %937 = vmatpush1.msra.mxu0 0.0
          %938 = vmatprep.subr.mxu0 0.0
          %939 = vmatpush1.msra.mxu0 0.0
          %940 = vmatprep.subr.mxu0 0.0
          %941 = vmatpush1.msra.mxu0 0.0
          %942 = vmatprep.subr.mxu0 0.0
          %943 = vmatpush1.msra.mxu0 0.0
          %944 = vmatprep.subr.mxu0 0.0
          %945 = vmatpush1.msra.mxu0 %v678
          %946 = vmatprep.subr.mxu0 0.0
          %947 = vmatpush1.msra.mxu0 %v677
          %948 = vmatprep.subr.mxu0 0.0
          %949 = vmatpush1.msra.mxu0 %v676
          %950 = vmatprep.subr.mxu0 0.0
          %951 = vmatpush1.msra.mxu0 %v675
          %952 = vmatprep.subr.mxu0 0.0
          %953 = vmatpush2.msra.mxu0 0.0
          %954 = vmatprep.subr.mxu0 0.0
          %955 = vmatpush2.msra.mxu0 0.0
          %956 = vmatprep.subr.mxu0 0.0
          %957 = vmatpush2.msra.mxu0 0.0
          %958 = vmatprep.subr.mxu0 0.0
          %959 = vmatpush2.msra.mxu0 0.0
          %960 = vmatprep.subr.mxu0 0.0
          %961 = vmatpush2.msra.mxu0 0.0
          %962 = vmatprep.subr.mxu0 0.0
          %963 = vmatpush2.msra.mxu0 0.0
          %964 = vmatprep.subr.mxu0 0.0
          %965 = vmatpush2.msra.mxu0 0.0
          %966 = vmatprep.subr.mxu0 0.0
          %967 = vmatpush2.msra.mxu0 0.0
          %968 = vmatprep.subr.mxu0 0.0
          %969 = vmatpush2.msra.mxu0 0.0
          %970 = vmatprep.subr.mxu0 0.0
          %971 = vmatpush2.msra.mxu0 0.0
          %972 = vmatprep.subr.mxu0 0.0
          %973 = vmatpush2.msra.mxu0 0.0
          %974 = vmatprep.subr.mxu0 0.0
          %975 = vmatpush2.msra.mxu0 0.0
          %976 = vmatprep.subr.mxu0 0.0
          %977 = vmatpush2.msra.mxu0 0.0
          %978 = vmatprep.subr.mxu0 0.0
          %979 = vmatpush2.msra.mxu0 0.0
          %980 = vmatprep.subr.mxu0 0.0
          %981 = vmatpush2.msra.mxu0 0.0
          %982 = vmatprep.subr.mxu0 0.0
          %983 = vmatpush2.msra.mxu0 0.0
          %984 = vmatprep.mubr.f32.mxu0 0.0
          %985 = vmatmul.mubr.f32.gmra.mxu0 %v708
          %v986 = vpop.f32.mrf.mxu0
          %v987 = vadd.f32 %v702, %v986
          %v988 = vpop.f32.mrf.mxu0
          %989 = vdwg.mxu0
          %v990 = vmul.f32 %v777, 0.35355338
          %v991 = vmul.f32 %v847, 0.35355338
          %v992 = vmul.f32 %v917, 0.35355338
          %v993 = vmul.f32 %v987, 0.35355338
          %vm994 = vcmask 64512
          %995 = vst.msk [vmem:[#allocation2] sm:$0xff] %vm994, %v990
          %996 = vst.msk [vmem:[#allocation2 + $0x8] sm:$0xff] %vm994, %v991
          %997 = vst.msk [vmem:[#allocation2 + $0x10] sm:$0xff] %vm994, %v992
          %998 = vst.msk [vmem:[#allocation2 + $0x18] sm:$0xff] %vm994, %v993
          %vm999 = vcmask 7168
          %1000 = vst.msk [vmem:[#allocation4] sm:$0xff] %vm999, -inf
          %1001 = vst.msk [vmem:[#allocation4 + $0x8] sm:$0xff] %vm999, -inf
          %1002 = vst.msk [vmem:[#allocation4 + $0x10] sm:$0xff] %vm999, -inf
          %1003 = vst.msk [vmem:[#allocation4 + $0x18] sm:$0xff] %vm999, -inf
          %1004 = vst.msk [vmem:[#allocation5] sm:$0xff] %vm999, 0.0
          %1005 = vst.msk [vmem:[#allocation5 + $0x8] sm:$0xff] %vm999, 0.0
          %1006 = vst.msk [vmem:[#allocation5 + $0x10] sm:$0xff] %vm999, 0.0
          %1007 = vst.msk [vmem:[#allocation5 + $0x18] sm:$0xff] %vm999, 0.0
          %1008 = vst.msk [vmem:[#allocation6] sm:$0xff] %vm994, 0.0
          %1009 = vst.msk [vmem:[#allocation6 + $0x8] sm:$0xff] %vm994, 0.0
          %1010 = vst.msk [vmem:[#allocation6 + $0x10] sm:$0xff] %vm994, 0.0
          %1011 = vst.msk [vmem:[#allocation6 + $0x18] sm:$0xff] %vm994, 0.0
        $region88: #{tpu_custom_call.1} parent=83 // pred_fallthru
          _
        %v1012 = vld [vmem:[%s625] sm:$0xff]
        %v1013 = vld [vmem:[%s632] sm:$0xff]
        %1015 = vset.pattern.permute.xlu0 0
        %1016 = vperm.xlu0 %1015, %v1013
        %v1017 = vpop.permute.xlu0 %1016
        %v1020 = vlaneseq
        %v1021 = vshrl.u32 %v1020, 7
        %v1022 = vsub.s32 0, %v1021
        %v1023 = vrot.slane %v633, %v1022
        %v1025 = vmul.f32 %v1017, %v1023
        %v1026 = vadd.f32 %v1012, %v1025
        %v1028 = vlaneseq
        %v1029 = vshrl.u32 %v1028, 7
        %v1030 = vsub.s32 0, %v1029
        %v1031 = vrot.slane %v634, %v1030
        %v1033 = vadd.f32 %v1026, %v1031
        %v1034 = vld [vmem:[%s8] sm:$0xff]
        %v1035 = vld [vmem:[%s8 + $0x8] sm:$0xff]
        %v1036 = vld [vmem:[%s8 + $0x10] sm:$0xff]
        %v1037 = vld [vmem:[%s8 + $0x18] sm:$0xff]
        %v1038 = vld [vmem:[%s8 + $0x20] sm:$0xff]
        %v1039 = vld [vmem:[%s8 + $0x28] sm:$0xff]
        %v1040 = vld [vmem:[%s8 + $0x30] sm:$0xff]
        %v1041 = vld [vmem:[%s8 + $0x38] sm:$0xff]
        %v1042 = vld [vmem:[%s8 + $0x40] sm:$0xff]
        %v1043 = vld [vmem:[%s8 + $0x48] sm:$0xff]
        %v1044 = vld [vmem:[%s8 + $0x50] sm:$0xff]
        %v1045 = vld [vmem:[%s8 + $0x58] sm:$0xff]
        %v1046 = vld [vmem:[%s8 + $0x60] sm:$0xff]
        %v1047 = vld [vmem:[%s8 + $0x68] sm:$0xff]
        %v1048 = vld [vmem:[%s8 + $0x70] sm:$0xff]
        %v1049 = vld [vmem:[%s8 + $0x78] sm:$0xff]
        %v1050 = vld [vmem:[%s9] sm:$0x1]
        %v1051 = vld [vmem:[%s9 + $0x1] sm:$0x1]
        %v1052 = vld [vmem:[%s9 + $0x2] sm:$0x1]
        %v1053 = vld [vmem:[%s9 + $0x3] sm:$0x1]
        %v1058 = vlaneseq
        %v1059 = vshrl.u32 %v1058, 7
        %v1060 = vsub.s32 0, %v1059
        %v1061 = vrot.slane %v1050, %v1060
        %v1062 = vlaneseq
        %v1063 = vshrl.u32 %v1062, 7
        %v1064 = vsub.s32 0, %v1063
        %v1065 = vrot.slane %v1051, %v1064
        %v1066 = vlaneseq
        %v1067 = vshrl.u32 %v1066, 7
        %v1068 = vsub.s32 0, %v1067
        %v1069 = vrot.slane %v1052, %v1068
        %v1070 = vlaneseq
        %v1071 = vshrl.u32 %v1070, 7
        %v1072 = vsub.s32 0, %v1071
        %v1073 = vrot.slane %v1053, %v1072
        %vm1078 = vcmask 261120
        %v1080 = vsel %vm1078, %v1033, 0
        %1082 = vmatprep.subr.mxu0 0.0
        %1083 = vmatpush1.msra.mxu0 0.0
        %1084 = vmatprep.subr.mxu0 0.0
        %1085 = vmatpush1.msra.mxu0 0.0
        %1086 = vmatprep.subr.mxu0 0.0
        %1087 = vmatpush1.msra.mxu0 0.0
        %1088 = vmatprep.subr.mxu0 0.0
        %1089 = vmatpush1.msra.mxu0 0.0
        %1090 = vmatprep.subr.mxu0 0.0
        %1091 = vmatpush1.msra.mxu0 0.0
        %1092 = vmatprep.subr.mxu0 0.0
        %1093 = vmatpush1.msra.mxu0 0.0
        %1094 = vmatprep.subr.mxu0 0.0
        %1095 = vmatpush1.msra.mxu0 0.0
        %1096 = vmatprep.subr.mxu0 0.0
        %1097 = vmatpush1.msra.mxu0 0.0
        %1098 = vmatprep.subr.mxu0 0.0
        %1099 = vmatpush1.msra.mxu0 0.0
        %1100 = vmatprep.subr.mxu0 0.0
        %1101 = vmatpush1.msra.mxu0 0.0
        %1102 = vmatprep.subr.mxu0 0.0
        %1103 = vmatpush1.msra.mxu0 0.0
        %1104 = vmatprep.subr.mxu0 0.0
        %1105 = vmatpush1.msra.mxu0 0.0
        %1106 = vmatprep.subr.mxu0 0.0
        %1107 = vmatpush1.msra.mxu0 %v1037
        %1108 = vmatprep.subr.mxu0 0.0
        %1109 = vmatpush1.msra.mxu0 %v1036
        %1110 = vmatprep.subr.mxu0 0.0
        %1111 = vmatpush1.msra.mxu0 %v1035
        %1112 = vmatprep.subr.mxu0 0.0
        %1113 = vmatpush1.msra.mxu0 %v1034
        %1114 = vmatprep.subr.mxu0 0.0
        %1115 = vmatpush2.msra.mxu0 0.0
        %1116 = vmatprep.subr.mxu0 0.0
        %1117 = vmatpush2.msra.mxu0 0.0
        %1118 = vmatprep.subr.mxu0 0.0
        %1119 = vmatpush2.msra.mxu0 0.0
        %1120 = vmatprep.subr.mxu0 0.0
        %1121 = vmatpush2.msra.mxu0 0.0
        %1122 = vmatprep.subr.mxu0 0.0
        %1123 = vmatpush2.msra.mxu0 0.0
        %1124 = vmatprep.subr.mxu0 0.0
        %1125 = vmatpush2.msra.mxu0 0.0
        %1126 = vmatprep.subr.mxu0 0.0
        %1127 = vmatpush2.msra.mxu0 0.0
        %1128 = vmatprep.subr.mxu0 0.0
        %1129 = vmatpush2.msra.mxu0 0.0
        %1130 = vmatprep.subr.mxu0 0.0
        %1131 = vmatpush2.msra.mxu0 0.0
        %1132 = vmatprep.subr.mxu0 0.0
        %1133 = vmatpush2.msra.mxu0 0.0
        %1134 = vmatprep.subr.mxu0 0.0
        %1135 = vmatpush2.msra.mxu0 0.0
        %1136 = vmatprep.subr.mxu0 0.0
        %1137 = vmatpush2.msra.mxu0 0.0
        %1138 = vmatprep.subr.mxu0 0.0
        %1139 = vmatpush2.msra.mxu0 0.0
        %1140 = vmatprep.subr.mxu0 0.0
        %1141 = vmatpush2.msra.mxu0 0.0
        %1142 = vmatprep.subr.mxu0 0.0
        %1143 = vmatpush2.msra.mxu0 0.0
        %1144 = vmatprep.subr.mxu0 0.0
        %1145 = vmatpush2.msra.mxu0 0.0
        %1146 = vmatprep.mubr.f32.mxu0 0.0
        %1147 = vmatmul.mubr.f32.gmra.mxu0 %v1080
        %v1148 = vpop.f32.mrf.mxu0
        %v1149 = vadd.f32 %v1061, %v1148
        %v1150 = vpop.f32.mrf.mxu0
        %1151 = vdwg.mxu0
        %1152 = vmatprep.subr.mxu0 0.0
        %1153 = vmatpush1.msra.mxu0 0.0
        %1154 = vmatprep.subr.mxu0 0.0
        %1155 = vmatpush1.msra.mxu0 0.0
        %1156 = vmatprep.subr.mxu0 0.0
        %1157 = vmatpush1.msra.mxu0 0.0
        %1158 = vmatprep.subr.mxu0 0.0
        %1159 = vmatpush1.msra.mxu0 0.0
        %1160 = vmatprep.subr.mxu0 0.0
        %1161 = vmatpush1.msra.mxu0 0.0
        %1162 = vmatprep.subr.mxu0 0.0
        %1163 = vmatpush1.msra.mxu0 0.0
        %1164 = vmatprep.subr.mxu0 0.0
        %1165 = vmatpush1.msra.mxu0 0.0
        %1166 = vmatprep.subr.mxu0 0.0
        %1167 = vmatpush1.msra.mxu0 0.0
        %1168 = vmatprep.subr.mxu0 0.0
        %1169 = vmatpush1.msra.mxu0 0.0
        %1170 = vmatprep.subr.mxu0 0.0
        %1171 = vmatpush1.msra.mxu0 0.0
        %1172 = vmatprep.subr.mxu0 0.0
        %1173 = vmatpush1.msra.mxu0 0.0
        %1174 = vmatprep.subr.mxu0 0.0
        %1175 = vmatpush1.msra.mxu0 0.0
        %1176 = vmatprep.subr.mxu0 0.0
        %1177 = vmatpush1.msra.mxu0 %v1041
        %1178 = vmatprep.subr.mxu0 0.0
        %1179 = vmatpush1.msra.mxu0 %v1040
        %1180 = vmatprep.subr.mxu0 0.0
        %1181 = vmatpush1.msra.mxu0 %v1039
        %1182 = vmatprep.subr.mxu0 0.0
        %1183 = vmatpush1.msra.mxu0 %v1038
        %1184 = vmatprep.subr.mxu0 0.0
        %1185 = vmatpush2.msra.mxu0 0.0
        %1186 = vmatprep.subr.mxu0 0.0
        %1187 = vmatpush2.msra.mxu0 0.0
        %1188 = vmatprep.subr.mxu0 0.0
        %1189 = vmatpush2.msra.mxu0 0.0
        %1190 = vmatprep.subr.mxu0 0.0
        %1191 = vmatpush2.msra.mxu0 0.0
        %1192 = vmatprep.subr.mxu0 0.0
        %1193 = vmatpush2.msra.mxu0 0.0
        %1194 = vmatprep.subr.mxu0 0.0
        %1195 = vmatpush2.msra.mxu0 0.0
        %1196 = vmatprep.subr.mxu0 0.0
        %1197 = vmatpush2.msra.mxu0 0.0
        %1198 = vmatprep.subr.mxu0 0.0
        %1199 = vmatpush2.msra.mxu0 0.0
        %1200 = vmatprep.subr.mxu0 0.0
        %1201 = vmatpush2.msra.mxu0 0.0
        %1202 = vmatprep.subr.mxu0 0.0
        %1203 = vmatpush2.msra.mxu0 0.0
        %1204 = vmatprep.subr.mxu0 0.0
        %1205 = vmatpush2.msra.mxu0 0.0
        %1206 = vmatprep.subr.mxu0 0.0
        %1207 = vmatpush2.msra.mxu0 0.0
        %1208 = vmatprep.subr.mxu0 0.0
        %1209 = vmatpush2.msra.mxu0 0.0
        %1210 = vmatprep.subr.mxu0 0.0
        %1211 = vmatpush2.msra.mxu0 0.0
        %1212 = vmatprep.subr.mxu0 0.0
        %1213 = vmatpush2.msra.mxu0 0.0
        %1214 = vmatprep.subr.mxu0 0.0
        %1215 = vmatpush2.msra.mxu0 0.0
        %1216 = vmatprep.mubr.f32.mxu0 0.0
        %1217 = vmatmul.mubr.f32.gmra.mxu0 %v1080
        %v1218 = vpop.f32.mrf.mxu0
        %v1219 = vadd.f32 %v1065, %v1218
        %v1220 = vpop.f32.mrf.mxu0
        %1221 = vdwg.mxu0
        %1222 = vmatprep.subr.mxu0 0.0
        %1223 = vmatpush1.msra.mxu0 0.0
        %1224 = vmatprep.subr.mxu0 0.0
        %1225 = vmatpush1.msra.mxu0 0.0
        %1226 = vmatprep.subr.mxu0 0.0
        %1227 = vmatpush1.msra.mxu0 0.0
        %1228 = vmatprep.subr.mxu0 0.0
        %1229 = vmatpush1.msra.mxu0 0.0
        %1230 = vmatprep.subr.mxu0 0.0
        %1231 = vmatpush1.msra.mxu0 0.0
        %1232 = vmatprep.subr.mxu0 0.0
        %1233 = vmatpush1.msra.mxu0 0.0
        %1234 = vmatprep.subr.mxu0 0.0
        %1235 = vmatpush1.msra.mxu0 0.0
        %1236 = vmatprep.subr.mxu0 0.0
        %1237 = vmatpush1.msra.mxu0 0.0
        %1238 = vmatprep.subr.mxu0 0.0
        %1239 = vmatpush1.msra.mxu0 0.0
        %1240 = vmatprep.subr.mxu0 0.0
        %1241 = vmatpush1.msra.mxu0 0.0
        %1242 = vmatprep.subr.mxu0 0.0
        %1243 = vmatpush1.msra.mxu0 0.0
        %1244 = vmatprep.subr.mxu0 0.0
        %1245 = vmatpush1.msra.mxu0 0.0
        %1246 = vmatprep.subr.mxu0 0.0
        %1247 = vmatpush1.msra.mxu0 %v1045
        %1248 = vmatprep.subr.mxu0 0.0
        %1249 = vmatpush1.msra.mxu0 %v1044
        %1250 = vmatprep.subr.mxu0 0.0
        %1251 = vmatpush1.msra.mxu0 %v1043
        %1252 = vmatprep.subr.mxu0 0.0
        %1253 = vmatpush1.msra.mxu0 %v1042
        %1254 = vmatprep.subr.mxu0 0.0
        %1255 = vmatpush2.msra.mxu0 0.0
        %1256 = vmatprep.subr.mxu0 0.0
        %1257 = vmatpush2.msra.mxu0 0.0
        %1258 = vmatprep.subr.mxu0 0.0
        %1259 = vmatpush2.msra.mxu0 0.0
        %1260 = vmatprep.subr.mxu0 0.0
        %1261 = vmatpush2.msra.mxu0 0.0
        %1262 = vmatprep.subr.mxu0 0.0
        %1263 = vmatpush2.msra.mxu0 0.0
        %1264 = vmatprep.subr.mxu0 0.0
        %1265 = vmatpush2.msra.mxu0 0.0
        %1266 = vmatprep.subr.mxu0 0.0
        %1267 = vmatpush2.msra.mxu0 0.0
        %1268 = vmatprep.subr.mxu0 0.0
        %1269 = vmatpush2.msra.mxu0 0.0
        %1270 = vmatprep.subr.mxu0 0.0
        %1271 = vmatpush2.msra.mxu0 0.0
        %1272 = vmatprep.subr.mxu0 0.0
        %1273 = vmatpush2.msra.mxu0 0.0
        %1274 = vmatprep.subr.mxu0 0.0
        %1275 = vmatpush2.msra.mxu0 0.0
        %1276 = vmatprep.subr.mxu0 0.0
        %1277 = vmatpush2.msra.mxu0 0.0
        %1278 = vmatprep.subr.mxu0 0.0
        %1279 = vmatpush2.msra.mxu0 0.0
        %1280 = vmatprep.subr.mxu0 0.0
        %1281 = vmatpush2.msra.mxu0 0.0
        %1282 = vmatprep.subr.mxu0 0.0
        %1283 = vmatpush2.msra.mxu0 0.0
        %1284 = vmatprep.subr.mxu0 0.0
        %1285 = vmatpush2.msra.mxu0 0.0
        %1286 = vmatprep.mubr.f32.mxu0 0.0
        %1287 = vmatmul.mubr.f32.gmra.mxu0 %v1080
        %v1288 = vpop.f32.mrf.mxu0
        %v1289 = vadd.f32 %v1069, %v1288
        %v1290 = vpop.f32.mrf.mxu0
        %1291 = vdwg.mxu0
        %1292 = vmatprep.subr.mxu0 0.0
        %1293 = vmatpush1.msra.mxu0 0.0
        %1294 = vmatprep.subr.mxu0 0.0
        %1295 = vmatpush1.msra.mxu0 0.0
        %1296 = vmatprep.subr.mxu0 0.0
        %1297 = vmatpush1.msra.mxu0 0.0
        %1298 = vmatprep.subr.mxu0 0.0
        %1299 = vmatpush1.msra.mxu0 0.0
        %1300 = vmatprep.subr.mxu0 0.0
        %1301 = vmatpush1.msra.mxu0 0.0
        %1302 = vmatprep.subr.mxu0 0.0
        %1303 = vmatpush1.msra.mxu0 0.0
        %1304 = vmatprep.subr.mxu0 0.0
        %1305 = vmatpush1.msra.mxu0 0.0
        %1306 = vmatprep.subr.mxu0 0.0
        %1307 = vmatpush1.msra.mxu0 0.0
        %1308 = vmatprep.subr.mxu0 0.0
        %1309 = vmatpush1.msra.mxu0 0.0
        %1310 = vmatprep.subr.mxu0 0.0
        %1311 = vmatpush1.msra.mxu0 0.0
        %1312 = vmatprep.subr.mxu0 0.0
        %1313 = vmatpush1.msra.mxu0 0.0
        %1314 = vmatprep.subr.mxu0 0.0
        %1315 = vmatpush1.msra.mxu0 0.0
        %1316 = vmatprep.subr.mxu0 0.0
        %1317 = vmatpush1.msra.mxu0 %v1049
        %1318 = vmatprep.subr.mxu0 0.0
        %1319 = vmatpush1.msra.mxu0 %v1048
        %1320 = vmatprep.subr.mxu0 0.0
        %1321 = vmatpush1.msra.mxu0 %v1047
        %1322 = vmatprep.subr.mxu0 0.0
        %1323 = vmatpush1.msra.mxu0 %v1046
        %1324 = vmatprep.subr.mxu0 0.0
        %1325 = vmatpush2.msra.mxu0 0.0
        %1326 = vmatprep.subr.mxu0 0.0
        %1327 = vmatpush2.msra.mxu0 0.0
        %1328 = vmatprep.subr.mxu0 0.0
        %1329 = vmatpush2.msra.mxu0 0.0
        %1330 = vmatprep.subr.mxu0 0.0
        %1331 = vmatpush2.msra.mxu0 0.0
        %1332 = vmatprep.subr.mxu0 0.0
        %1333 = vmatpush2.msra.mxu0 0.0
        %1334 = vmatprep.subr.mxu0 0.0
        %1335 = vmatpush2.msra.mxu0 0.0
        %1336 = vmatprep.subr.mxu0 0.0
        %1337 = vmatpush2.msra.mxu0 0.0
        %1338 = vmatprep.subr.mxu0 0.0
        %1339 = vmatpush2.msra.mxu0 0.0
        %1340 = vmatprep.subr.mxu0 0.0
        %1341 = vmatpush2.msra.mxu0 0.0
        %1342 = vmatprep.subr.mxu0 0.0
        %1343 = vmatpush2.msra.mxu0 0.0
        %1344 = vmatprep.subr.mxu0 0.0
        %1345 = vmatpush2.msra.mxu0 0.0
        %1346 = vmatprep.subr.mxu0 0.0
        %1347 = vmatpush2.msra.mxu0 0.0
        %1348 = vmatprep.subr.mxu0 0.0
        %1349 = vmatpush2.msra.mxu0 0.0
        %1350 = vmatprep.subr.mxu0 0.0
        %1351 = vmatpush2.msra.mxu0 0.0
        %1352 = vmatprep.subr.mxu0 0.0
        %1353 = vmatpush2.msra.mxu0 0.0
        %1354 = vmatprep.subr.mxu0 0.0
        %1355 = vmatpush2.msra.mxu0 0.0
        %1356 = vmatprep.mubr.f32.mxu0 0.0
        %1357 = vmatmul.mubr.f32.gmra.mxu0 %v1080
        %v1358 = vpop.f32.mrf.mxu0
        %v1359 = vadd.f32 %v1073, %v1358
        %v1360 = vpop.f32.mrf.mxu0
        %1361 = vdwg.mxu0
        %v1362 = vld [vmem:[%s10] sm:$0xff]
        %v1363 = vld [vmem:[%s10 + $0x8] sm:$0xff]
        %v1364 = vld [vmem:[%s10 + $0x10] sm:$0xff]
        %v1365 = vld [vmem:[%s10 + $0x18] sm:$0xff]
        %v1366 = vld [vmem:[%s10 + $0x20] sm:$0xff]
        %v1367 = vld [vmem:[%s10 + $0x28] sm:$0xff]
        %v1368 = vld [vmem:[%s10 + $0x30] sm:$0xff]
        %v1369 = vld [vmem:[%s10 + $0x38] sm:$0xff]
        %v1370 = vld [vmem:[%s10 + $0x40] sm:$0xff]
        %v1371 = vld [vmem:[%s10 + $0x48] sm:$0xff]
        %v1372 = vld [vmem:[%s10 + $0x50] sm:$0xff]
        %v1373 = vld [vmem:[%s10 + $0x58] sm:$0xff]
        %v1374 = vld [vmem:[%s10 + $0x60] sm:$0xff]
        %v1375 = vld [vmem:[%s10 + $0x68] sm:$0xff]
        %v1376 = vld [vmem:[%s10 + $0x70] sm:$0xff]
        %v1377 = vld [vmem:[%s10 + $0x78] sm:$0xff]
        %v1378 = vld [vmem:[%s11] sm:$0x1]
        %v1379 = vld [vmem:[%s11 + $0x1] sm:$0x1]
        %v1380 = vld [vmem:[%s11 + $0x2] sm:$0x1]
        %v1381 = vld [vmem:[%s11 + $0x3] sm:$0x1]
        %v1386 = vlaneseq
        %v1387 = vshrl.u32 %v1386, 7
        %v1388 = vsub.s32 0, %v1387
        %v1389 = vrot.slane %v1378, %v1388
        %v1390 = vlaneseq
        %v1391 = vshrl.u32 %v1390, 7
        %v1392 = vsub.s32 0, %v1391
        %v1393 = vrot.slane %v1379, %v1392
        %v1394 = vlaneseq
        %v1395 = vshrl.u32 %v1394, 7
        %v1396 = vsub.s32 0, %v1395
        %v1397 = vrot.slane %v1380, %v1396
        %v1398 = vlaneseq
        %v1399 = vshrl.u32 %v1398, 7
        %v1400 = vsub.s32 0, %v1399
        %v1401 = vrot.slane %v1381, %v1400
        %1406 = vmatprep.subr.mxu0 0.0
        %1407 = vmatpush1.msra.mxu0 0.0
        %1408 = vmatprep.subr.mxu0 0.0
        %1409 = vmatpush1.msra.mxu0 0.0
        %1410 = vmatprep.subr.mxu0 0.0
        %1411 = vmatpush1.msra.mxu0 0.0
        %1412 = vmatprep.subr.mxu0 0.0
        %1413 = vmatpush1.msra.mxu0 0.0
        %1414 = vmatprep.subr.mxu0 0.0
        %1415 = vmatpush1.msra.mxu0 0.0
        %1416 = vmatprep.subr.mxu0 0.0
        %1417 = vmatpush1.msra.mxu0 0.0
        %1418 = vmatprep.subr.mxu0 0.0
        %1419 = vmatpush1.msra.mxu0 0.0
        %1420 = vmatprep.subr.mxu0 0.0
        %1421 = vmatpush1.msra.mxu0 0.0
        %1422 = vmatprep.subr.mxu0 0.0
        %1423 = vmatpush1.msra.mxu0 0.0
        %1424 = vmatprep.subr.mxu0 0.0
        %1425 = vmatpush1.msra.mxu0 0.0
        %1426 = vmatprep.subr.mxu0 0.0
        %1427 = vmatpush1.msra.mxu0 0.0
        %1428 = vmatprep.subr.mxu0 0.0
        %1429 = vmatpush1.msra.mxu0 0.0
        %1430 = vmatprep.subr.mxu0 0.0
        %1431 = vmatpush1.msra.mxu0 %v1365
        %1432 = vmatprep.subr.mxu0 0.0
        %1433 = vmatpush1.msra.mxu0 %v1364
        %1434 = vmatprep.subr.mxu0 0.0
        %1435 = vmatpush1.msra.mxu0 %v1363
        %1436 = vmatprep.subr.mxu0 0.0
        %1437 = vmatpush1.msra.mxu0 %v1362
        %1438 = vmatprep.subr.mxu0 0.0
        %1439 = vmatpush2.msra.mxu0 0.0
        %1440 = vmatprep.subr.mxu0 0.0
        %1441 = vmatpush2.msra.mxu0 0.0
        %1442 = vmatprep.subr.mxu0 0.0
        %1443 = vmatpush2.msra.mxu0 0.0
        %1444 = vmatprep.subr.mxu0 0.0
        %1445 = vmatpush2.msra.mxu0 0.0
        %1446 = vmatprep.subr.mxu0 0.0
        %1447 = vmatpush2.msra.mxu0 0.0
        %1448 = vmatprep.subr.mxu0 0.0
        %1449 = vmatpush2.msra.mxu0 0.0
        %1450 = vmatprep.subr.mxu0 0.0
        %1451 = vmatpush2.msra.mxu0 0.0
        %1452 = vmatprep.subr.mxu0 0.0
        %1453 = vmatpush2.msra.mxu0 0.0
        %1454 = vmatprep.subr.mxu0 0.0
        %1455 = vmatpush2.msra.mxu0 0.0
        %1456 = vmatprep.subr.mxu0 0.0
        %1457 = vmatpush2.msra.mxu0 0.0
        %1458 = vmatprep.subr.mxu0 0.0
        %1459 = vmatpush2.msra.mxu0 0.0
        %1460 = vmatprep.subr.mxu0 0.0
        %1461 = vmatpush2.msra.mxu0 0.0
        %1462 = vmatprep.subr.mxu0 0.0
        %1463 = vmatpush2.msra.mxu0 0.0
        %1464 = vmatprep.subr.mxu0 0.0
        %1465 = vmatpush2.msra.mxu0 0.0
        %1466 = vmatprep.subr.mxu0 0.0
        %1467 = vmatpush2.msra.mxu0 0.0
        %1468 = vmatprep.subr.mxu0 0.0
        %1469 = vmatpush2.msra.mxu0 0.0
        %1470 = vmatprep.mubr.f32.mxu0 0.0
        %1471 = vmatmul.mubr.f32.gmra.mxu0 %v1080
        %v1472 = vpop.f32.mrf.mxu0
        %v1473 = vadd.f32 %v1389, %v1472
        %v1474 = vpop.f32.mrf.mxu0
        %1475 = vdwg.mxu0
        %1476 = vmatprep.subr.mxu0 0.0
        %1477 = vmatpush1.msra.mxu0 0.0
        %1478 = vmatprep.subr.mxu0 0.0
        %1479 = vmatpush1.msra.mxu0 0.0
        %1480 = vmatprep.subr.mxu0 0.0
        %1481 = vmatpush1.msra.mxu0 0.0
        %1482 = vmatprep.subr.mxu0 0.0
        %1483 = vmatpush1.msra.mxu0 0.0
        %1484 = vmatprep.subr.mxu0 0.0
        %1485 = vmatpush1.msra.mxu0 0.0
        %1486 = vmatprep.subr.mxu0 0.0
        %1487 = vmatpush1.msra.mxu0 0.0
        %1488 = vmatprep.subr.mxu0 0.0
        %1489 = vmatpush1.msra.mxu0 0.0
        %1490 = vmatprep.subr.mxu0 0.0
        %1491 = vmatpush1.msra.mxu0 0.0
        %1492 = vmatprep.subr.mxu0 0.0
        %1493 = vmatpush1.msra.mxu0 0.0
        %1494 = vmatprep.subr.mxu0 0.0
        %1495 = vmatpush1.msra.mxu0 0.0
        %1496 = vmatprep.subr.mxu0 0.0
        %1497 = vmatpush1.msra.mxu0 0.0
        %1498 = vmatprep.subr.mxu0 0.0
        %1499 = vmatpush1.msra.mxu0 0.0
        %1500 = vmatprep.subr.mxu0 0.0
        %1501 = vmatpush1.msra.mxu0 %v1369
        %1502 = vmatprep.subr.mxu0 0.0
        %1503 = vmatpush1.msra.mxu0 %v1368
        %1504 = vmatprep.subr.mxu0 0.0
        %1505 = vmatpush1.msra.mxu0 %v1367
        %1506 = vmatprep.subr.mxu0 0.0
        %1507 = vmatpush1.msra.mxu0 %v1366
        %1508 = vmatprep.subr.mxu0 0.0
        %1509 = vmatpush2.msra.mxu0 0.0
        %1510 = vmatprep.subr.mxu0 0.0
        %1511 = vmatpush2.msra.mxu0 0.0
        %1512 = vmatprep.subr.mxu0 0.0
        %1513 = vmatpush2.msra.mxu0 0.0
        %1514 = vmatprep.subr.mxu0 0.0
        %1515 = vmatpush2.msra.mxu0 0.0
        %1516 = vmatprep.subr.mxu0 0.0
        %1517 = vmatpush2.msra.mxu0 0.0
        %1518 = vmatprep.subr.mxu0 0.0
        %1519 = vmatpush2.msra.mxu0 0.0
        %1520 = vmatprep.subr.mxu0 0.0
        %1521 = vmatpush2.msra.mxu0 0.0
        %1522 = vmatprep.subr.mxu0 0.0
        %1523 = vmatpush2.msra.mxu0 0.0
        %1524 = vmatprep.subr.mxu0 0.0
        %1525 = vmatpush2.msra.mxu0 0.0
        %1526 = vmatprep.subr.mxu0 0.0
        %1527 = vmatpush2.msra.mxu0 0.0
        %1528 = vmatprep.subr.mxu0 0.0
        %1529 = vmatpush2.msra.mxu0 0.0
        %1530 = vmatprep.subr.mxu0 0.0
        %1531 = vmatpush2.msra.mxu0 0.0
        %1532 = vmatprep.subr.mxu0 0.0
        %1533 = vmatpush2.msra.mxu0 0.0
        %1534 = vmatprep.subr.mxu0 0.0
        %1535 = vmatpush2.msra.mxu0 0.0
        %1536 = vmatprep.subr.mxu0 0.0
        %1537 = vmatpush2.msra.mxu0 0.0
        %1538 = vmatprep.subr.mxu0 0.0
        %1539 = vmatpush2.msra.mxu0 0.0
        %1540 = vmatprep.mubr.f32.mxu0 0.0
        %1541 = vmatmul.mubr.f32.gmra.mxu0 %v1080
        %v1542 = vpop.f32.mrf.mxu0
        %v1543 = vadd.f32 %v1393, %v1542
        %v1544 = vpop.f32.mrf.mxu0
        %1545 = vdwg.mxu0
        %1546 = vmatprep.subr.mxu0 0.0
        %1547 = vmatpush1.msra.mxu0 0.0
        %1548 = vmatprep.subr.mxu0 0.0
        %1549 = vmatpush1.msra.mxu0 0.0
        %1550 = vmatprep.subr.mxu0 0.0
        %1551 = vmatpush1.msra.mxu0 0.0
        %1552 = vmatprep.subr.mxu0 0.0
        %1553 = vmatpush1.msra.mxu0 0.0
        %1554 = vmatprep.subr.mxu0 0.0
        %1555 = vmatpush1.msra.mxu0 0.0
        %1556 = vmatprep.subr.mxu0 0.0
        %1557 = vmatpush1.msra.mxu0 0.0
        %1558 = vmatprep.subr.mxu0 0.0
        %1559 = vmatpush1.msra.mxu0 0.0
        %1560 = vmatprep.subr.mxu0 0.0
        %1561 = vmatpush1.msra.mxu0 0.0
        %1562 = vmatprep.subr.mxu0 0.0
        %1563 = vmatpush1.msra.mxu0 0.0
        %1564 = vmatprep.subr.mxu0 0.0
        %1565 = vmatpush1.msra.mxu0 0.0
        %1566 = vmatprep.subr.mxu0 0.0
        %1567 = vmatpush1.msra.mxu0 0.0
        %1568 = vmatprep.subr.mxu0 0.0
        %1569 = vmatpush1.msra.mxu0 0.0
        %1570 = vmatprep.subr.mxu0 0.0
        %1571 = vmatpush1.msra.mxu0 %v1373
        %1572 = vmatprep.subr.mxu0 0.0
        %1573 = vmatpush1.msra.mxu0 %v1372
        %1574 = vmatprep.subr.mxu0 0.0
        %1575 = vmatpush1.msra.mxu0 %v1371
        %1576 = vmatprep.subr.mxu0 0.0
        %1577 = vmatpush1.msra.mxu0 %v1370
        %1578 = vmatprep.subr.mxu0 0.0
        %1579 = vmatpush2.msra.mxu0 0.0
        %1580 = vmatprep.subr.mxu0 0.0
        %1581 = vmatpush2.msra.mxu0 0.0
        %1582 = vmatprep.subr.mxu0 0.0
        %1583 = vmatpush2.msra.mxu0 0.0
        %1584 = vmatprep.subr.mxu0 0.0
        %1585 = vmatpush2.msra.mxu0 0.0
        %1586 = vmatprep.subr.mxu0 0.0
        %1587 = vmatpush2.msra.mxu0 0.0
        %1588 = vmatprep.subr.mxu0 0.0
        %1589 = vmatpush2.msra.mxu0 0.0
        %1590 = vmatprep.subr.mxu0 0.0
        %1591 = vmatpush2.msra.mxu0 0.0
        %1592 = vmatprep.subr.mxu0 0.0
        %1593 = vmatpush2.msra.mxu0 0.0
        %1594 = vmatprep.subr.mxu0 0.0
        %1595 = vmatpush2.msra.mxu0 0.0
        %1596 = vmatprep.subr.mxu0 0.0
        %1597 = vmatpush2.msra.mxu0 0.0
        %1598 = vmatprep.subr.mxu0 0.0
        %1599 = vmatpush2.msra.mxu0 0.0
        %1600 = vmatprep.subr.mxu0 0.0
        %1601 = vmatpush2.msra.mxu0 0.0
        %1602 = vmatprep.subr.mxu0 0.0
        %1603 = vmatpush2.msra.mxu0 0.0
        %1604 = vmatprep.subr.mxu0 0.0
        %1605 = vmatpush2.msra.mxu0 0.0
        %1606 = vmatprep.subr.mxu0 0.0
        %1607 = vmatpush2.msra.mxu0 0.0
        %1608 = vmatprep.subr.mxu0 0.0
        %1609 = vmatpush2.msra.mxu0 0.0
        %1610 = vmatprep.mubr.f32.mxu0 0.0
        %1611 = vmatmul.mubr.f32.gmra.mxu0 %v1080
        %v1612 = vpop.f32.mrf.mxu0
        %v1613 = vadd.f32 %v1397, %v1612
        %v1614 = vpop.f32.mrf.mxu0
        %1615 = vdwg.mxu0
        %1616 = vmatprep.subr.mxu0 0.0
        %1617 = vmatpush1.msra.mxu0 0.0
        %1618 = vmatprep.subr.mxu0 0.0
        %1619 = vmatpush1.msra.mxu0 0.0
        %1620 = vmatprep.subr.mxu0 0.0
        %1621 = vmatpush1.msra.mxu0 0.0
        %1622 = vmatprep.subr.mxu0 0.0
        %1623 = vmatpush1.msra.mxu0 0.0
        %1624 = vmatprep.subr.mxu0 0.0
        %1625 = vmatpush1.msra.mxu0 0.0
        %1626 = vmatprep.subr.mxu0 0.0
        %1627 = vmatpush1.msra.mxu0 0.0
        %1628 = vmatprep.subr.mxu0 0.0
        %1629 = vmatpush1.msra.mxu0 0.0
        %1630 = vmatprep.subr.mxu0 0.0
        %1631 = vmatpush1.msra.mxu0 0.0
        %1632 = vmatprep.subr.mxu0 0.0
        %1633 = vmatpush1.msra.mxu0 0.0
        %1634 = vmatprep.subr.mxu0 0.0
        %1635 = vmatpush1.msra.mxu0 0.0
        %1636 = vmatprep.subr.mxu0 0.0
        %1637 = vmatpush1.msra.mxu0 0.0
        %1638 = vmatprep.subr.mxu0 0.0
        %1639 = vmatpush1.msra.mxu0 0.0
        %1640 = vmatprep.subr.mxu0 0.0
        %1641 = vmatpush1.msra.mxu0 %v1377
        %1642 = vmatprep.subr.mxu0 0.0
        %1643 = vmatpush1.msra.mxu0 %v1376
        %1644 = vmatprep.subr.mxu0 0.0
        %1645 = vmatpush1.msra.mxu0 %v1375
        %1646 = vmatprep.subr.mxu0 0.0
        %1647 = vmatpush1.msra.mxu0 %v1374
        %1648 = vmatprep.subr.mxu0 0.0
        %1649 = vmatpush2.msra.mxu0 0.0
        %1650 = vmatprep.subr.mxu0 0.0
        %1651 = vmatpush2.msra.mxu0 0.0
        %1652 = vmatprep.subr.mxu0 0.0
        %1653 = vmatpush2.msra.mxu0 0.0
        %1654 = vmatprep.subr.mxu0 0.0
        %1655 = vmatpush2.msra.mxu0 0.0
        %1656 = vmatprep.subr.mxu0 0.0
        %1657 = vmatpush2.msra.mxu0 0.0
        %1658 = vmatprep.subr.mxu0 0.0
        %1659 = vmatpush2.msra.mxu0 0.0
        %1660 = vmatprep.subr.mxu0 0.0
        %1661 = vmatpush2.msra.mxu0 0.0
        %1662 = vmatprep.subr.mxu0 0.0
        %1663 = vmatpush2.msra.mxu0 0.0
        %1664 = vmatprep.subr.mxu0 0.0
        %1665 = vmatpush2.msra.mxu0 0.0
        %1666 = vmatprep.subr.mxu0 0.0
        %1667 = vmatpush2.msra.mxu0 0.0
        %1668 = vmatprep.subr.mxu0 0.0
        %1669 = vmatpush2.msra.mxu0 0.0
        %1670 = vmatprep.subr.mxu0 0.0
        %1671 = vmatpush2.msra.mxu0 0.0
        %1672 = vmatprep.subr.mxu0 0.0
        %1673 = vmatpush2.msra.mxu0 0.0
        %1674 = vmatprep.subr.mxu0 0.0
        %1675 = vmatpush2.msra.mxu0 0.0
        %1676 = vmatprep.subr.mxu0 0.0
        %1677 = vmatpush2.msra.mxu0 0.0
        %1678 = vmatprep.subr.mxu0 0.0
        %1679 = vmatpush2.msra.mxu0 0.0
        %1680 = vmatprep.mubr.f32.mxu0 0.0
        %1681 = vmatmul.mubr.f32.gmra.mxu0 %v1080
        %v1682 = vpop.f32.mrf.mxu0
        %v1683 = vadd.f32 %v1401, %v1682
        %v1684 = vpop.f32.mrf.mxu0
        %1685 = vdwg.mxu0
        %v1686 = vld [vmem:[#allocation2] sm:$0xff]
        %v1687 = vld [vmem:[#allocation2 + $0x8] sm:$0xff]
        %v1688 = vld [vmem:[#allocation2 + $0x10] sm:$0xff]
        %v1689 = vld [vmem:[#allocation2 + $0x18] sm:$0xff]
        %vm1690 = vcmask 64512
        %v1692 = vsel %vm1690, %v1686, 0
        %v1695 = vsel %vm1690, %v1149, 0
        %1697 = vmatprep.subr.mxu0 0.0
        %1698 = vmatpush1.xpose.msra.mxu0 0.0
        %1699 = vmatprep.subr.mxu0 0.0
        %1700 = vmatpush1.xpose.msra.mxu0 0.0
        %1701 = vmatprep.subr.mxu0 0.0
        %1702 = vmatpush1.xpose.msra.mxu0 0.0
        %1703 = vmatprep.subr.mxu0 0.0
        %1704 = vmatpush1.xpose.msra.mxu0 0.0
        %1705 = vmatprep.subr.mxu0 0.0
        %1706 = vmatpush1.xpose.msra.mxu0 0.0
        %1707 = vmatprep.subr.mxu0 0.0
        %1708 = vmatpush1.xpose.msra.mxu0 0.0
        %1709 = vmatprep.subr.mxu0 0.0
        %1710 = vmatpush1.xpose.msra.mxu0 0.0
        %1711 = vmatprep.subr.mxu0 0.0
        %1712 = vmatpush1.xpose.msra.mxu0 0.0
        %1713 = vmatprep.subr.mxu0 0.0
        %1714 = vmatpush1.xpose.msra.mxu0 0.0
        %1715 = vmatprep.subr.mxu0 0.0
        %1716 = vmatpush1.xpose.msra.mxu0 0.0
        %1717 = vmatprep.subr.mxu0 0.0
        %1718 = vmatpush1.xpose.msra.mxu0 0.0
        %1719 = vmatprep.subr.mxu0 0.0
        %1720 = vmatpush1.xpose.msra.mxu0 0.0
        %1721 = vmatprep.subr.mxu0 0.0
        %1722 = vmatpush1.xpose.msra.mxu0 0.0
        %1723 = vmatprep.subr.mxu0 0.0
        %1724 = vmatpush1.xpose.msra.mxu0 0.0
        %1725 = vmatprep.subr.mxu0 0.0
        %1726 = vmatpush1.xpose.msra.mxu0 0.0
        %1727 = vmatprep.subr.mxu0 0.0
        %1728 = vmatpush1.xpose.msra.mxu0 %v1695
        %1729 = vmatprep.subr.mxu0 0.0
        %1730 = vmatpush2.xpose.msra.mxu0 0.0
        %1731 = vmatprep.subr.mxu0 0.0
        %1732 = vmatpush2.xpose.msra.mxu0 0.0
        %1733 = vmatprep.subr.mxu0 0.0
        %1734 = vmatpush2.xpose.msra.mxu0 0.0
        %1735 = vmatprep.subr.mxu0 0.0
        %1736 = vmatpush2.xpose.msra.mxu0 0.0
        %1737 = vmatprep.subr.mxu0 0.0
        %1738 = vmatpush2.xpose.msra.mxu0 0.0
        %1739 = vmatprep.subr.mxu0 0.0
        %1740 = vmatpush2.xpose.msra.mxu0 0.0
        %1741 = vmatprep.subr.mxu0 0.0
        %1742 = vmatpush2.xpose.msra.mxu0 0.0
        %1743 = vmatprep.subr.mxu0 0.0
        %1744 = vmatpush2.xpose.msra.mxu0 0.0
        %1745 = vmatprep.subr.mxu0 0.0
        %1746 = vmatpush2.xpose.msra.mxu0 0.0
        %1747 = vmatprep.subr.mxu0 0.0
        %1748 = vmatpush2.xpose.msra.mxu0 0.0
        %1749 = vmatprep.subr.mxu0 0.0
        %1750 = vmatpush2.xpose.msra.mxu0 0.0
        %1751 = vmatprep.subr.mxu0 0.0
        %1752 = vmatpush2.xpose.msra.mxu0 0.0
        %1753 = vmatprep.subr.mxu0 0.0
        %1754 = vmatpush2.xpose.msra.mxu0 0.0
        %1755 = vmatprep.subr.mxu0 0.0
        %1756 = vmatpush2.xpose.msra.mxu0 0.0
        %1757 = vmatprep.subr.mxu0 0.0
        %1758 = vmatpush2.xpose.msra.mxu0 0.0
        %1759 = vmatprep.subr.mxu0 0.0
        %1760 = vmatpush2.xpose.msra.mxu0 0.0
        %1761 = vmatprep.mubr.f32.mxu0 0.0
        %1762 = vmatmul.mubr.f32.gmra.mxu0 %v1692
        %v1763 = vpop.f32.mrf.mxu0
        %v1764 = vadd.f32 0.0, %v1763
        %v1765 = vpop.f32.mrf.mxu0
        %1766 = vdwg.mxu0
        %v1768 = vsel %vm1690, %v1687, 0
        %v1771 = vsel %vm1690, %v1219, 0
        %1773 = vmatprep.subr.mxu0 0.0
        %1774 = vmatpush1.xpose.msra.mxu0 0.0
        %1775 = vmatprep.subr.mxu0 0.0
        %1776 = vmatpush1.xpose.msra.mxu0 0.0
        %1777 = vmatprep.subr.mxu0 0.0
        %1778 = vmatpush1.xpose.msra.mxu0 0.0
        %1779 = vmatprep.subr.mxu0 0.0
        %1780 = vmatpush1.xpose.msra.mxu0 0.0
        %1781 = vmatprep.subr.mxu0 0.0
        %1782 = vmatpush1.xpose.msra.mxu0 0.0
        %1783 = vmatprep.subr.mxu0 0.0
        %1784 = vmatpush1.xpose.msra.mxu0 0.0
        %1785 = vmatprep.subr.mxu0 0.0
        %1786 = vmatpush1.xpose.msra.mxu0 0.0
        %1787 = vmatprep.subr.mxu0 0.0
        %1788 = vmatpush1.xpose.msra.mxu0 0.0
        %1789 = vmatprep.subr.mxu0 0.0
        %1790 = vmatpush1.xpose.msra.mxu0 0.0
        %1791 = vmatprep.subr.mxu0 0.0
        %1792 = vmatpush1.xpose.msra.mxu0 0.0
        %1793 = vmatprep.subr.mxu0 0.0
        %1794 = vmatpush1.xpose.msra.mxu0 0.0
        %1795 = vmatprep.subr.mxu0 0.0
        %1796 = vmatpush1.xpose.msra.mxu0 0.0
        %1797 = vmatprep.subr.mxu0 0.0
        %1798 = vmatpush1.xpose.msra.mxu0 0.0
        %1799 = vmatprep.subr.mxu0 0.0
        %1800 = vmatpush1.xpose.msra.mxu0 0.0
        %1801 = vmatprep.subr.mxu0 0.0
        %1802 = vmatpush1.xpose.msra.mxu0 0.0
        %1803 = vmatprep.subr.mxu0 0.0
        %1804 = vmatpush1.xpose.msra.mxu0 %v1771
        %1805 = vmatprep.subr.mxu0 0.0
        %1806 = vmatpush2.xpose.msra.mxu0 0.0
        %1807 = vmatprep.subr.mxu0 0.0
        %1808 = vmatpush2.xpose.msra.mxu0 0.0
        %1809 = vmatprep.subr.mxu0 0.0
        %1810 = vmatpush2.xpose.msra.mxu0 0.0
        %1811 = vmatprep.subr.mxu0 0.0
        %1812 = vmatpush2.xpose.msra.mxu0 0.0
        %1813 = vmatprep.subr.mxu0 0.0
        %1814 = vmatpush2.xpose.msra.mxu0 0.0
        %1815 = vmatprep.subr.mxu0 0.0
        %1816 = vmatpush2.xpose.msra.mxu0 0.0
        %1817 = vmatprep.subr.mxu0 0.0
        %1818 = vmatpush2.xpose.msra.mxu0 0.0
        %1819 = vmatprep.subr.mxu0 0.0
        %1820 = vmatpush2.xpose.msra.mxu0 0.0
        %1821 = vmatprep.subr.mxu0 0.0
        %1822 = vmatpush2.xpose.msra.mxu0 0.0
        %1823 = vmatprep.subr.mxu0 0.0
        %1824 = vmatpush2.xpose.msra.mxu0 0.0
        %1825 = vmatprep.subr.mxu0 0.0
        %1826 = vmatpush2.xpose.msra.mxu0 0.0
        %1827 = vmatprep.subr.mxu0 0.0
        %1828 = vmatpush2.xpose.msra.mxu0 0.0
        %1829 = vmatprep.subr.mxu0 0.0
        %1830 = vmatpush2.xpose.msra.mxu0 0.0
        %1831 = vmatprep.subr.mxu0 0.0
        %1832 = vmatpush2.xpose.msra.mxu0 0.0
        %1833 = vmatprep.subr.mxu0 0.0
        %1834 = vmatpush2.xpose.msra.mxu0 0.0
        %1835 = vmatprep.subr.mxu0 0.0
        %1836 = vmatpush2.xpose.msra.mxu0 0.0
        %1837 = vmatprep.mubr.f32.mxu0 0.0
        %1838 = vmatmul.mubr.f32.gmra.mxu0 %v1768
        %v1839 = vpop.f32.mrf.mxu0
        %v1840 = vadd.f32 0.0, %v1839
        %v1841 = vpop.f32.mrf.mxu0
        %1842 = vdwg.mxu0
        %v1844 = vsel %vm1690, %v1688, 0
        %v1847 = vsel %vm1690, %v1289, 0
        %1849 = vmatprep.subr.mxu0 0.0
        %1850 = vmatpush1.xpose.msra.mxu0 0.0
        %1851 = vmatprep.subr.mxu0 0.0
        %1852 = vmatpush1.xpose.msra.mxu0 0.0
        %1853 = vmatprep.subr.mxu0 0.0
        %1854 = vmatpush1.xpose.msra.mxu0 0.0
        %1855 = vmatprep.subr.mxu0 0.0
        %1856 = vmatpush1.xpose.msra.mxu0 0.0
        %1857 = vmatprep.subr.mxu0 0.0
        %1858 = vmatpush1.xpose.msra.mxu0 0.0
        %1859 = vmatprep.subr.mxu0 0.0
        %1860 = vmatpush1.xpose.msra.mxu0 0.0
        %1861 = vmatprep.subr.mxu0 0.0
        %1862 = vmatpush1.xpose.msra.mxu0 0.0
        %1863 = vmatprep.subr.mxu0 0.0
        %1864 = vmatpush1.xpose.msra.mxu0 0.0
        %1865 = vmatprep.subr.mxu0 0.0
        %1866 = vmatpush1.xpose.msra.mxu0 0.0
        %1867 = vmatprep.subr.mxu0 0.0
        %1868 = vmatpush1.xpose.msra.mxu0 0.0
        %1869 = vmatprep.subr.mxu0 0.0
        %1870 = vmatpush1.xpose.msra.mxu0 0.0
        %1871 = vmatprep.subr.mxu0 0.0
        %1872 = vmatpush1.xpose.msra.mxu0 0.0
        %1873 = vmatprep.subr.mxu0 0.0
        %1874 = vmatpush1.xpose.msra.mxu0 0.0
        %1875 = vmatprep.subr.mxu0 0.0
        %1876 = vmatpush1.xpose.msra.mxu0 0.0
        %1877 = vmatprep.subr.mxu0 0.0
        %1878 = vmatpush1.xpose.msra.mxu0 0.0
        %1879 = vmatprep.subr.mxu0 0.0
        %1880 = vmatpush1.xpose.msra.mxu0 %v1847
        %1881 = vmatprep.subr.mxu0 0.0
        %1882 = vmatpush2.xpose.msra.mxu0 0.0
        %1883 = vmatprep.subr.mxu0 0.0
        %1884 = vmatpush2.xpose.msra.mxu0 0.0
        %1885 = vmatprep.subr.mxu0 0.0
        %1886 = vmatpush2.xpose.msra.mxu0 0.0
        %1887 = vmatprep.subr.mxu0 0.0
        %1888 = vmatpush2.xpose.msra.mxu0 0.0
        %1889 = vmatprep.subr.mxu0 0.0
        %1890 = vmatpush2.xpose.msra.mxu0 0.0
        %1891 = vmatprep.subr.mxu0 0.0
        %1892 = vmatpush2.xpose.msra.mxu0 0.0
        %1893 = vmatprep.subr.mxu0 0.0
        %1894 = vmatpush2.xpose.msra.mxu0 0.0
        %1895 = vmatprep.subr.mxu0 0.0
        %1896 = vmatpush2.xpose.msra.mxu0 0.0
        %1897 = vmatprep.subr.mxu0 0.0
        %1898 = vmatpush2.xpose.msra.mxu0 0.0
        %1899 = vmatprep.subr.mxu0 0.0
        %1900 = vmatpush2.xpose.msra.mxu0 0.0
        %1901 = vmatprep.subr.mxu0 0.0
        %1902 = vmatpush2.xpose.msra.mxu0 0.0
        %1903 = vmatprep.subr.mxu0 0.0
        %1904 = vmatpush2.xpose.msra.mxu0 0.0
        %1905 = vmatprep.subr.mxu0 0.0
        %1906 = vmatpush2.xpose.msra.mxu0 0.0
        %1907 = vmatprep.subr.mxu0 0.0
        %1908 = vmatpush2.xpose.msra.mxu0 0.0
        %1909 = vmatprep.subr.mxu0 0.0
        %1910 = vmatpush2.xpose.msra.mxu0 0.0
        %1911 = vmatprep.subr.mxu0 0.0
        %1912 = vmatpush2.xpose.msra.mxu0 0.0
        %1913 = vmatprep.mubr.f32.mxu0 0.0
        %1914 = vmatmul.mubr.f32.gmra.mxu0 %v1844
        %v1915 = vpop.f32.mrf.mxu0
        %v1916 = vadd.f32 0.0, %v1915
        %v1917 = vpop.f32.mrf.mxu0
        %1918 = vdwg.mxu0
        %v1920 = vsel %vm1690, %v1689, 0
        %v1923 = vsel %vm1690, %v1359, 0
        %1925 = vmatprep.subr.mxu0 0.0
        %1926 = vmatpush1.xpose.msra.mxu0 0.0
        %1927 = vmatprep.subr.mxu0 0.0
        %1928 = vmatpush1.xpose.msra.mxu0 0.0
        %1929 = vmatprep.subr.mxu0 0.0
        %1930 = vmatpush1.xpose.msra.mxu0 0.0
        %1931 = vmatprep.subr.mxu0 0.0
        %1932 = vmatpush1.xpose.msra.mxu0 0.0
        %1933 = vmatprep.subr.mxu0 0.0
        %1934 = vmatpush1.xpose.msra.mxu0 0.0
        %1935 = vmatprep.subr.mxu0 0.0
        %1936 = vmatpush1.xpose.msra.mxu0 0.0
        %1937 = vmatprep.subr.mxu0 0.0
        %1938 = vmatpush1.xpose.msra.mxu0 0.0
        %1939 = vmatprep.subr.mxu0 0.0
        %1940 = vmatpush1.xpose.msra.mxu0 0.0
        %1941 = vmatprep.subr.mxu0 0.0
        %1942 = vmatpush1.xpose.msra.mxu0 0.0
        %1943 = vmatprep.subr.mxu0 0.0
        %1944 = vmatpush1.xpose.msra.mxu0 0.0
        %1945 = vmatprep.subr.mxu0 0.0
        %1946 = vmatpush1.xpose.msra.mxu0 0.0
        %1947 = vmatprep.subr.mxu0 0.0
        %1948 = vmatpush1.xpose.msra.mxu0 0.0
        %1949 = vmatprep.subr.mxu0 0.0
        %1950 = vmatpush1.xpose.msra.mxu0 0.0
        %1951 = vmatprep.subr.mxu0 0.0
        %1952 = vmatpush1.xpose.msra.mxu0 0.0
        %1953 = vmatprep.subr.mxu0 0.0
        %1954 = vmatpush1.xpose.msra.mxu0 0.0
        %1955 = vmatprep.subr.mxu0 0.0
        %1956 = vmatpush1.xpose.msra.mxu0 %v1923
        %1957 = vmatprep.subr.mxu0 0.0
        %1958 = vmatpush2.xpose.msra.mxu0 0.0
        %1959 = vmatprep.subr.mxu0 0.0
        %1960 = vmatpush2.xpose.msra.mxu0 0.0
        %1961 = vmatprep.subr.mxu0 0.0
        %1962 = vmatpush2.xpose.msra.mxu0 0.0
        %1963 = vmatprep.subr.mxu0 0.0
        %1964 = vmatpush2.xpose.msra.mxu0 0.0
        %1965 = vmatprep.subr.mxu0 0.0
        %1966 = vmatpush2.xpose.msra.mxu0 0.0
        %1967 = vmatprep.subr.mxu0 0.0
        %1968 = vmatpush2.xpose.msra.mxu0 0.0
        %1969 = vmatprep.subr.mxu0 0.0
        %1970 = vmatpush2.xpose.msra.mxu0 0.0
        %1971 = vmatprep.subr.mxu0 0.0
        %1972 = vmatpush2.xpose.msra.mxu0 0.0
        %1973 = vmatprep.subr.mxu0 0.0
        %1974 = vmatpush2.xpose.msra.mxu0 0.0
        %1975 = vmatprep.subr.mxu0 0.0
        %1976 = vmatpush2.xpose.msra.mxu0 0.0
        %1977 = vmatprep.subr.mxu0 0.0
        %1978 = vmatpush2.xpose.msra.mxu0 0.0
        %1979 = vmatprep.subr.mxu0 0.0
        %1980 = vmatpush2.xpose.msra.mxu0 0.0
        %1981 = vmatprep.subr.mxu0 0.0
        %1982 = vmatpush2.xpose.msra.mxu0 0.0
        %1983 = vmatprep.subr.mxu0 0.0
        %1984 = vmatpush2.xpose.msra.mxu0 0.0
        %1985 = vmatprep.subr.mxu0 0.0
        %1986 = vmatpush2.xpose.msra.mxu0 0.0
        %1987 = vmatprep.subr.mxu0 0.0
        %1988 = vmatpush2.xpose.msra.mxu0 0.0
        %1989 = vmatprep.mubr.f32.mxu0 0.0
        %1990 = vmatmul.mubr.f32.gmra.mxu0 %v1920
        %v1991 = vpop.f32.mrf.mxu0
        %v1992 = vadd.f32 0.0, %v1991
        %v1993 = vpop.f32.mrf.mxu0
        %1994 = vdwg.mxu0
        %v1995 = vld [vmem:[#allocation4] sm:$0xff]
        %v1996 = vld [vmem:[#allocation4 + $0x8] sm:$0xff]
        %v1997 = vld [vmem:[#allocation4 + $0x10] sm:$0xff]
        %v1998 = vld [vmem:[#allocation4 + $0x18] sm:$0xff]
        %v1999 = vsel %vm1690, %v1764, -inf
        %2000 = vmax.xlane.f32.xlu0 %v1999
        %v2001 = vpop.xlane.xlu0 %2000
        %v2002 = vsel %vm1690, %v1840, -inf
        %2003 = vmax.xlane.f32.xlu0 %v2002
        %v2004 = vpop.xlane.xlu0 %2003
        %v2005 = vsel %vm1690, %v1916, -inf
        %2006 = vmax.xlane.f32.xlu0 %v2005
        %v2007 = vpop.xlane.xlu0 %2006
        %v2008 = vsel %vm1690, %v1992, -inf
        %2009 = vmax.xlane.f32.xlu0 %v2008
        %v2010 = vpop.xlane.xlu0 %2009
        %v2011 = vmax.f32 %v1995, %v2001
        %v2012 = vmax.f32 %v1996, %v2004
        %v2013 = vmax.f32 %v1997, %v2007
        %v2014 = vmax.f32 %v1998, %v2010
        %v2015 = vsub.f32 %v1995, %v2011
        %v2016 = vsub.f32 %v1996, %v2012
        %v2017 = vsub.f32 %v1997, %v2013
        %v2018 = vsub.f32 %v1998, %v2014
        %v2019 = vmul.f32 %v2015, 1.442695
        %v2020 = vpow.pop %v2019
        %v2021 = vmul.f32 %v2016, 1.442695
        %v2022 = vpow.pop %v2021
        %v2023 = vmul.f32 %v2017, 1.442695
        %v2024 = vpow.pop %v2023
        %v2025 = vmul.f32 %v2018, 1.442695
        %v2026 = vpow.pop %v2025
        %2028 = vset.pattern.permute.xlu0 0
        %2029 = vperm.xlu0 %2028, %v2011
        %v2030 = vpop.permute.xlu0 %2029
        %2033 = vset.pattern.permute.xlu0 0
        %2034 = vperm.xlu0 %2033, %v2012
        %v2035 = vpop.permute.xlu0 %2034
        %2038 = vset.pattern.permute.xlu0 0
        %2039 = vperm.xlu0 %2038, %v2013
        %v2040 = vpop.permute.xlu0 %2039
        %2043 = vset.pattern.permute.xlu0 0
        %2044 = vperm.xlu0 %2043, %v2014
        %v2045 = vpop.permute.xlu0 %2044
        %v2047 = vsub.f32 %v1764, %v2030
        %v2048 = vsub.f32 %v1840, %v2035
        %v2049 = vsub.f32 %v1916, %v2040
        %v2050 = vsub.f32 %v1992, %v2045
        %v2051 = vmul.f32 %v2047, 1.442695
        %v2052 = vpow.pop %v2051
        %v2053 = vmul.f32 %v2048, 1.442695
        %v2054 = vpow.pop %v2053
        %v2055 = vmul.f32 %v2049, 1.442695
        %v2056 = vpow.pop %v2055
        %v2057 = vmul.f32 %v2050, 1.442695
        %v2058 = vpow.pop %v2057
        %v2059 = vld [vmem:[#allocation5] sm:$0xff]
        %v2060 = vld [vmem:[#allocation5 + $0x8] sm:$0xff]
        %v2061 = vld [vmem:[#allocation5 + $0x10] sm:$0xff]
        %v2062 = vld [vmem:[#allocation5 + $0x18] sm:$0xff]
        %v2063 = vmul.f32 %v2020, %v2059
        %v2064 = vmul.f32 %v2022, %v2060
        %v2065 = vmul.f32 %v2024, %v2061
        %v2066 = vmul.f32 %v2026, %v2062
        %v2067 = vsel %vm1690, %v2052, 0.0
        %2068 = vadd.xlane.f32.xlu0 %v2067
        %v2069 = vpop.xlane.xlu0 %2068
        %v2070 = vsel %vm1690, %v2054, 0.0
        %2071 = vadd.xlane.f32.xlu0 %v2070
        %v2072 = vpop.xlane.xlu0 %2071
        %v2073 = vsel %vm1690, %v2056, 0.0
        %2074 = vadd.xlane.f32.xlu0 %v2073
        %v2075 = vpop.xlane.xlu0 %2074
        %v2076 = vsel %vm1690, %v2058, 0.0
        %2077 = vadd.xlane.f32.xlu0 %v2076
        %v2078 = vpop.xlane.xlu0 %2077
        %v2079 = vadd.f32 %v2063, %v2069
        %v2080 = vadd.f32 %v2064, %v2072
        %v2081 = vadd.f32 %v2065, %v2075
        %v2082 = vadd.f32 %v2066, %v2078
        %vm2083 = vcmask 7168
        %2084 = vst.msk [vmem:[#allocation5] sm:$0xff] %vm2083, %v2079
        %2085 = vst.msk [vmem:[#allocation5 + $0x8] sm:$0xff] %vm2083, %v2080
        %2086 = vst.msk [vmem:[#allocation5 + $0x10] sm:$0xff] %vm2083, %v2081
        %2087 = vst.msk [vmem:[#allocation5 + $0x18] sm:$0xff] %vm2083, %v2082
        %v2088 = vld [vmem:[#allocation6] sm:$0xff]
        %v2089 = vld [vmem:[#allocation6 + $0x8] sm:$0xff]
        %v2090 = vld [vmem:[#allocation6 + $0x10] sm:$0xff]
        %v2091 = vld [vmem:[#allocation6 + $0x18] sm:$0xff]
        %2093 = vset.pattern.permute.xlu0 0
        %2094 = vperm.xlu0 %2093, %v2020
        %v2095 = vpop.permute.xlu0 %2094
        %2098 = vset.pattern.permute.xlu0 0
        %2099 = vperm.xlu0 %2098, %v2022
        %v2100 = vpop.permute.xlu0 %2099
        %2103 = vset.pattern.permute.xlu0 0
        %2104 = vperm.xlu0 %2103, %v2024
        %v2105 = vpop.permute.xlu0 %2104
        %2108 = vset.pattern.permute.xlu0 0
        %2109 = vperm.xlu0 %2108, %v2026
        %v2110 = vpop.permute.xlu0 %2109
        %v2112 = vmul.f32 %v2095, %v2088
        %v2113 = vmul.f32 %v2100, %v2089
        %v2114 = vmul.f32 %v2105, %v2090
        %v2115 = vmul.f32 %v2110, %v2091
        %v2117 = vsel %vm1690, %v2052, 0
        %2119 = vmatprep.subr.mxu0 0.0
        %2120 = vmatpush1.msra.mxu0 0.0
        %2121 = vmatprep.subr.mxu0 0.0
        %2122 = vmatpush1.msra.mxu0 0.0
        %2123 = vmatprep.subr.mxu0 0.0
        %2124 = vmatpush1.msra.mxu0 0.0
        %2125 = vmatprep.subr.mxu0 0.0
        %2126 = vmatpush1.msra.mxu0 0.0
        %2127 = vmatprep.subr.mxu0 0.0
        %2128 = vmatpush1.msra.mxu0 0.0
        %2129 = vmatprep.subr.mxu0 0.0
        %2130 = vmatpush1.msra.mxu0 0.0
        %2131 = vmatprep.subr.mxu0 0.0
        %2132 = vmatpush1.msra.mxu0 0.0
        %2133 = vmatprep.subr.mxu0 0.0
        %2134 = vmatpush1.msra.mxu0 0.0
        %2135 = vmatprep.subr.mxu0 0.0
        %2136 = vmatpush1.msra.mxu0 0.0
        %2137 = vmatprep.subr.mxu0 0.0
        %2138 = vmatpush1.msra.mxu0 0.0
        %2139 = vmatprep.subr.mxu0 0.0
        %2140 = vmatpush1.msra.mxu0 0.0
        %2141 = vmatprep.subr.mxu0 0.0
        %2142 = vmatpush1.msra.mxu0 0.0
        %2143 = vmatprep.subr.mxu0 0.0
        %2144 = vmatpush1.msra.mxu0 0.0
        %2145 = vmatprep.subr.mxu0 0.0
        %2146 = vmatpush1.msra.mxu0 0.0
        %2147 = vmatprep.subr.mxu0 0.0
        %2148 = vmatpush1.msra.mxu0 0.0
        %2149 = vmatprep.subr.mxu0 0.0
        %2150 = vmatpush1.msra.mxu0 %v1473
        %2151 = vmatprep.subr.mxu0 0.0
        %2152 = vmatpush2.msra.mxu0 0.0
        %2153 = vmatprep.subr.mxu0 0.0
        %2154 = vmatpush2.msra.mxu0 0.0
        %2155 = vmatprep.subr.mxu0 0.0
        %2156 = vmatpush2.msra.mxu0 0.0
        %2157 = vmatprep.subr.mxu0 0.0
        %2158 = vmatpush2.msra.mxu0 0.0
        %2159 = vmatprep.subr.mxu0 0.0
        %2160 = vmatpush2.msra.mxu0 0.0
        %2161 = vmatprep.subr.mxu0 0.0
        %2162 = vmatpush2.msra.mxu0 0.0
        %2163 = vmatprep.subr.mxu0 0.0
        %2164 = vmatpush2.msra.mxu0 0.0
        %2165 = vmatprep.subr.mxu0 0.0
        %2166 = vmatpush2.msra.mxu0 0.0
        %2167 = vmatprep.subr.mxu0 0.0
        %2168 = vmatpush2.msra.mxu0 0.0
        %2169 = vmatprep.subr.mxu0 0.0
        %2170 = vmatpush2.msra.mxu0 0.0
        %2171 = vmatprep.subr.mxu0 0.0
        %2172 = vmatpush2.msra.mxu0 0.0
        %2173 = vmatprep.subr.mxu0 0.0
        %2174 = vmatpush2.msra.mxu0 0.0
        %2175 = vmatprep.subr.mxu0 0.0
        %2176 = vmatpush2.msra.mxu0 0.0
        %2177 = vmatprep.subr.mxu0 0.0
        %2178 = vmatpush2.msra.mxu0 0.0
        %2179 = vmatprep.subr.mxu0 0.0
        %2180 = vmatpush2.msra.mxu0 0.0
        %2181 = vmatprep.subr.mxu0 0.0
        %2182 = vmatpush2.msra.mxu0 0.0
        %2183 = vmatprep.mubr.f32.mxu0 0.0
        %2184 = vmatmul.mubr.f32.gmra.mxu0 %v2117
        %v2185 = vpop.f32.mrf.mxu0
        %v2186 = vadd.f32 0.0, %v2185
        %v2187 = vpop.f32.mrf.mxu0
        %2188 = vdwg.mxu0
        %v2190 = vsel %vm1690, %v2054, 0
        %2192 = vmatprep.subr.mxu0 0.0
        %2193 = vmatpush1.msra.mxu0 0.0
        %2194 = vmatprep.subr.mxu0 0.0
        %2195 = vmatpush1.msra.mxu0 0.0
        %2196 = vmatprep.subr.mxu0 0.0
        %2197 = vmatpush1.msra.mxu0 0.0
        %2198 = vmatprep.subr.mxu0 0.0
        %2199 = vmatpush1.msra.mxu0 0.0
        %2200 = vmatprep.subr.mxu0 0.0
        %2201 = vmatpush1.msra.mxu0 0.0
        %2202 = vmatprep.subr.mxu0 0.0
        %2203 = vmatpush1.msra.mxu0 0.0
        %2204 = vmatprep.subr.mxu0 0.0
        %2205 = vmatpush1.msra.mxu0 0.0
        %2206 = vmatprep.subr.mxu0 0.0
        %2207 = vmatpush1.msra.mxu0 0.0
        %2208 = vmatprep.subr.mxu0 0.0
        %2209 = vmatpush1.msra.mxu0 0.0
        %2210 = vmatprep.subr.mxu0 0.0
        %2211 = vmatpush1.msra.mxu0 0.0
        %2212 = vmatprep.subr.mxu0 0.0
        %2213 = vmatpush1.msra.mxu0 0.0
        %2214 = vmatprep.subr.mxu0 0.0
        %2215 = vmatpush1.msra.mxu0 0.0
        %2216 = vmatprep.subr.mxu0 0.0
        %2217 = vmatpush1.msra.mxu0 0.0
        %2218 = vmatprep.subr.mxu0 0.0
        %2219 = vmatpush1.msra.mxu0 0.0
        %2220 = vmatprep.subr.mxu0 0.0
        %2221 = vmatpush1.msra.mxu0 0.0
        %2222 = vmatprep.subr.mxu0 0.0
        %2223 = vmatpush1.msra.mxu0 %v1543
        %2224 = vmatprep.subr.mxu0 0.0
        %2225 = vmatpush2.msra.mxu0 0.0
        %2226 = vmatprep.subr.mxu0 0.0
        %2227 = vmatpush2.msra.mxu0 0.0
        %2228 = vmatprep.subr.mxu0 0.0
        %2229 = vmatpush2.msra.mxu0 0.0
        %2230 = vmatprep.subr.mxu0 0.0
        %2231 = vmatpush2.msra.mxu0 0.0
        %2232 = vmatprep.subr.mxu0 0.0
        %2233 = vmatpush2.msra.mxu0 0.0
        %2234 = vmatprep.subr.mxu0 0.0
        %2235 = vmatpush2.msra.mxu0 0.0
        %2236 = vmatprep.subr.mxu0 0.0
        %2237 = vmatpush2.msra.mxu0 0.0
        %2238 = vmatprep.subr.mxu0 0.0
        %2239 = vmatpush2.msra.mxu0 0.0
        %2240 = vmatprep.subr.mxu0 0.0
        %2241 = vmatpush2.msra.mxu0 0.0
        %2242 = vmatprep.subr.mxu0 0.0
        %2243 = vmatpush2.msra.mxu0 0.0
        %2244 = vmatprep.subr.mxu0 0.0
        %2245 = vmatpush2.msra.mxu0 0.0
        %2246 = vmatprep.subr.mxu0 0.0
        %2247 = vmatpush2.msra.mxu0 0.0
        %2248 = vmatprep.subr.mxu0 0.0
        %2249 = vmatpush2.msra.mxu0 0.0
        %2250 = vmatprep.subr.mxu0 0.0
        %2251 = vmatpush2.msra.mxu0 0.0
        %2252 = vmatprep.subr.mxu0 0.0
        %2253 = vmatpush2.msra.mxu0 0.0
        %2254 = vmatprep.subr.mxu0 0.0
        %2255 = vmatpush2.msra.mxu0 0.0
        %2256 = vmatprep.mubr.f32.mxu0 0.0
        %2257 = vmatmul.mubr.f32.gmra.mxu0 %v2190
        %v2258 = vpop.f32.mrf.mxu0
        %v2259 = vadd.f32 0.0, %v2258
        %v2260 = vpop.f32.mrf.mxu0
        %2261 = vdwg.mxu0
        %v2263 = vsel %vm1690, %v2056, 0
        %2265 = vmatprep.subr.mxu0 0.0
        %2266 = vmatpush1.msra.mxu0 0.0
        %2267 = vmatprep.subr.mxu0 0.0
        %2268 = vmatpush1.msra.mxu0 0.0
        %2269 = vmatprep.subr.mxu0 0.0
        %2270 = vmatpush1.msra.mxu0 0.0
        %2271 = vmatprep.subr.mxu0 0.0
        %2272 = vmatpush1.msra.mxu0 0.0
        %2273 = vmatprep.subr.mxu0 0.0
        %2274 = vmatpush1.msra.mxu0 0.0
        %2275 = vmatprep.subr.mxu0 0.0
        %2276 = vmatpush1.msra.mxu0 0.0
        %2277 = vmatprep.subr.mxu0 0.0
        %2278 = vmatpush1.msra.mxu0 0.0
        %2279 = vmatprep.subr.mxu0 0.0
        %2280 = vmatpush1.msra.mxu0 0.0
        %2281 = vmatprep.subr.mxu0 0.0
        %2282 = vmatpush1.msra.mxu0 0.0
        %2283 = vmatprep.subr.mxu0 0.0
        %2284 = vmatpush1.msra.mxu0 0.0
        %2285 = vmatprep.subr.mxu0 0.0
        %2286 = vmatpush1.msra.mxu0 0.0
        %2287 = vmatprep.subr.mxu0 0.0
        %2288 = vmatpush1.msra.mxu0 0.0
        %2289 = vmatprep.subr.mxu0 0.0
        %2290 = vmatpush1.msra.mxu0 0.0
        %2291 = vmatprep.subr.mxu0 0.0
        %2292 = vmatpush1.msra.mxu0 0.0
        %2293 = vmatprep.subr.mxu0 0.0
        %2294 = vmatpush1.msra.mxu0 0.0
        %2295 = vmatprep.subr.mxu0 0.0
        %2296 = vmatpush1.msra.mxu0 %v1613
        %2297 = vmatprep.subr.mxu0 0.0
        %2298 = vmatpush2.msra.mxu0 0.0
        %2299 = vmatprep.subr.mxu0 0.0
        %2300 = vmatpush2.msra.mxu0 0.0
        %2301 = vmatprep.subr.mxu0 0.0
        %2302 = vmatpush2.msra.mxu0 0.0
        %2303 = vmatprep.subr.mxu0 0.0
        %2304 = vmatpush2.msra.mxu0 0.0
        %2305 = vmatprep.subr.mxu0 0.0
        %2306 = vmatpush2.msra.mxu0 0.0
        %2307 = vmatprep.subr.mxu0 0.0
        %2308 = vmatpush2.msra.mxu0 0.0
        %2309 = vmatprep.subr.mxu0 0.0
        %2310 = vmatpush2.msra.mxu0 0.0
        %2311 = vmatprep.subr.mxu0 0.0
        %2312 = vmatpush2.msra.mxu0 0.0
        %2313 = vmatprep.subr.mxu0 0.0
        %2314 = vmatpush2.msra.mxu0 0.0
        %2315 = vmatprep.subr.mxu0 0.0
        %2316 = vmatpush2.msra.mxu0 0.0
        %2317 = vmatprep.subr.mxu0 0.0
        %2318 = vmatpush2.msra.mxu0 0.0
        %2319 = vmatprep.subr.mxu0 0.0
        %2320 = vmatpush2.msra.mxu0 0.0
        %2321 = vmatprep.subr.mxu0 0.0
        %2322 = vmatpush2.msra.mxu0 0.0
        %2323 = vmatprep.subr.mxu0 0.0
        %2324 = vmatpush2.msra.mxu0 0.0
        %2325 = vmatprep.subr.mxu0 0.0
        %2326 = vmatpush2.msra.mxu0 0.0
        %2327 = vmatprep.subr.mxu0 0.0
        %2328 = vmatpush2.msra.mxu0 0.0
        %2329 = vmatprep.mubr.f32.mxu0 0.0
        %2330 = vmatmul.mubr.f32.gmra.mxu0 %v2263
        %v2331 = vpop.f32.mrf.mxu0
        %v2332 = vadd.f32 0.0, %v2331
        %v2333 = vpop.f32.mrf.mxu0
        %2334 = vdwg.mxu0
        %v2336 = vsel %vm1690, %v2058, 0
        %2338 = vmatprep.subr.mxu0 0.0
        %2339 = vmatpush1.msra.mxu0 0.0
        %2340 = vmatprep.subr.mxu0 0.0
        %2341 = vmatpush1.msra.mxu0 0.0
        %2342 = vmatprep.subr.mxu0 0.0
        %2343 = vmatpush1.msra.mxu0 0.0
        %2344 = vmatprep.subr.mxu0 0.0
        %2345 = vmatpush1.msra.mxu0 0.0
        %2346 = vmatprep.subr.mxu0 0.0
        %2347 = vmatpush1.msra.mxu0 0.0
        %2348 = vmatprep.subr.mxu0 0.0
        %2349 = vmatpush1.msra.mxu0 0.0
        %2350 = vmatprep.subr.mxu0 0.0
        %2351 = vmatpush1.msra.mxu0 0.0
        %2352 = vmatprep.subr.mxu0 0.0
        %2353 = vmatpush1.msra.mxu0 0.0
        %2354 = vmatprep.subr.mxu0 0.0
        %2355 = vmatpush1.msra.mxu0 0.0
        %2356 = vmatprep.subr.mxu0 0.0
        %2357 = vmatpush1.msra.mxu0 0.0
        %2358 = vmatprep.subr.mxu0 0.0
        %2359 = vmatpush1.msra.mxu0 0.0
        %2360 = vmatprep.subr.mxu0 0.0
        %2361 = vmatpush1.msra.mxu0 0.0
        %2362 = vmatprep.subr.mxu0 0.0
        %2363 = vmatpush1.msra.mxu0 0.0
        %2364 = vmatprep.subr.mxu0 0.0
        %2365 = vmatpush1.msra.mxu0 0.0
        %2366 = vmatprep.subr.mxu0 0.0
        %2367 = vmatpush1.msra.mxu0 0.0
        %2368 = vmatprep.subr.mxu0 0.0
        %2369 = vmatpush1.msra.mxu0 %v1683
        %2370 = vmatprep.subr.mxu0 0.0
        %2371 = vmatpush2.msra.mxu0 0.0
        %2372 = vmatprep.subr.mxu0 0.0
        %2373 = vmatpush2.msra.mxu0 0.0
        %2374 = vmatprep.subr.mxu0 0.0
        %2375 = vmatpush2.msra.mxu0 0.0
        %2376 = vmatprep.subr.mxu0 0.0
        %2377 = vmatpush2.msra.mxu0 0.0
        %2378 = vmatprep.subr.mxu0 0.0
        %2379 = vmatpush2.msra.mxu0 0.0
        %2380 = vmatprep.subr.mxu0 0.0
        %2381 = vmatpush2.msra.mxu0 0.0
        %2382 = vmatprep.subr.mxu0 0.0
        %2383 = vmatpush2.msra.mxu0 0.0
        %2384 = vmatprep.subr.mxu0 0.0
        %2385 = vmatpush2.msra.mxu0 0.0
        %2386 = vmatprep.subr.mxu0 0.0
        %2387 = vmatpush2.msra.mxu0 0.0
        %2388 = vmatprep.subr.mxu0 0.0
        %2389 = vmatpush2.msra.mxu0 0.0
        %2390 = vmatprep.subr.mxu0 0.0
        %2391 = vmatpush2.msra.mxu0 0.0
        %2392 = vmatprep.subr.mxu0 0.0
        %2393 = vmatpush2.msra.mxu0 0.0
        %2394 = vmatprep.subr.mxu0 0.0
        %2395 = vmatpush2.msra.mxu0 0.0
        %2396 = vmatprep.subr.mxu0 0.0
        %2397 = vmatpush2.msra.mxu0 0.0
        %2398 = vmatprep.subr.mxu0 0.0
        %2399 = vmatpush2.msra.mxu0 0.0
        %2400 = vmatprep.subr.mxu0 0.0
        %2401 = vmatpush2.msra.mxu0 0.0
        %2402 = vmatprep.mubr.f32.mxu0 0.0
        %2403 = vmatmul.mubr.f32.gmra.mxu0 %v2336
        %v2404 = vpop.f32.mrf.mxu0
        %v2405 = vadd.f32 0.0, %v2404
        %v2406 = vpop.f32.mrf.mxu0
        %2407 = vdwg.mxu0
        %v2408 = vadd.f32 %v2112, %v2186
        %v2409 = vadd.f32 %v2113, %v2259
        %v2410 = vadd.f32 %v2114, %v2332
        %v2411 = vadd.f32 %v2115, %v2405
        %2412 = vst.msk [vmem:[#allocation6] sm:$0xff] %vm1690, %v2408
        %2413 = vst.msk [vmem:[#allocation6 + $0x8] sm:$0xff] %vm1690, %v2409
        %2414 = vst.msk [vmem:[#allocation6 + $0x10] sm:$0xff] %vm1690, %v2410
        %2415 = vst.msk [vmem:[#allocation6 + $0x18] sm:$0xff] %vm1690, %v2411
        %2416 = vst.msk [vmem:[#allocation4] sm:$0xff] %vm2083, %v2011
        %2417 = vst.msk [vmem:[#allocation4 + $0x8] sm:$0xff] %vm2083, %v2012
        %2418 = vst.msk [vmem:[#allocation4 + $0x10] sm:$0xff] %vm2083, %v2013
        %2419 = vst.msk [vmem:[#allocation4 + $0x18] sm:$0xff] %vm2083, %v2014
        // Predicated region
        $region89: #{tpu_custom_call.1} parent=83 // pred_check
          %p2420 = pneg %p635
        $region90: #{tpu_custom_call.1} parent=83 // pred_check_branch
          %2422 = sbr.rel (%p2420) target = $region92
        $region91: #{tpu_custom_call.1} parent=83 // pred_region
          %v2423 = vld [vmem:[#allocation5] sm:$0xff]
          %v2424 = vld [vmem:[#allocation5 + $0x8] sm:$0xff]
          %v2425 = vld [vmem:[#allocation5 + $0x10] sm:$0xff]
          %v2426 = vld [vmem:[#allocation5 + $0x18] sm:$0xff]
          %v2427 = vrcp.pop %v2423
          %v2428 = vrcp.pop %v2424
          %v2429 = vrcp.pop %v2425
          %v2430 = vrcp.pop %v2426
          %v2431 = vld [vmem:[#allocation6] sm:$0xff]
          %v2432 = vld [vmem:[#allocation6 + $0x8] sm:$0xff]
          %v2433 = vld [vmem:[#allocation6 + $0x10] sm:$0xff]
          %v2434 = vld [vmem:[#allocation6 + $0x18] sm:$0xff]
          %2436 = vset.pattern.permute.xlu0 0
          %2437 = vperm.xlu0 %2436, %v2427
          %v2438 = vpop.permute.xlu0 %2437
          %2441 = vset.pattern.permute.xlu0 0
          %2442 = vperm.xlu0 %2441, %v2428
          %v2443 = vpop.permute.xlu0 %2442
          %2446 = vset.pattern.permute.xlu0 0
          %2447 = vperm.xlu0 %2446, %v2429
          %v2448 = vpop.permute.xlu0 %2447
          %2451 = vset.pattern.permute.xlu0 0
          %2452 = vperm.xlu0 %2451, %v2430
          %v2453 = vpop.permute.xlu0 %2452
          %v2455 = vmul.f32 %v2431, %v2438
          %v2456 = vmul.f32 %v2432, %v2443
          %v2457 = vmul.f32 %v2433, %v2448
          %v2458 = vmul.f32 %v2434, %v2453
          %v2459 = vld [vmem:[%s12] sm:$0xff]
          %v2460 = vld [vmem:[%s12 + $0x8] sm:$0xff]
          %v2461 = vld [vmem:[%s12 + $0x10] sm:$0xff]
          %v2462 = vld [vmem:[%s12 + $0x18] sm:$0xff]
          %v2464 = vsel %vm1690, %v2455, 0
          %2466 = vmatprep.subr.mxu0 0.0
          %2467 = vmatpush1.msra.mxu0 0.0
          %2468 = vmatprep.subr.mxu0 0.0
          %2469 = vmatpush1.msra.mxu0 0.0
          %2470 = vmatprep.subr.mxu0 0.0
          %2471 = vmatpush1.msra.mxu0 0.0
          %2472 = vmatprep.subr.mxu0 0.0
          %2473 = vmatpush1.msra.mxu0 0.0
          %2474 = vmatprep.subr.mxu0 0.0
          %2475 = vmatpush1.msra.mxu0 0.0
          %2476 = vmatprep.subr.mxu0 0.0
          %2477 = vmatpush1.msra.mxu0 0.0
          %2478 = vmatprep.subr.mxu0 0.0
          %2479 = vmatpush1.msra.mxu0 0.0
          %2480 = vmatprep.subr.mxu0 0.0
          %2481 = vmatpush1.msra.mxu0 0.0
          %2482 = vmatprep.subr.mxu0 0.0
          %2483 = vmatpush1.msra.mxu0 0.0
          %2484 = vmatprep.subr.mxu0 0.0
          %2485 = vmatpush1.msra.mxu0 0.0
          %2486 = vmatprep.subr.mxu0 0.0
          %2487 = vmatpush1.msra.mxu0 0.0
          %2488 = vmatprep.subr.mxu0 0.0
          %2489 = vmatpush1.msra.mxu0 0.0
          %2490 = vmatprep.subr.mxu0 0.0
          %2491 = vmatpush1.msra.mxu0 0.0
          %2492 = vmatprep.subr.mxu0 0.0
          %2493 = vmatpush1.msra.mxu0 0.0
          %2494 = vmatprep.subr.mxu0 0.0
          %2495 = vmatpush1.msra.mxu0 0.0
          %2496 = vmatprep.subr.mxu0 0.0
          %2497 = vmatpush1.msra.mxu0 %v2459
          %2498 = vmatprep.subr.mxu0 0.0
          %2499 = vmatpush2.msra.mxu0 0.0
          %2500 = vmatprep.subr.mxu0 0.0
          %2501 = vmatpush2.msra.mxu0 0.0
          %2502 = vmatprep.subr.mxu0 0.0
          %2503 = vmatpush2.msra.mxu0 0.0
          %2504 = vmatprep.subr.mxu0 0.0
          %2505 = vmatpush2.msra.mxu0 0.0
          %2506 = vmatprep.subr.mxu0 0.0
          %2507 = vmatpush2.msra.mxu0 0.0
          %2508 = vmatprep.subr.mxu0 0.0
          %2509 = vmatpush2.msra.mxu0 0.0
          %2510 = vmatprep.subr.mxu0 0.0
          %2511 = vmatpush2.msra.mxu0 0.0
          %2512 = vmatprep.subr.mxu0 0.0
          %2513 = vmatpush2.msra.mxu0 0.0
          %2514 = vmatprep.subr.mxu0 0.0
          %2515 = vmatpush2.msra.mxu0 0.0
          %2516 = vmatprep.subr.mxu0 0.0
          %2517 = vmatpush2.msra.mxu0 0.0
          %2518 = vmatprep.subr.mxu0 0.0
          %2519 = vmatpush2.msra.mxu0 0.0
          %2520 = vmatprep.subr.mxu0 0.0
          %2521 = vmatpush2.msra.mxu0 0.0
          %2522 = vmatprep.subr.mxu0 0.0
          %2523 = vmatpush2.msra.mxu0 0.0
          %2524 = vmatprep.subr.mxu0 0.0
          %2525 = vmatpush2.msra.mxu0 0.0
          %2526 = vmatprep.subr.mxu0 0.0
          %2527 = vmatpush2.msra.mxu0 0.0
          %2528 = vmatprep.subr.mxu0 0.0
          %2529 = vmatpush2.msra.mxu0 0.0
          %2530 = vmatprep.mubr.f32.mxu0 0.0
          %2531 = vmatmul.mubr.f32.gmra.mxu0 %v2464
          %v2532 = vpop.f32.mrf.mxu0
          %v2533 = vadd.f32 0.0, %v2532
          %v2534 = vpop.f32.mrf.mxu0
          %2535 = vdwg.mxu0
          %v2537 = vsel %vm1690, %v2456, 0
          %2539 = vmatprep.subr.mxu0 0.0
          %2540 = vmatpush1.msra.mxu0 0.0
          %2541 = vmatprep.subr.mxu0 0.0
          %2542 = vmatpush1.msra.mxu0 0.0
          %2543 = vmatprep.subr.mxu0 0.0
          %2544 = vmatpush1.msra.mxu0 0.0
          %2545 = vmatprep.subr.mxu0 0.0
          %2546 = vmatpush1.msra.mxu0 0.0
          %2547 = vmatprep.subr.mxu0 0.0
          %2548 = vmatpush1.msra.mxu0 0.0
          %2549 = vmatprep.subr.mxu0 0.0
          %2550 = vmatpush1.msra.mxu0 0.0
          %2551 = vmatprep.subr.mxu0 0.0
          %2552 = vmatpush1.msra.mxu0 0.0
          %2553 = vmatprep.subr.mxu0 0.0
          %2554 = vmatpush1.msra.mxu0 0.0
          %2555 = vmatprep.subr.mxu0 0.0
          %2556 = vmatpush1.msra.mxu0 0.0
          %2557 = vmatprep.subr.mxu0 0.0
          %2558 = vmatpush1.msra.mxu0 0.0
          %2559 = vmatprep.subr.mxu0 0.0
          %2560 = vmatpush1.msra.mxu0 0.0
          %2561 = vmatprep.subr.mxu0 0.0
          %2562 = vmatpush1.msra.mxu0 0.0
          %2563 = vmatprep.subr.mxu0 0.0
          %2564 = vmatpush1.msra.mxu0 0.0
          %2565 = vmatprep.subr.mxu0 0.0
          %2566 = vmatpush1.msra.mxu0 0.0
          %2567 = vmatprep.subr.mxu0 0.0
          %2568 = vmatpush1.msra.mxu0 0.0
          %2569 = vmatprep.subr.mxu0 0.0
          %2570 = vmatpush1.msra.mxu0 %v2460
          %2571 = vmatprep.subr.mxu0 0.0
          %2572 = vmatpush2.msra.mxu0 0.0
          %2573 = vmatprep.subr.mxu0 0.0
          %2574 = vmatpush2.msra.mxu0 0.0
          %2575 = vmatprep.subr.mxu0 0.0
          %2576 = vmatpush2.msra.mxu0 0.0
          %2577 = vmatprep.subr.mxu0 0.0
          %2578 = vmatpush2.msra.mxu0 0.0
          %2579 = vmatprep.subr.mxu0 0.0
          %2580 = vmatpush2.msra.mxu0 0.0
          %2581 = vmatprep.subr.mxu0 0.0
          %2582 = vmatpush2.msra.mxu0 0.0
          %2583 = vmatprep.subr.mxu0 0.0
          %2584 = vmatpush2.msra.mxu0 0.0
          %2585 = vmatprep.subr.mxu0 0.0
          %2586 = vmatpush2.msra.mxu0 0.0
          %2587 = vmatprep.subr.mxu0 0.0
          %2588 = vmatpush2.msra.mxu0 0.0
          %2589 = vmatprep.subr.mxu0 0.0
          %2590 = vmatpush2.msra.mxu0 0.0
          %2591 = vmatprep.subr.mxu0 0.0
          %2592 = vmatpush2.msra.mxu0 0.0
          %2593 = vmatprep.subr.mxu0 0.0
          %2594 = vmatpush2.msra.mxu0 0.0
          %2595 = vmatprep.subr.mxu0 0.0
          %2596 = vmatpush2.msra.mxu0 0.0
          %2597 = vmatprep.subr.mxu0 0.0
          %2598 = vmatpush2.msra.mxu0 0.0
          %2599 = vmatprep.subr.mxu0 0.0
          %2600 = vmatpush2.msra.mxu0 0.0
          %2601 = vmatprep.subr.mxu0 0.0
          %2602 = vmatpush2.msra.mxu0 0.0
          %2603 = vmatprep.mubr.f32.mxu0 0.0
          %2604 = vmatmul.mubr.f32.gmra.mxu0 %v2537
          %v2605 = vpop.f32.mrf.mxu0
          %v2606 = vadd.f32 0.0, %v2605
          %v2607 = vpop.f32.mrf.mxu0
          %2608 = vdwg.mxu0
          %v2610 = vsel %vm1690, %v2457, 0
          %2612 = vmatprep.subr.mxu0 0.0
          %2613 = vmatpush1.msra.mxu0 0.0
          %2614 = vmatprep.subr.mxu0 0.0
          %2615 = vmatpush1.msra.mxu0 0.0
          %2616 = vmatprep.subr.mxu0 0.0
          %2617 = vmatpush1.msra.mxu0 0.0
          %2618 = vmatprep.subr.mxu0 0.0
          %2619 = vmatpush1.msra.mxu0 0.0
          %2620 = vmatprep.subr.mxu0 0.0
          %2621 = vmatpush1.msra.mxu0 0.0
          %2622 = vmatprep.subr.mxu0 0.0
          %2623 = vmatpush1.msra.mxu0 0.0
          %2624 = vmatprep.subr.mxu0 0.0
          %2625 = vmatpush1.msra.mxu0 0.0
          %2626 = vmatprep.subr.mxu0 0.0
          %2627 = vmatpush1.msra.mxu0 0.0
          %2628 = vmatprep.subr.mxu0 0.0
          %2629 = vmatpush1.msra.mxu0 0.0
          %2630 = vmatprep.subr.mxu0 0.0
          %2631 = vmatpush1.msra.mxu0 0.0
          %2632 = vmatprep.subr.mxu0 0.0
          %2633 = vmatpush1.msra.mxu0 0.0
          %2634 = vmatprep.subr.mxu0 0.0
          %2635 = vmatpush1.msra.mxu0 0.0
          %2636 = vmatprep.subr.mxu0 0.0
          %2637 = vmatpush1.msra.mxu0 0.0
          %2638 = vmatprep.subr.mxu0 0.0
          %2639 = vmatpush1.msra.mxu0 0.0
          %2640 = vmatprep.subr.mxu0 0.0
          %2641 = vmatpush1.msra.mxu0 0.0
          %2642 = vmatprep.subr.mxu0 0.0
          %2643 = vmatpush1.msra.mxu0 %v2461
          %2644 = vmatprep.subr.mxu0 0.0
          %2645 = vmatpush2.msra.mxu0 0.0
          %2646 = vmatprep.subr.mxu0 0.0
          %2647 = vmatpush2.msra.mxu0 0.0
          %2648 = vmatprep.subr.mxu0 0.0
          %2649 = vmatpush2.msra.mxu0 0.0
          %2650 = vmatprep.subr.mxu0 0.0
          %2651 = vmatpush2.msra.mxu0 0.0
          %2652 = vmatprep.subr.mxu0 0.0
          %2653 = vmatpush2.msra.mxu0 0.0
          %2654 = vmatprep.subr.mxu0 0.0
          %2655 = vmatpush2.msra.mxu0 0.0
          %2656 = vmatprep.subr.mxu0 0.0
          %2657 = vmatpush2.msra.mxu0 0.0
          %2658 = vmatprep.subr.mxu0 0.0
          %2659 = vmatpush2.msra.mxu0 0.0
          %2660 = vmatprep.subr.mxu0 0.0
          %2661 = vmatpush2.msra.mxu0 0.0
          %2662 = vmatprep.subr.mxu0 0.0
          %2663 = vmatpush2.msra.mxu0 0.0
          %2664 = vmatprep.subr.mxu0 0.0
          %2665 = vmatpush2.msra.mxu0 0.0
          %2666 = vmatprep.subr.mxu0 0.0
          %2667 = vmatpush2.msra.mxu0 0.0
          %2668 = vmatprep.subr.mxu0 0.0
          %2669 = vmatpush2.msra.mxu0 0.0
          %2670 = vmatprep.subr.mxu0 0.0
          %2671 = vmatpush2.msra.mxu0 0.0
          %2672 = vmatprep.subr.mxu0 0.0
          %2673 = vmatpush2.msra.mxu0 0.0
          %2674 = vmatprep.subr.mxu0 0.0
          %2675 = vmatpush2.msra.mxu0 0.0
          %2676 = vmatprep.mubr.f32.mxu0 0.0
          %2677 = vmatmul.mubr.f32.gmra.mxu0 %v2610
          %v2678 = vpop.f32.mrf.mxu0
          %v2679 = vadd.f32 0.0, %v2678
          %v2680 = vpop.f32.mrf.mxu0
          %2681 = vdwg.mxu0
          %v2683 = vsel %vm1690, %v2458, 0
          %2685 = vmatprep.subr.mxu0 0.0
          %2686 = vmatpush1.msra.mxu0 0.0
          %2687 = vmatprep.subr.mxu0 0.0
          %2688 = vmatpush1.msra.mxu0 0.0
          %2689 = vmatprep.subr.mxu0 0.0
          %2690 = vmatpush1.msra.mxu0 0.0
          %2691 = vmatprep.subr.mxu0 0.0
          %2692 = vmatpush1.msra.mxu0 0.0
          %2693 = vmatprep.subr.mxu0 0.0
          %2694 = vmatpush1.msra.mxu0 0.0
          %2695 = vmatprep.subr.mxu0 0.0
          %2696 = vmatpush1.msra.mxu0 0.0
          %2697 = vmatprep.subr.mxu0 0.0
          %2698 = vmatpush1.msra.mxu0 0.0
          %2699 = vmatprep.subr.mxu0 0.0
          %2700 = vmatpush1.msra.mxu0 0.0
          %2701 = vmatprep.subr.mxu0 0.0
          %2702 = vmatpush1.msra.mxu0 0.0
          %2703 = vmatprep.subr.mxu0 0.0
          %2704 = vmatpush1.msra.mxu0 0.0
          %2705 = vmatprep.subr.mxu0 0.0
          %2706 = vmatpush1.msra.mxu0 0.0
          %2707 = vmatprep.subr.mxu0 0.0
          %2708 = vmatpush1.msra.mxu0 0.0
          %2709 = vmatprep.subr.mxu0 0.0
          %2710 = vmatpush1.msra.mxu0 0.0
          %2711 = vmatprep.subr.mxu0 0.0
          %2712 = vmatpush1.msra.mxu0 0.0
          %2713 = vmatprep.subr.mxu0 0.0
          %2714 = vmatpush1.msra.mxu0 0.0
          %2715 = vmatprep.subr.mxu0 0.0
          %2716 = vmatpush1.msra.mxu0 %v2462
          %2717 = vmatprep.subr.mxu0 0.0
          %2718 = vmatpush2.msra.mxu0 0.0
          %2719 = vmatprep.subr.mxu0 0.0
          %2720 = vmatpush2.msra.mxu0 0.0
          %2721 = vmatprep.subr.mxu0 0.0
          %2722 = vmatpush2.msra.mxu0 0.0
          %2723 = vmatprep.subr.mxu0 0.0
          %2724 = vmatpush2.msra.mxu0 0.0
          %2725 = vmatprep.subr.mxu0 0.0
          %2726 = vmatpush2.msra.mxu0 0.0
          %2727 = vmatprep.subr.mxu0 0.0
          %2728 = vmatpush2.msra.mxu0 0.0
          %2729 = vmatprep.subr.mxu0 0.0
          %2730 = vmatpush2.msra.mxu0 0.0
          %2731 = vmatprep.subr.mxu0 0.0
          %2732 = vmatpush2.msra.mxu0 0.0
          %2733 = vmatprep.subr.mxu0 0.0
          %2734 = vmatpush2.msra.mxu0 0.0
          %2735 = vmatprep.subr.mxu0 0.0
          %2736 = vmatpush2.msra.mxu0 0.0
          %2737 = vmatprep.subr.mxu0 0.0
          %2738 = vmatpush2.msra.mxu0 0.0
          %2739 = vmatprep.subr.mxu0 0.0
          %2740 = vmatpush2.msra.mxu0 0.0
          %2741 = vmatprep.subr.mxu0 0.0
          %2742 = vmatpush2.msra.mxu0 0.0
          %2743 = vmatprep.subr.mxu0 0.0
          %2744 = vmatpush2.msra.mxu0 0.0
          %2745 = vmatprep.subr.mxu0 0.0
          %2746 = vmatpush2.msra.mxu0 0.0
          %2747 = vmatprep.subr.mxu0 0.0
          %2748 = vmatpush2.msra.mxu0 0.0
          %2749 = vmatprep.mubr.f32.mxu0 0.0
          %2750 = vmatmul.mubr.f32.gmra.mxu0 %v2683
          %v2751 = vpop.f32.mrf.mxu0
          %v2752 = vadd.f32 0.0, %v2751
          %v2753 = vpop.f32.mrf.mxu0
          %2754 = vdwg.mxu0
          %v2755 = vsel %vm1078, %v2533, 0.0
          %v2756 = vsel %vm1078, %v2606, 0.0
          %v2757 = vadd.f32 %v2755, %v2756
          %v2758 = vsel %vm1078, %v2679, 0.0
          %v2759 = vadd.f32 %v2757, %v2758
          %v2760 = vsel %vm1078, %v2752, 0.0
          %v2761 = vadd.f32 %v2759, %v2760
          %v2762 = vld [vmem:[%s13] sm:$0x1]
          %v2764 = vlaneseq
          %v2765 = vshrl.u32 %v2764, 7
          %v2766 = vsub.s32 0, %v2765
          %v2767 = vrot.slane %v2762, %v2766
          %v2769 = vadd.f32 %v2761, %v2767
          %v2770 = vld [vmem:[#allocation3] sm:$0xff]
          %v2771 = vadd.f32 %v2770, %v2769
          %v2772 = vsel %vm1078, %v2771, 0.0
          %2773 = vadd.xlane.f32.xlu0 %v2772
          %v2774 = vpop.xlane.xlu0 %2773
          %v2775 = vrcp.pop 32.0
          %v2776 = vmul.f32 %v2774, %v2775
          %v2777 = vsub.f32 %v2771, %v2776
          %v2778 = vmul.f32 %v2777, %v2777
          %v2779 = vsel %vm1078, %v2778, 0.0
          %2780 = vadd.xlane.f32.xlu0 %v2779
          %v2781 = vpop.xlane.xlu0 %2780
          %v2782 = vmul.f32 %v2781, %v2775
          %v2783 = vadd.f32 %v2782, 1e-05
          %v2784 = vrsqrt.pop %v2783
          %v2785 = vmul.f32 %v2777, %v2784
          %v2786 = vld [vmem:[%s14] sm:$0x1]
          %v2788 = vlaneseq
          %v2789 = vshrl.u32 %v2788, 7
          %v2790 = vsub.s32 0, %v2789
          %v2791 = vrot.slane %v2786, %v2790
          %v2793 = vmul.f32 %v2785, %v2791
          %v2794 = vld [vmem:[%s15] sm:$0x1]
          %v2796 = vlaneseq
          %v2797 = vshrl.u32 %v2796, 7
          %v2798 = vsub.s32 0, %v2797
          %v2799 = vrot.slane %v2794, %v2798
          %v2801 = vadd.f32 %v2793, %v2799
          %2802 = vst.msk [vmem:[%s604] sm:$0xff] %vm1078, %v2801
        $region92: #{tpu_custom_call.1} parent=83 // pred_fallthru
          _
        %s2803 = sand.u32 %s423, 1
        %s2804 = scalar_lea.sflag [#allocation8], %s2803
        %s2805 = sand.u32 %s423, 1
        %s2806 = smul.addr %s2805, 8
        %s2807 = scalar_lea.vmem [#allocation7], %s2806
        // Predicated region
        $region93: #{tpu_custom_call.1} parent=83 // pred_check
          %p2808 = pneg %p433
        $region94: #{tpu_custom_call.1} parent=83 // pred_check_branch
          %2810 = sbr.rel (%p2808) target = $region96
        $region95: #{tpu_custom_call.1} parent=83 // pred_region
          %s2812 = ssub.s32 128, 128
          %2813 = vsyncadd %s2804, %s2812
          %s2814 = sadd.s32 %s36, %s35
          %s2815 = smul.addr %s2814, 128
          %s2816 = scalar_lea.hbm %s16, %s2815
          %s2818 = sshll.u32 %s2807, 4
          %s2819 = int_to_ptr.vmem [resolvable:$true] %s2818
          %2821 = dma.vmem_to_hbm [thread:$0]  %s2819, 128, %s2816, %s2804
        $region96: #{tpu_custom_call.1} parent=83 // pred_fallthru
          _
      $region84: #{tpu_custom_call.1} parent=5 // pred_fallthru
        _
      %p2822 = scmp.le.s32.totalorder 2, %s25
      // Predicated region
      $region97: #{tpu_custom_call.1} parent=5 // pred_check
        %p2823 = pneg %p2822
      $region98: #{tpu_custom_call.1} parent=5 // pred_check_branch
        %2825 = sbr.rel (%p2823) target = $region100
      $region99: #{tpu_custom_call.1} parent=5 // pred_region
        %s2826 = ssub.s32 %s25, 2
        // Predicated region
        $region101: #{tpu_custom_call.1} parent=99 // pred_check
          %p2827 = pneg %p439
        $region102: #{tpu_custom_call.1} parent=99 // pred_check_branch
          %2829 = sbr.rel (%p2827) target = $region104
        $region103: #{tpu_custom_call.1} parent=99 // pred_region
          %s2830 = sand.u32 %s424, 1
          %s2831 = scalar_lea.sflag [#allocation8], %s2830
          %s2832 = sand.u32 %s424, 1
          %s2833 = smul.addr %s2832, 8
          %s2834 = scalar_lea.vmem [#allocation7], %s2833
          %2835 = dma.done %s2831, 128
        $region104: #{tpu_custom_call.1} parent=99 // pred_fallthru
          _
      $region100: #{tpu_custom_call.1} parent=5 // pred_fallthru
        _
    $region6: #{tpu_custom_call.1} parent=1 // loop_footer
      %s29 = sadd.s32 1, %s25
    $region7: #{tpu_custom_call.1} parent=1 // loop_footer_branch
      %24 = sbr.rel target = $region3
    $region8: #{tpu_custom_call.1} parent=1 // loop_exit
      _
    %2836 = vsyncpa [#allocation8], 1
    %s2837 = scalar_lea.sflag [#allocation8], 1
    %2838 = vsyncpa %s2837, 1

</llo_original>
